<compile_context>
chip_gen: v5e
topology: v5e:2x2
jax: 0.10.0
libtpu: 0.0.40
codegen_flags: <defaults>
</compile_context>

<pallas_src>
import jax
import jax.numpy as jnp
from jax import lax
from jax.experimental import pallas as pl
from jax.experimental.pallas import tpu as pltpu

LATENT_DIM = 512
NUM_LAYERS = 8


def mapping_kernel(x_ref, w_ref, b_ref, o_ref):
    """All 8 Linear layers in one grid step; activation is loop-carried."""
    act = x_ref[...].astype(jnp.float32)

    def layer(l, act):
        # bf16 weights were streamed from HBM; cast to f32 in-register so the
        # f32 activation chain keeps full accumulation precision.
        w = w_ref[l].astype(jnp.float32)                       # [in, out]
        b = b_ref[pl.ds(l, 1), :].astype(jnp.float32)          # [1, out]
        return jnp.dot(act, w, preferred_element_type=jnp.float32) + b

    act = lax.fori_loop(0, NUM_LAYERS, layer, act, unroll=True)
    o_ref[...] = act.astype(o_ref.dtype)


def generator_mapping(x, weights_t, biases):
    """x: [B, 512]; weights_t: [8, 512, 512] pre-transposed to [layer, in, out]
    (bf16); biases: [8, 512] f32. Returns [B, 512] in x.dtype."""
    B, D = x.shape
    assert D == LATENT_DIM
    assert weights_t.shape == (NUM_LAYERS, LATENT_DIM, LATENT_DIM)
    assert biases.shape == (NUM_LAYERS, LATENT_DIM)

    return pl.pallas_call(
        mapping_kernel,
        out_shape=jax.ShapeDtypeStruct((B, D), x.dtype),
        grid_spec=pltpu.PrefetchScalarGridSpec(
            num_scalar_prefetch=0,
            grid=(1,),
            in_specs=[
                pl.BlockSpec((B, D), lambda i: (0, 0)),                 # latent x
                pl.BlockSpec((NUM_LAYERS, D, D), lambda i: (0, 0, 0)),  # all weights
                pl.BlockSpec((NUM_LAYERS, D), lambda i: (0, 0)),        # all biases
            ],
            out_specs=pl.BlockSpec((B, D), lambda i: (0, 0)),
        ),
        compiler_params=pltpu.CompilerParams(
            dimension_semantics=("arbitrary",),
            vmem_limit_bytes=32 << 20,  # headroom for the resident weight block
        ),
    )(x, weights_t, biases)


def reference_mapping(x, weights_t, biases):
    """Pure-JAX reference: y = x @ W_t[l] + b[l] for l = 0..7, f32 math on the
    same (bf16-stored) parameter values the kernel sees."""
    out = x.astype(jnp.float32)
    for l in range(NUM_LAYERS):
        out = out @ weights_t[l].astype(jnp.float32) + biases[l].astype(jnp.float32)
    return out


def init_params(key):
    """Deterministic init mimicking nn.Linear default U(-1/sqrt(in), +1/sqrt(in)).

    Weights are generated directly in the kernel's storage layout:
    [layer, in, out] (already transposed from PyTorch's [out, in]) and stored
    in bf16, so there is no per-call transpose/cast in the hot path.
    """
    kw, kb = jax.random.split(key)
    bound = 1.0 / jnp.sqrt(jnp.float32(LATENT_DIM))
    weights_t = jax.random.uniform(
        kw, (NUM_LAYERS, LATENT_DIM, LATENT_DIM),
        minval=-bound, maxval=bound, dtype=jnp.float32).astype(jnp.bfloat16)
    biases = jax.random.uniform(
        kb, (NUM_LAYERS, LATENT_DIM),
        minval=-bound, maxval=bound, dtype=jnp.float32)
    return weights_t, biases


if __name__ == "__main__":
    key = jax.random.PRNGKey(0)
    k_x, k_p = jax.random.split(key)

    batch = 8  # small batch (one sublane tile); feature dims fixed at 512 by the module
    x = jax.random.normal(k_x, (batch, LATENT_DIM), dtype=jnp.float32)
    weights_t, biases = init_params(k_p)

    out = generator_mapping(x, weights_t, biases)
    out = jax.block_until_ready(out)

    ref = reference_mapping(x, weights_t, biases)
    assert out.shape == (batch, LATENT_DIM)
    assert jnp.allclose(out, ref, atol=1e-3, rtol=1e-3), "mismatch vs reference"

    # TODO(synk): Generator.forward() is `pass` (returns None) and
    # synthesize() references an undefined `self.synthesize_layers`; only the
    # mapping network carries real compute and is implemented here.
    print("KERNEL_OK")
</pallas_src>

<mosaic_0001>
module attributes {stable_mosaic.version = 11 : i64} {
  func.func @mapping_kernel(%arg0: i32, %arg1: memref<8x512xf32, #tpu.memory_space<vmem>>, %arg2: memref<8x512x512xbf16, #tpu.memory_space<vmem>>, %arg3: memref<8x512xf32, #tpu.memory_space<vmem>>, %arg4: memref<8x512xf32, #tpu.memory_space<vmem>>) attributes {dimension_semantics = [#tpu.dimension_semantics<arbitrary>], iteration_bounds = array<i64: 1>, scalar_prefetch = 0 : i64, scratch_operands = 0 : i64, tpu.core_type = #tpu.core_type<tc>, window_params = [{pipeline_mode = #tpu.pipeline_mode<synchronous>, transform_indices = @transform_0, window_bounds = array<i64: 8, 512>}, {pipeline_mode = #tpu.pipeline_mode<synchronous>, transform_indices = @transform_1, window_bounds = array<i64: 8, 512, 512>}, {pipeline_mode = #tpu.pipeline_mode<synchronous>, transform_indices = @transform_2, window_bounds = array<i64: 8, 512>}, {pipeline_mode = #tpu.pipeline_mode<synchronous>, transform_indices = @transform_3, window_bounds = array<i64: 8, 512>}]} {
    %c0 = arith.constant 0 : index
    %c0_0 = arith.constant 0 : index
    %0 = vector.load %arg1[%c0, %c0_0] : memref<8x512xf32, #tpu.memory_space<vmem>>, vector<8x512xf32>
    %c0_i32 = arith.constant 0 : i32
    %1 = arith.index_cast %c0_i32 : i32 to index
    %c0_1 = arith.constant 0 : index
    %c0_2 = arith.constant 0 : index
    %2 = vector.load %arg2[%1, %c0_1, %c0_2] : memref<8x512x512xbf16, #tpu.memory_space<vmem>>, vector<1x512x512xbf16>
    %3 = vector.shape_cast %2 : vector<1x512x512xbf16> to vector<512x512xbf16>
    %4 = arith.extf %3 : vector<512x512xbf16> to vector<512x512xf32>
    %5 = arith.index_cast %c0_i32 : i32 to index
    %c0_3 = arith.constant 0 : index
    %6 = vector.load %arg3[%5, %c0_3] : memref<8x512xf32, #tpu.memory_space<vmem>>, vector<1x512xf32>
    %cst = arith.constant dense<0.000000e+00> : vector<8x512xf32>
    %7 = tpu.matmul %0, %4, %cst {dimension_numbers = #tpu.dot_dimension_numbers<[1], [0], [0], [1], [0, 0, 1, 1], [], []>} : vector<8x512xf32>, vector<512x512xf32>, vector<8x512xf32> -> vector<8x512xf32>
    %8 = vector.broadcast %6 : vector<1x512xf32> to vector<8x512xf32>
    %9 = arith.addf %7, %8 : vector<8x512xf32>
    %c1_i32 = arith.constant 1 : i32
    %10 = arith.index_cast %c1_i32 : i32 to index
    %c0_4 = arith.constant 0 : index
    %c0_5 = arith.constant 0 : index
    %11 = vector.load %arg2[%10, %c0_4, %c0_5] : memref<8x512x512xbf16, #tpu.memory_space<vmem>>, vector<1x512x512xbf16>
    %12 = vector.shape_cast %11 : vector<1x512x512xbf16> to vector<512x512xbf16>
    %13 = arith.extf %12 : vector<512x512xbf16> to vector<512x512xf32>
    %14 = arith.index_cast %c1_i32 : i32 to index
    %c0_6 = arith.constant 0 : index
    %15 = vector.load %arg3[%14, %c0_6] : memref<8x512xf32, #tpu.memory_space<vmem>>, vector<1x512xf32>
    %cst_7 = arith.constant dense<0.000000e+00> : vector<8x512xf32>
    %16 = tpu.matmul %9, %13, %cst_7 {dimension_numbers = #tpu.dot_dimension_numbers<[1], [0], [0], [1], [0, 0, 1, 1], [], []>} : vector<8x512xf32>, vector<512x512xf32>, vector<8x512xf32> -> vector<8x512xf32>
    %17 = vector.broadcast %15 : vector<1x512xf32> to vector<8x512xf32>
    %18 = arith.addf %16, %17 : vector<8x512xf32>
    %c2_i32 = arith.constant 2 : i32
    %19 = arith.index_cast %c2_i32 : i32 to index
    %c0_8 = arith.constant 0 : index
    %c0_9 = arith.constant 0 : index
    %20 = vector.load %arg2[%19, %c0_8, %c0_9] : memref<8x512x512xbf16, #tpu.memory_space<vmem>>, vector<1x512x512xbf16>
    %21 = vector.shape_cast %20 : vector<1x512x512xbf16> to vector<512x512xbf16>
    %22 = arith.extf %21 : vector<512x512xbf16> to vector<512x512xf32>
    %23 = arith.index_cast %c2_i32 : i32 to index
    %c0_10 = arith.constant 0 : index
    %24 = vector.load %arg3[%23, %c0_10] : memref<8x512xf32, #tpu.memory_space<vmem>>, vector<1x512xf32>
    %cst_11 = arith.constant dense<0.000000e+00> : vector<8x512xf32>
    %25 = tpu.matmul %18, %22, %cst_11 {dimension_numbers = #tpu.dot_dimension_numbers<[1], [0], [0], [1], [0, 0, 1, 1], [], []>} : vector<8x512xf32>, vector<512x512xf32>, vector<8x512xf32> -> vector<8x512xf32>
    %26 = vector.broadcast %24 : vector<1x512xf32> to vector<8x512xf32>
    %27 = arith.addf %25, %26 : vector<8x512xf32>
    %c3_i32 = arith.constant 3 : i32
    %28 = arith.index_cast %c3_i32 : i32 to index
    %c0_12 = arith.constant 0 : index
    %c0_13 = arith.constant 0 : index
    %29 = vector.load %arg2[%28, %c0_12, %c0_13] : memref<8x512x512xbf16, #tpu.memory_space<vmem>>, vector<1x512x512xbf16>
    %30 = vector.shape_cast %29 : vector<1x512x512xbf16> to vector<512x512xbf16>
    %31 = arith.extf %30 : vector<512x512xbf16> to vector<512x512xf32>
    %32 = arith.index_cast %c3_i32 : i32 to index
    %c0_14 = arith.constant 0 : index
    %33 = vector.load %arg3[%32, %c0_14] : memref<8x512xf32, #tpu.memory_space<vmem>>, vector<1x512xf32>
    %cst_15 = arith.constant dense<0.000000e+00> : vector<8x512xf32>
    %34 = tpu.matmul %27, %31, %cst_15 {dimension_numbers = #tpu.dot_dimension_numbers<[1], [0], [0], [1], [0, 0, 1, 1], [], []>} : vector<8x512xf32>, vector<512x512xf32>, vector<8x512xf32> -> vector<8x512xf32>
    %35 = vector.broadcast %33 : vector<1x512xf32> to vector<8x512xf32>
    %36 = arith.addf %34, %35 : vector<8x512xf32>
    %c4_i32 = arith.constant 4 : i32
    %37 = arith.index_cast %c4_i32 : i32 to index
    %c0_16 = arith.constant 0 : index
    %c0_17 = arith.constant 0 : index
    %38 = vector.load %arg2[%37, %c0_16, %c0_17] : memref<8x512x512xbf16, #tpu.memory_space<vmem>>, vector<1x512x512xbf16>
    %39 = vector.shape_cast %38 : vector<1x512x512xbf16> to vector<512x512xbf16>
    %40 = arith.extf %39 : vector<512x512xbf16> to vector<512x512xf32>
    %41 = arith.index_cast %c4_i32 : i32 to index
    %c0_18 = arith.constant 0 : index
    %42 = vector.load %arg3[%41, %c0_18] : memref<8x512xf32, #tpu.memory_space<vmem>>, vector<1x512xf32>
    %cst_19 = arith.constant dense<0.000000e+00> : vector<8x512xf32>
    %43 = tpu.matmul %36, %40, %cst_19 {dimension_numbers = #tpu.dot_dimension_numbers<[1], [0], [0], [1], [0, 0, 1, 1], [], []>} : vector<8x512xf32>, vector<512x512xf32>, vector<8x512xf32> -> vector<8x512xf32>
    %44 = vector.broadcast %42 : vector<1x512xf32> to vector<8x512xf32>
    %45 = arith.addf %43, %44 : vector<8x512xf32>
    %c5_i32 = arith.constant 5 : i32
    %46 = arith.index_cast %c5_i32 : i32 to index
    %c0_20 = arith.constant 0 : index
    %c0_21 = arith.constant 0 : index
    %47 = vector.load %arg2[%46, %c0_20, %c0_21] : memref<8x512x512xbf16, #tpu.memory_space<vmem>>, vector<1x512x512xbf16>
    %48 = vector.shape_cast %47 : vector<1x512x512xbf16> to vector<512x512xbf16>
    %49 = arith.extf %48 : vector<512x512xbf16> to vector<512x512xf32>
    %50 = arith.index_cast %c5_i32 : i32 to index
    %c0_22 = arith.constant 0 : index
    %51 = vector.load %arg3[%50, %c0_22] : memref<8x512xf32, #tpu.memory_space<vmem>>, vector<1x512xf32>
    %cst_23 = arith.constant dense<0.000000e+00> : vector<8x512xf32>
    %52 = tpu.matmul %45, %49, %cst_23 {dimension_numbers = #tpu.dot_dimension_numbers<[1], [0], [0], [1], [0, 0, 1, 1], [], []>} : vector<8x512xf32>, vector<512x512xf32>, vector<8x512xf32> -> vector<8x512xf32>
    %53 = vector.broadcast %51 : vector<1x512xf32> to vector<8x512xf32>
    %54 = arith.addf %52, %53 : vector<8x512xf32>
    %c6_i32 = arith.constant 6 : i32
    %55 = arith.index_cast %c6_i32 : i32 to index
    %c0_24 = arith.constant 0 : index
    %c0_25 = arith.constant 0 : index
    %56 = vector.load %arg2[%55, %c0_24, %c0_25] : memref<8x512x512xbf16, #tpu.memory_space<vmem>>, vector<1x512x512xbf16>
    %57 = vector.shape_cast %56 : vector<1x512x512xbf16> to vector<512x512xbf16>
    %58 = arith.extf %57 : vector<512x512xbf16> to vector<512x512xf32>
    %59 = arith.index_cast %c6_i32 : i32 to index
    %c0_26 = arith.constant 0 : index
    %60 = vector.load %arg3[%59, %c0_26] : memref<8x512xf32, #tpu.memory_space<vmem>>, vector<1x512xf32>
    %cst_27 = arith.constant dense<0.000000e+00> : vector<8x512xf32>
    %61 = tpu.matmul %54, %58, %cst_27 {dimension_numbers = #tpu.dot_dimension_numbers<[1], [0], [0], [1], [0, 0, 1, 1], [], []>} : vector<8x512xf32>, vector<512x512xf32>, vector<8x512xf32> -> vector<8x512xf32>
    %62 = vector.broadcast %60 : vector<1x512xf32> to vector<8x512xf32>
    %63 = arith.addf %61, %62 : vector<8x512xf32>
    %c7_i32 = arith.constant 7 : i32
    %64 = arith.index_cast %c7_i32 : i32 to index
    %c0_28 = arith.constant 0 : index
    %c0_29 = arith.constant 0 : index
    %65 = vector.load %arg2[%64, %c0_28, %c0_29] : memref<8x512x512xbf16, #tpu.memory_space<vmem>>, vector<1x512x512xbf16>
    %66 = vector.shape_cast %65 : vector<1x512x512xbf16> to vector<512x512xbf16>
    %67 = arith.extf %66 : vector<512x512xbf16> to vector<512x512xf32>
    %68 = arith.index_cast %c7_i32 : i32 to index
    %c0_30 = arith.constant 0 : index
    %69 = vector.load %arg3[%68, %c0_30] : memref<8x512xf32, #tpu.memory_space<vmem>>, vector<1x512xf32>
    %cst_31 = arith.constant dense<0.000000e+00> : vector<8x512xf32>
    %70 = tpu.matmul %63, %67, %cst_31 {dimension_numbers = #tpu.dot_dimension_numbers<[1], [0], [0], [1], [0, 0, 1, 1], [], []>} : vector<8x512xf32>, vector<512x512xf32>, vector<8x512xf32> -> vector<8x512xf32>
    %71 = vector.broadcast %69 : vector<1x512xf32> to vector<8x512xf32>
    %72 = arith.addf %70, %71 : vector<8x512xf32>
    %c8_i32 = arith.constant 8 : i32
    %c0_32 = arith.constant 0 : index
    %c0_33 = arith.constant 0 : index
    %73 = vector.load %arg4[%c0_32, %c0_33] : memref<8x512xf32, #tpu.memory_space<vmem>>, vector<8x512xf32>
    tpu.vector_store %arg4[%c0_32, %c0_33], %72 {strides = array<i32>} : memref<8x512xf32, #tpu.memory_space<vmem>>, vector<8x512xf32>,
    return
  }
  func.func @transform_0(%arg0: i32) -> (i32, i32) {
    %c0_i32 = arith.constant 0 : i32
    %c0_i32_0 = arith.constant 0 : i32
    %c0_i32_1 = arith.constant 0 : i32
    return %c0_i32, %c0_i32_0 : i32, i32
  }
  func.func @transform_1(%arg0: i32) -> (i32, i32, i32) {
    %c0_i32 = arith.constant 0 : i32
    %c0_i32_0 = arith.constant 0 : i32
    %c0_i32_1 = arith.constant 0 : i32
    %c0_i32_2 = arith.constant 0 : i32
    return %c0_i32, %c0_i32_0, %c0_i32_1 : i32, i32, i32
  }
  func.func @transform_2(%arg0: i32) -> (i32, i32) {
    %c0_i32 = arith.constant 0 : i32
    %c0_i32_0 = arith.constant 0 : i32
    %c0_i32_1 = arith.constant 0 : i32
    return %c0_i32, %c0_i32_0 : i32, i32
  }
  func.func @transform_3(%arg0: i32) -> (i32, i32) {
    %c0_i32 = arith.constant 0 : i32
    %c0_i32_0 = arith.constant 0 : i32
    %c0_i32_1 = arith.constant 0 : i32
    return %c0_i32, %c0_i32_0 : i32, i32
  }
}

</mosaic_0001>

<llo_original>
// kernel: tpu_custom_call.1
$region0: #{tpu_custom_call.1}
  #allocation0 [shape = 'u32[]', space=smem, size = 0x4, offset = 0x4, fixed_abs, tag = 'smem constant byte address 0x4 - core index']
  #allocation1 [shape = 'u32[72,128]{1,0:T(1,128)}', space=vmem, size = 0x9000, scoped, tag = 'internal scratch']
  %s0 = inlined_call_operand.hbm [shape: f32[8,512], index: 0, kind: input, shape index: {}]
  %s1 = inlined_call_operand.hbm [shape: bf16[8,512,512], index: 1, kind: input, shape index: {}]
  %s2 = inlined_call_operand.hbm [shape: f32[8,512], index: 2, kind: input, shape index: {}]
  %s3 = inlined_call_operand.hbm [shape: f32[8,512], index: 3, kind: output, shape index: {}]
  %s4 = sld [smem:[#allocation0]]
  $region34: #{tpu_custom_call.1} parent=0
    _
  %s6 = ssub.s32 1, %s4
  %s7 = scalar_select 0, %s6, %s4
  $region1: #{tpu_custom_call.1} parent=0
    #allocation2 [shape = 'u8[16384]{0}', space=vmem, size = 0x4000, scoped, tag = 'input window, operand 0, single buffered']
    #allocation3 [shape = 's32[1]{0}', space=sflag, size = 0x4, scoped, tag = 'scoped memory for tpu_custom_call.1']
    #allocation4 [shape = 's32[1]{0}', space=sflag, size = 0x4, scoped, tag = 'scoped memory for tpu_custom_call.1']
    #allocation5 [shape = 'u8[4194304]{0}', space=vmem, size = 0x400000, scoped, tag = 'input window, operand 1, single buffered']
    #allocation6 [shape = 's32[1]{0}', space=sflag, size = 0x4, scoped, tag = 'scoped memory for tpu_custom_call.1']
    #allocation7 [shape = 'u8[16384]{0}', space=vmem, size = 0x4000, scoped, tag = 'input window, operand 2, single buffered']
    #allocation8 [shape = 'u8[16384]{0}', space=vmem, size = 0x4000, scoped, tag = 'output window, operand 0, single buffered']
    %8 = vsyncpa [#allocation3], 0
    %9 = vsyncpa [#allocation6], 0
    %10 = vsyncpa [#allocation4], 0
    // Predicated region
    $region2: #{tpu_custom_call.1} parent=1 // pred_check
      _
    $region3: #{tpu_custom_call.1} parent=1 // pred_check_branch
      %12 = sbr.rel (0) target = $region5
    $region4: #{tpu_custom_call.1} parent=1 // pred_region
      %14 = vsyncadd [#allocation3], 0
      %s16 = sshll.u32 %s0, 4
      %s17 = int_to_ptr.hbm [resolvable:$true] %s16
      %s18 = sshll.u32 [#allocation2], 4
      %s19 = int_to_ptr.vmem [resolvable:$true] %s18
      %21 = dma.hbm_to_vmem [thread:$0]  %s17, 512, %s19, [#allocation3]
    $region5: #{tpu_custom_call.1} parent=1 // pred_fallthru
      _
    // Predicated region
    $region6: #{tpu_custom_call.1} parent=1 // pred_check
      _
    $region7: #{tpu_custom_call.1} parent=1 // pred_check_branch
      %23 = sbr.rel (0) target = $region9
    $region8: #{tpu_custom_call.1} parent=1 // pred_region
      %25 = vsyncadd [#allocation6], 0
      %s26 = sshll.u32 %s1, 4
      %s27 = int_to_ptr.hbm [resolvable:$true] %s26
      %s28 = sshll.u32 [#allocation5], 4
      %s29 = int_to_ptr.vmem [resolvable:$true] %s28
      %34 = dma.hbm_to_vmem [thread:$0]  %s27, 131072, %s29, [#allocation6], 256, 256, 16
    $region9: #{tpu_custom_call.1} parent=1 // pred_fallthru
      _
    // Predicated region
    $region10: #{tpu_custom_call.1} parent=1 // pred_check
      _
    $region11: #{tpu_custom_call.1} parent=1 // pred_check_branch
      %36 = sbr.rel (0) target = $region13
    $region12: #{tpu_custom_call.1} parent=1 // pred_region
      %38 = vsyncadd [#allocation6], 0
      %s40 = sshll.u32 %s2, 4
      %s41 = int_to_ptr.hbm [resolvable:$true] %s40
      %s42 = sshll.u32 [#allocation7], 4
      %s43 = int_to_ptr.vmem [resolvable:$true] %s42
      %45 = dma.hbm_to_vmem [thread:$0]  %s41, 512, %s43, [#allocation6]
    $region13: #{tpu_custom_call.1} parent=1 // pred_fallthru
      _
    // Predicated region
    $region14: #{tpu_custom_call.1} parent=1 // pred_check
      _
    $region15: #{tpu_custom_call.1} parent=1 // pred_check_branch
      %47 = sbr.rel (0) target = $region17
    $region16: #{tpu_custom_call.1} parent=1 // pred_region
      %49 = dma.done [#allocation3], 512
    $region17: #{tpu_custom_call.1} parent=1 // pred_fallthru
      _
    // Predicated region
    $region18: #{tpu_custom_call.1} parent=1 // pred_check
      _
    $region19: #{tpu_custom_call.1} parent=1 // pred_check_branch
      %51 = sbr.rel (0) target = $region21
    $region20: #{tpu_custom_call.1} parent=1 // pred_region
      %53 = dma.done [#allocation6], 131072
    $region21: #{tpu_custom_call.1} parent=1 // pred_fallthru
      _
    // Predicated region
    $region22: #{tpu_custom_call.1} parent=1 // pred_check
      _
    $region23: #{tpu_custom_call.1} parent=1 // pred_check_branch
      %55 = sbr.rel (0) target = $region25
    $region24: #{tpu_custom_call.1} parent=1 // pred_region
      %57 = dma.done [#allocation6], 512
    $region25: #{tpu_custom_call.1} parent=1 // pred_fallthru
      _
    %v58 = vld [vmem:[#allocation2] sm:$0xff]
    %v59 = vld [vmem:[#allocation2 + $0x8] sm:$0xff]
    %v60 = vld [vmem:[#allocation2 + $0x10] sm:$0xff]
    %v61 = vld [vmem:[#allocation2 + $0x18] sm:$0xff]
    %v62 = vld [vmem:[#allocation5] sm:$0xff]
    %v63 = vld [vmem:[#allocation5 + $0x8] sm:$0xff]
    %v64 = vld [vmem:[#allocation5 + $0x10] sm:$0xff]
    %v65 = vld [vmem:[#allocation5 + $0x18] sm:$0xff]
    %v66 = vld [vmem:[#allocation5 + $0x20] sm:$0xff]
    %v67 = vld [vmem:[#allocation5 + $0x28] sm:$0xff]
    %v68 = vld [vmem:[#allocation5 + $0x30] sm:$0xff]
    %v69 = vld [vmem:[#allocation5 + $0x38] sm:$0xff]
    %v70 = vld [vmem:[#allocation5 + $0x40] sm:$0xff]
    %v71 = vld [vmem:[#allocation5 + $0x48] sm:$0xff]
    %v72 = vld [vmem:[#allocation5 + $0x50] sm:$0xff]
    %v73 = vld [vmem:[#allocation5 + $0x58] sm:$0xff]
    %v74 = vld [vmem:[#allocation5 + $0x60] sm:$0xff]
    %v75 = vld [vmem:[#allocation5 + $0x68] sm:$0xff]
    %v76 = vld [vmem:[#allocation5 + $0x70] sm:$0xff]
    %v77 = vld [vmem:[#allocation5 + $0x78] sm:$0xff]
    %v78 = vld [vmem:[#allocation5 + $0x80] sm:$0xff]
    %v79 = vld [vmem:[#allocation5 + $0x88] sm:$0xff]
    %v80 = vld [vmem:[#allocation5 + $0x90] sm:$0xff]
    %v81 = vld [vmem:[#allocation5 + $0x98] sm:$0xff]
    %v82 = vld [vmem:[#allocation5 + $0xa0] sm:$0xff]
    %v83 = vld [vmem:[#allocation5 + $0xa8] sm:$0xff]
    %v84 = vld [vmem:[#allocation5 + $0xb0] sm:$0xff]
    %v85 = vld [vmem:[#allocation5 + $0xb8] sm:$0xff]
    %v86 = vld [vmem:[#allocation5 + $0xc0] sm:$0xff]
    %v87 = vld [vmem:[#allocation5 + $0xc8] sm:$0xff]
    %v88 = vld [vmem:[#allocation5 + $0xd0] sm:$0xff]
    %v89 = vld [vmem:[#allocation5 + $0xd8] sm:$0xff]
    %v90 = vld [vmem:[#allocation5 + $0xe0] sm:$0xff]
    %v91 = vld [vmem:[#allocation5 + $0xe8] sm:$0xff]
    %v92 = vld [vmem:[#allocation5 + $0xf0] sm:$0xff]
    %v93 = vld [vmem:[#allocation5 + $0xf8] sm:$0xff]
    %v94 = vld [vmem:[#allocation5 + $0x100] sm:$0xff]
    %v95 = vld [vmem:[#allocation5 + $0x108] sm:$0xff]
    %v96 = vld [vmem:[#allocation5 + $0x110] sm:$0xff]
    %v97 = vld [vmem:[#allocation5 + $0x118] sm:$0xff]
    %v98 = vld [vmem:[#allocation5 + $0x120] sm:$0xff]
    %v99 = vld [vmem:[#allocation5 + $0x128] sm:$0xff]
    %v100 = vld [vmem:[#allocation5 + $0x130] sm:$0xff]
    %v101 = vld [vmem:[#allocation5 + $0x138] sm:$0xff]
    %v102 = vld [vmem:[#allocation5 + $0x140] sm:$0xff]
    %v103 = vld [vmem:[#allocation5 + $0x148] sm:$0xff]
    %v104 = vld [vmem:[#allocation5 + $0x150] sm:$0xff]
    %v105 = vld [vmem:[#allocation5 + $0x158] sm:$0xff]
    %v106 = vld [vmem:[#allocation5 + $0x160] sm:$0xff]
    %v107 = vld [vmem:[#allocation5 + $0x168] sm:$0xff]
    %v108 = vld [vmem:[#allocation5 + $0x170] sm:$0xff]
    %v109 = vld [vmem:[#allocation5 + $0x178] sm:$0xff]
    %v110 = vld [vmem:[#allocation5 + $0x180] sm:$0xff]
    %v111 = vld [vmem:[#allocation5 + $0x188] sm:$0xff]
    %v112 = vld [vmem:[#allocation5 + $0x190] sm:$0xff]
    %v113 = vld [vmem:[#allocation5 + $0x198] sm:$0xff]
    %v114 = vld [vmem:[#allocation5 + $0x1a0] sm:$0xff]
    %v115 = vld [vmem:[#allocation5 + $0x1a8] sm:$0xff]
    %v116 = vld [vmem:[#allocation5 + $0x1b0] sm:$0xff]
    %v117 = vld [vmem:[#allocation5 + $0x1b8] sm:$0xff]
    %v118 = vld [vmem:[#allocation5 + $0x1c0] sm:$0xff]
    %v119 = vld [vmem:[#allocation5 + $0x1c8] sm:$0xff]
    %v120 = vld [vmem:[#allocation5 + $0x1d0] sm:$0xff]
    %v121 = vld [vmem:[#allocation5 + $0x1d8] sm:$0xff]
    %v122 = vld [vmem:[#allocation5 + $0x1e0] sm:$0xff]
    %v123 = vld [vmem:[#allocation5 + $0x1e8] sm:$0xff]
    %v124 = vld [vmem:[#allocation5 + $0x1f0] sm:$0xff]
    %v125 = vld [vmem:[#allocation5 + $0x1f8] sm:$0xff]
    %v126 = vld [vmem:[#allocation5 + $0x200] sm:$0xff]
    %v127 = vld [vmem:[#allocation5 + $0x208] sm:$0xff]
    %v128 = vld [vmem:[#allocation5 + $0x210] sm:$0xff]
    %v129 = vld [vmem:[#allocation5 + $0x218] sm:$0xff]
    %v130 = vld [vmem:[#allocation5 + $0x220] sm:$0xff]
    %v131 = vld [vmem:[#allocation5 + $0x228] sm:$0xff]
    %v132 = vld [vmem:[#allocation5 + $0x230] sm:$0xff]
    %v133 = vld [vmem:[#allocation5 + $0x238] sm:$0xff]
    %v134 = vld [vmem:[#allocation5 + $0x240] sm:$0xff]
    %v135 = vld [vmem:[#allocation5 + $0x248] sm:$0xff]
    %v136 = vld [vmem:[#allocation5 + $0x250] sm:$0xff]
    %v137 = vld [vmem:[#allocation5 + $0x258] sm:$0xff]
    %v138 = vld [vmem:[#allocation5 + $0x260] sm:$0xff]
    %v139 = vld [vmem:[#allocation5 + $0x268] sm:$0xff]
    %v140 = vld [vmem:[#allocation5 + $0x270] sm:$0xff]
    %v141 = vld [vmem:[#allocation5 + $0x278] sm:$0xff]
    %v142 = vld [vmem:[#allocation5 + $0x280] sm:$0xff]
    %v143 = vld [vmem:[#allocation5 + $0x288] sm:$0xff]
    %v144 = vld [vmem:[#allocation5 + $0x290] sm:$0xff]
    %v145 = vld [vmem:[#allocation5 + $0x298] sm:$0xff]
    %v146 = vld [vmem:[#allocation5 + $0x2a0] sm:$0xff]
    %v147 = vld [vmem:[#allocation5 + $0x2a8] sm:$0xff]
    %v148 = vld [vmem:[#allocation5 + $0x2b0] sm:$0xff]
    %v149 = vld [vmem:[#allocation5 + $0x2b8] sm:$0xff]
    %v150 = vld [vmem:[#allocation5 + $0x2c0] sm:$0xff]
    %v151 = vld [vmem:[#allocation5 + $0x2c8] sm:$0xff]
    %v152 = vld [vmem:[#allocation5 + $0x2d0] sm:$0xff]
    %v153 = vld [vmem:[#allocation5 + $0x2d8] sm:$0xff]
    %v154 = vld [vmem:[#allocation5 + $0x2e0] sm:$0xff]
    %v155 = vld [vmem:[#allocation5 + $0x2e8] sm:$0xff]
    %v156 = vld [vmem:[#allocation5 + $0x2f0] sm:$0xff]
    %v157 = vld [vmem:[#allocation5 + $0x2f8] sm:$0xff]
    %v158 = vld [vmem:[#allocation5 + $0x300] sm:$0xff]
    %v159 = vld [vmem:[#allocation5 + $0x308] sm:$0xff]
    %v160 = vld [vmem:[#allocation5 + $0x310] sm:$0xff]
    %v161 = vld [vmem:[#allocation5 + $0x318] sm:$0xff]
    %v162 = vld [vmem:[#allocation5 + $0x320] sm:$0xff]
    %v163 = vld [vmem:[#allocation5 + $0x328] sm:$0xff]
    %v164 = vld [vmem:[#allocation5 + $0x330] sm:$0xff]
    %v165 = vld [vmem:[#allocation5 + $0x338] sm:$0xff]
    %v166 = vld [vmem:[#allocation5 + $0x340] sm:$0xff]
    %v167 = vld [vmem:[#allocation5 + $0x348] sm:$0xff]
    %v168 = vld [vmem:[#allocation5 + $0x350] sm:$0xff]
    %v169 = vld [vmem:[#allocation5 + $0x358] sm:$0xff]
    %v170 = vld [vmem:[#allocation5 + $0x360] sm:$0xff]
    %v171 = vld [vmem:[#allocation5 + $0x368] sm:$0xff]
    %v172 = vld [vmem:[#allocation5 + $0x370] sm:$0xff]
    %v173 = vld [vmem:[#allocation5 + $0x378] sm:$0xff]
    %v174 = vld [vmem:[#allocation5 + $0x380] sm:$0xff]
    %v175 = vld [vmem:[#allocation5 + $0x388] sm:$0xff]
    %v176 = vld [vmem:[#allocation5 + $0x390] sm:$0xff]
    %v177 = vld [vmem:[#allocation5 + $0x398] sm:$0xff]
    %v178 = vld [vmem:[#allocation5 + $0x3a0] sm:$0xff]
    %v179 = vld [vmem:[#allocation5 + $0x3a8] sm:$0xff]
    %v180 = vld [vmem:[#allocation5 + $0x3b0] sm:$0xff]
    %v181 = vld [vmem:[#allocation5 + $0x3b8] sm:$0xff]
    %v182 = vld [vmem:[#allocation5 + $0x3c0] sm:$0xff]
    %v183 = vld [vmem:[#allocation5 + $0x3c8] sm:$0xff]
    %v184 = vld [vmem:[#allocation5 + $0x3d0] sm:$0xff]
    %v185 = vld [vmem:[#allocation5 + $0x3d8] sm:$0xff]
    %v186 = vld [vmem:[#allocation5 + $0x3e0] sm:$0xff]
    %v187 = vld [vmem:[#allocation5 + $0x3e8] sm:$0xff]
    %v188 = vld [vmem:[#allocation5 + $0x3f0] sm:$0xff]
    %v189 = vld [vmem:[#allocation5 + $0x3f8] sm:$0xff]
    %v190 = vunpack.c.l.bf16 %v62
    %v191 = vunpack.c.h.bf16 %v62
    %v192 = vunpack.c.l.bf16 %v63
    %v193 = vunpack.c.h.bf16 %v63
    %v194 = vunpack.c.l.bf16 %v64
    %v195 = vunpack.c.h.bf16 %v64
    %v196 = vunpack.c.l.bf16 %v65
    %v197 = vunpack.c.h.bf16 %v65
    %v198 = vunpack.c.l.bf16 %v66
    %v199 = vunpack.c.h.bf16 %v66
    %v200 = vunpack.c.l.bf16 %v67
    %v201 = vunpack.c.h.bf16 %v67
    %v202 = vunpack.c.l.bf16 %v68
    %v203 = vunpack.c.h.bf16 %v68
    %v204 = vunpack.c.l.bf16 %v69
    %v205 = vunpack.c.h.bf16 %v69
    %v206 = vunpack.c.l.bf16 %v70
    %v207 = vunpack.c.h.bf16 %v70
    %v208 = vunpack.c.l.bf16 %v71
    %v209 = vunpack.c.h.bf16 %v71
    %v210 = vunpack.c.l.bf16 %v72
    %v211 = vunpack.c.h.bf16 %v72
    %v212 = vunpack.c.l.bf16 %v73
    %v213 = vunpack.c.h.bf16 %v73
    %v214 = vunpack.c.l.bf16 %v74
    %v215 = vunpack.c.h.bf16 %v74
    %v216 = vunpack.c.l.bf16 %v75
    %v217 = vunpack.c.h.bf16 %v75
    %v218 = vunpack.c.l.bf16 %v76
    %v219 = vunpack.c.h.bf16 %v76
    %v220 = vunpack.c.l.bf16 %v77
    %v221 = vunpack.c.h.bf16 %v77
    %v222 = vunpack.c.l.bf16 %v78
    %v223 = vunpack.c.h.bf16 %v78
    %v224 = vunpack.c.l.bf16 %v79
    %v225 = vunpack.c.h.bf16 %v79
    %v226 = vunpack.c.l.bf16 %v80
    %v227 = vunpack.c.h.bf16 %v80
    %v228 = vunpack.c.l.bf16 %v81
    %v229 = vunpack.c.h.bf16 %v81
    %v230 = vunpack.c.l.bf16 %v82
    %v231 = vunpack.c.h.bf16 %v82
    %v232 = vunpack.c.l.bf16 %v83
    %v233 = vunpack.c.h.bf16 %v83
    %v234 = vunpack.c.l.bf16 %v84
    %v235 = vunpack.c.h.bf16 %v84
    %v236 = vunpack.c.l.bf16 %v85
    %v237 = vunpack.c.h.bf16 %v85
    %v238 = vunpack.c.l.bf16 %v86
    %v239 = vunpack.c.h.bf16 %v86
    %v240 = vunpack.c.l.bf16 %v87
    %v241 = vunpack.c.h.bf16 %v87
    %v242 = vunpack.c.l.bf16 %v88
    %v243 = vunpack.c.h.bf16 %v88
    %v244 = vunpack.c.l.bf16 %v89
    %v245 = vunpack.c.h.bf16 %v89
    %v246 = vunpack.c.l.bf16 %v90
    %v247 = vunpack.c.h.bf16 %v90
    %v248 = vunpack.c.l.bf16 %v91
    %v249 = vunpack.c.h.bf16 %v91
    %v250 = vunpack.c.l.bf16 %v92
    %v251 = vunpack.c.h.bf16 %v92
    %v252 = vunpack.c.l.bf16 %v93
    %v253 = vunpack.c.h.bf16 %v93
    %v254 = vunpack.c.l.bf16 %v94
    %v255 = vunpack.c.h.bf16 %v94
    %v256 = vunpack.c.l.bf16 %v95
    %v257 = vunpack.c.h.bf16 %v95
    %v258 = vunpack.c.l.bf16 %v96
    %v259 = vunpack.c.h.bf16 %v96
    %v260 = vunpack.c.l.bf16 %v97
    %v261 = vunpack.c.h.bf16 %v97
    %v262 = vunpack.c.l.bf16 %v98
    %v263 = vunpack.c.h.bf16 %v98
    %v264 = vunpack.c.l.bf16 %v99
    %v265 = vunpack.c.h.bf16 %v99
    %v266 = vunpack.c.l.bf16 %v100
    %v267 = vunpack.c.h.bf16 %v100
    %v268 = vunpack.c.l.bf16 %v101
    %v269 = vunpack.c.h.bf16 %v101
    %v270 = vunpack.c.l.bf16 %v102
    %v271 = vunpack.c.h.bf16 %v102
    %v272 = vunpack.c.l.bf16 %v103
    %v273 = vunpack.c.h.bf16 %v103
    %v274 = vunpack.c.l.bf16 %v104
    %v275 = vunpack.c.h.bf16 %v104
    %v276 = vunpack.c.l.bf16 %v105
    %v277 = vunpack.c.h.bf16 %v105
    %v278 = vunpack.c.l.bf16 %v106
    %v279 = vunpack.c.h.bf16 %v106
    %v280 = vunpack.c.l.bf16 %v107
    %v281 = vunpack.c.h.bf16 %v107
    %v282 = vunpack.c.l.bf16 %v108
    %v283 = vunpack.c.h.bf16 %v108
    %v284 = vunpack.c.l.bf16 %v109
    %v285 = vunpack.c.h.bf16 %v109
    %v286 = vunpack.c.l.bf16 %v110
    %v287 = vunpack.c.h.bf16 %v110
    %v288 = vunpack.c.l.bf16 %v111
    %v289 = vunpack.c.h.bf16 %v111
    %v290 = vunpack.c.l.bf16 %v112
    %v291 = vunpack.c.h.bf16 %v112
    %v292 = vunpack.c.l.bf16 %v113
    %v293 = vunpack.c.h.bf16 %v113
    %v294 = vunpack.c.l.bf16 %v114
    %v295 = vunpack.c.h.bf16 %v114
    %v296 = vunpack.c.l.bf16 %v115
    %v297 = vunpack.c.h.bf16 %v115
    %v298 = vunpack.c.l.bf16 %v116
    %v299 = vunpack.c.h.bf16 %v116
    %v300 = vunpack.c.l.bf16 %v117
    %v301 = vunpack.c.h.bf16 %v117
    %v302 = vunpack.c.l.bf16 %v118
    %v303 = vunpack.c.h.bf16 %v118
    %v304 = vunpack.c.l.bf16 %v119
    %v305 = vunpack.c.h.bf16 %v119
    %v306 = vunpack.c.l.bf16 %v120
    %v307 = vunpack.c.h.bf16 %v120
    %v308 = vunpack.c.l.bf16 %v121
    %v309 = vunpack.c.h.bf16 %v121
    %v310 = vunpack.c.l.bf16 %v122
    %v311 = vunpack.c.h.bf16 %v122
    %v312 = vunpack.c.l.bf16 %v123
    %v313 = vunpack.c.h.bf16 %v123
    %v314 = vunpack.c.l.bf16 %v124
    %v315 = vunpack.c.h.bf16 %v124
    %v316 = vunpack.c.l.bf16 %v125
    %v317 = vunpack.c.h.bf16 %v125
    %v318 = vunpack.c.l.bf16 %v126
    %v319 = vunpack.c.h.bf16 %v126
    %v320 = vunpack.c.l.bf16 %v127
    %v321 = vunpack.c.h.bf16 %v127
    %v322 = vunpack.c.l.bf16 %v128
    %v323 = vunpack.c.h.bf16 %v128
    %v324 = vunpack.c.l.bf16 %v129
    %v325 = vunpack.c.h.bf16 %v129
    %v326 = vunpack.c.l.bf16 %v130
    %v327 = vunpack.c.h.bf16 %v130
    %v328 = vunpack.c.l.bf16 %v131
    %v329 = vunpack.c.h.bf16 %v131
    %v330 = vunpack.c.l.bf16 %v132
    %v331 = vunpack.c.h.bf16 %v132
    %v332 = vunpack.c.l.bf16 %v133
    %v333 = vunpack.c.h.bf16 %v133
    %v334 = vunpack.c.l.bf16 %v134
    %v335 = vunpack.c.h.bf16 %v134
    %v336 = vunpack.c.l.bf16 %v135
    %v337 = vunpack.c.h.bf16 %v135
    %v338 = vunpack.c.l.bf16 %v136
    %v339 = vunpack.c.h.bf16 %v136
    %v340 = vunpack.c.l.bf16 %v137
    %v341 = vunpack.c.h.bf16 %v137
    %v342 = vunpack.c.l.bf16 %v138
    %v343 = vunpack.c.h.bf16 %v138
    %v344 = vunpack.c.l.bf16 %v139
    %v345 = vunpack.c.h.bf16 %v139
    %v346 = vunpack.c.l.bf16 %v140
    %v347 = vunpack.c.h.bf16 %v140
    %v348 = vunpack.c.l.bf16 %v141
    %v349 = vunpack.c.h.bf16 %v141
    %v350 = vunpack.c.l.bf16 %v142
    %v351 = vunpack.c.h.bf16 %v142
    %v352 = vunpack.c.l.bf16 %v143
    %v353 = vunpack.c.h.bf16 %v143
    %v354 = vunpack.c.l.bf16 %v144
    %v355 = vunpack.c.h.bf16 %v144
    %v356 = vunpack.c.l.bf16 %v145
    %v357 = vunpack.c.h.bf16 %v145
    %v358 = vunpack.c.l.bf16 %v146
    %v359 = vunpack.c.h.bf16 %v146
    %v360 = vunpack.c.l.bf16 %v147
    %v361 = vunpack.c.h.bf16 %v147
    %v362 = vunpack.c.l.bf16 %v148
    %v363 = vunpack.c.h.bf16 %v148
    %v364 = vunpack.c.l.bf16 %v149
    %v365 = vunpack.c.h.bf16 %v149
    %v366 = vunpack.c.l.bf16 %v150
    %v367 = vunpack.c.h.bf16 %v150
    %v368 = vunpack.c.l.bf16 %v151
    %v369 = vunpack.c.h.bf16 %v151
    %v370 = vunpack.c.l.bf16 %v152
    %v371 = vunpack.c.h.bf16 %v152
    %v372 = vunpack.c.l.bf16 %v153
    %v373 = vunpack.c.h.bf16 %v153
    %v374 = vunpack.c.l.bf16 %v154
    %v375 = vunpack.c.h.bf16 %v154
    %v376 = vunpack.c.l.bf16 %v155
    %v377 = vunpack.c.h.bf16 %v155
    %v378 = vunpack.c.l.bf16 %v156
    %v379 = vunpack.c.h.bf16 %v156
    %v380 = vunpack.c.l.bf16 %v157
    %v381 = vunpack.c.h.bf16 %v157
    %v382 = vunpack.c.l.bf16 %v158
    %v383 = vunpack.c.h.bf16 %v158
    %v384 = vunpack.c.l.bf16 %v159
    %v385 = vunpack.c.h.bf16 %v159
    %v386 = vunpack.c.l.bf16 %v160
    %v387 = vunpack.c.h.bf16 %v160
    %v388 = vunpack.c.l.bf16 %v161
    %v389 = vunpack.c.h.bf16 %v161
    %v390 = vunpack.c.l.bf16 %v162
    %v391 = vunpack.c.h.bf16 %v162
    %v392 = vunpack.c.l.bf16 %v163
    %v393 = vunpack.c.h.bf16 %v163
    %v394 = vunpack.c.l.bf16 %v164
    %v395 = vunpack.c.h.bf16 %v164
    %v396 = vunpack.c.l.bf16 %v165
    %v397 = vunpack.c.h.bf16 %v165
    %v398 = vunpack.c.l.bf16 %v166
    %v399 = vunpack.c.h.bf16 %v166
    %v400 = vunpack.c.l.bf16 %v167
    %v401 = vunpack.c.h.bf16 %v167
    %v402 = vunpack.c.l.bf16 %v168
    %v403 = vunpack.c.h.bf16 %v168
    %v404 = vunpack.c.l.bf16 %v169
    %v405 = vunpack.c.h.bf16 %v169
    %v406 = vunpack.c.l.bf16 %v170
    %v407 = vunpack.c.h.bf16 %v170
    %v408 = vunpack.c.l.bf16 %v171
    %v409 = vunpack.c.h.bf16 %v171
    %v410 = vunpack.c.l.bf16 %v172
    %v411 = vunpack.c.h.bf16 %v172
    %v412 = vunpack.c.l.bf16 %v173
    %v413 = vunpack.c.h.bf16 %v173
    %v414 = vunpack.c.l.bf16 %v174
    %v415 = vunpack.c.h.bf16 %v174
    %v416 = vunpack.c.l.bf16 %v175
    %v417 = vunpack.c.h.bf16 %v175
    %v418 = vunpack.c.l.bf16 %v176
    %v419 = vunpack.c.h.bf16 %v176
    %v420 = vunpack.c.l.bf16 %v177
    %v421 = vunpack.c.h.bf16 %v177
    %v422 = vunpack.c.l.bf16 %v178
    %v423 = vunpack.c.h.bf16 %v178
    %v424 = vunpack.c.l.bf16 %v179
    %v425 = vunpack.c.h.bf16 %v179
    %v426 = vunpack.c.l.bf16 %v180
    %v427 = vunpack.c.h.bf16 %v180
    %v428 = vunpack.c.l.bf16 %v181
    %v429 = vunpack.c.h.bf16 %v181
    %v430 = vunpack.c.l.bf16 %v182
    %v431 = vunpack.c.h.bf16 %v182
    %v432 = vunpack.c.l.bf16 %v183
    %v433 = vunpack.c.h.bf16 %v183
    %v434 = vunpack.c.l.bf16 %v184
    %v435 = vunpack.c.h.bf16 %v184
    %v436 = vunpack.c.l.bf16 %v185
    %v437 = vunpack.c.h.bf16 %v185
    %v438 = vunpack.c.l.bf16 %v186
    %v439 = vunpack.c.h.bf16 %v186
    %v440 = vunpack.c.l.bf16 %v187
    %v441 = vunpack.c.h.bf16 %v187
    %v442 = vunpack.c.l.bf16 %v188
    %v443 = vunpack.c.h.bf16 %v188
    %v444 = vunpack.c.l.bf16 %v189
    %v445 = vunpack.c.h.bf16 %v189
    %v446 = vld [vmem:[#allocation7] ss:$8 sm:$0xf]
    %v448 = vperm.slane %v446, 0
    %v449 = vperm.slane %v446, 1
    %v450 = vperm.slane %v446, 2
    %v451 = vperm.slane %v446, 3
    %456 = vmatpush.msra.mxu0 %v250
    %457 = vmatpush.msra.mxu0 %v246
    %458 = vmatpush.msra.mxu0 %v242
    %459 = vmatpush.msra.mxu0 %v238
    %460 = vmatpush.msra.mxu0 %v234
    %461 = vmatpush.msra.mxu0 %v230
    %462 = vmatpush.msra.mxu0 %v226
    %463 = vmatpush.msra.mxu0 %v222
    %464 = vmatpush.msra.mxu0 %v218
    %465 = vmatpush.msra.mxu0 %v214
    %466 = vmatpush.msra.mxu0 %v210
    %467 = vmatpush.msra.mxu0 %v206
    %468 = vmatpush.msra.mxu0 %v202
    %469 = vmatpush.msra.mxu0 %v198
    %470 = vmatpush.msra.mxu0 %v194
    %471 = vmatpush.msra.mxu0 %v190
    %472 = vmatmul.f32.gmra.mxu0 %v58
    %v473 = vpop.f32.mrf.mxu0
    %v474 = vadd.f32 %v448, %v473
    %475 = vdwg.mxu0
    %476 = vmatpush.msra.mxu0 %v314
    %477 = vmatpush.msra.mxu0 %v310
    %478 = vmatpush.msra.mxu0 %v306
    %479 = vmatpush.msra.mxu0 %v302
    %480 = vmatpush.msra.mxu0 %v298
    %481 = vmatpush.msra.mxu0 %v294
    %482 = vmatpush.msra.mxu0 %v290
    %483 = vmatpush.msra.mxu0 %v286
    %484 = vmatpush.msra.mxu0 %v282
    %485 = vmatpush.msra.mxu0 %v278
    %486 = vmatpush.msra.mxu0 %v274
    %487 = vmatpush.msra.mxu0 %v270
    %488 = vmatpush.msra.mxu0 %v266
    %489 = vmatpush.msra.mxu0 %v262
    %490 = vmatpush.msra.mxu0 %v258
    %491 = vmatpush.msra.mxu0 %v254
    %492 = vmatmul.f32.gmra.mxu0 %v59
    %v493 = vpop.f32.mrf.mxu0
    %v494 = vadd.f32 %v474, %v493
    %495 = vdwg.mxu0
    %496 = vmatpush.msra.mxu0 %v378
    %497 = vmatpush.msra.mxu0 %v374
    %498 = vmatpush.msra.mxu0 %v370
    %499 = vmatpush.msra.mxu0 %v366
    %500 = vmatpush.msra.mxu0 %v362
    %501 = vmatpush.msra.mxu0 %v358
    %502 = vmatpush.msra.mxu0 %v354
    %503 = vmatpush.msra.mxu0 %v350
    %504 = vmatpush.msra.mxu0 %v346
    %505 = vmatpush.msra.mxu0 %v342
    %506 = vmatpush.msra.mxu0 %v338
    %507 = vmatpush.msra.mxu0 %v334
    %508 = vmatpush.msra.mxu0 %v330
    %509 = vmatpush.msra.mxu0 %v326
    %510 = vmatpush.msra.mxu0 %v322
    %511 = vmatpush.msra.mxu0 %v318
    %512 = vmatmul.f32.gmra.mxu0 %v60
    %v513 = vpop.f32.mrf.mxu0
    %v514 = vadd.f32 %v494, %v513
    %515 = vdwg.mxu0
    %516 = vmatpush.msra.mxu0 %v442
    %517 = vmatpush.msra.mxu0 %v438
    %518 = vmatpush.msra.mxu0 %v434
    %519 = vmatpush.msra.mxu0 %v430
    %520 = vmatpush.msra.mxu0 %v426
    %521 = vmatpush.msra.mxu0 %v422
    %522 = vmatpush.msra.mxu0 %v418
    %523 = vmatpush.msra.mxu0 %v414
    %524 = vmatpush.msra.mxu0 %v410
    %525 = vmatpush.msra.mxu0 %v406
    %526 = vmatpush.msra.mxu0 %v402
    %527 = vmatpush.msra.mxu0 %v398
    %528 = vmatpush.msra.mxu0 %v394
    %529 = vmatpush.msra.mxu0 %v390
    %530 = vmatpush.msra.mxu0 %v386
    %531 = vmatpush.msra.mxu0 %v382
    %532 = vmatmul.f32.gmra.mxu0 %v61
    %v533 = vpop.f32.mrf.mxu0
    %v534 = vadd.f32 %v514, %v533
    %535 = vdwg.mxu0
    %536 = vmatpush.msra.mxu0 %v251
    %537 = vmatpush.msra.mxu0 %v247
    %538 = vmatpush.msra.mxu0 %v243
    %539 = vmatpush.msra.mxu0 %v239
    %540 = vmatpush.msra.mxu0 %v235
    %541 = vmatpush.msra.mxu0 %v231
    %542 = vmatpush.msra.mxu0 %v227
    %543 = vmatpush.msra.mxu0 %v223
    %544 = vmatpush.msra.mxu0 %v219
    %545 = vmatpush.msra.mxu0 %v215
    %546 = vmatpush.msra.mxu0 %v211
    %547 = vmatpush.msra.mxu0 %v207
    %548 = vmatpush.msra.mxu0 %v203
    %549 = vmatpush.msra.mxu0 %v199
    %550 = vmatpush.msra.mxu0 %v195
    %551 = vmatpush.msra.mxu0 %v191
    %552 = vmatmul.f32.gmra.mxu0 %v58
    %v553 = vpop.f32.mrf.mxu0
    %v554 = vadd.f32 %v449, %v553
    %555 = vdwg.mxu0
    %556 = vmatpush.msra.mxu0 %v315
    %557 = vmatpush.msra.mxu0 %v311
    %558 = vmatpush.msra.mxu0 %v307
    %559 = vmatpush.msra.mxu0 %v303
    %560 = vmatpush.msra.mxu0 %v299
    %561 = vmatpush.msra.mxu0 %v295
    %562 = vmatpush.msra.mxu0 %v291
    %563 = vmatpush.msra.mxu0 %v287
    %564 = vmatpush.msra.mxu0 %v283
    %565 = vmatpush.msra.mxu0 %v279
    %566 = vmatpush.msra.mxu0 %v275
    %567 = vmatpush.msra.mxu0 %v271
    %568 = vmatpush.msra.mxu0 %v267
    %569 = vmatpush.msra.mxu0 %v263
    %570 = vmatpush.msra.mxu0 %v259
    %571 = vmatpush.msra.mxu0 %v255
    %572 = vmatmul.f32.gmra.mxu0 %v59
    %v573 = vpop.f32.mrf.mxu0
    %v574 = vadd.f32 %v554, %v573
    %575 = vdwg.mxu0
    %576 = vmatpush.msra.mxu0 %v379
    %577 = vmatpush.msra.mxu0 %v375
    %578 = vmatpush.msra.mxu0 %v371
    %579 = vmatpush.msra.mxu0 %v367
    %580 = vmatpush.msra.mxu0 %v363
    %581 = vmatpush.msra.mxu0 %v359
    %582 = vmatpush.msra.mxu0 %v355
    %583 = vmatpush.msra.mxu0 %v351
    %584 = vmatpush.msra.mxu0 %v347
    %585 = vmatpush.msra.mxu0 %v343
    %586 = vmatpush.msra.mxu0 %v339
    %587 = vmatpush.msra.mxu0 %v335
    %588 = vmatpush.msra.mxu0 %v331
    %589 = vmatpush.msra.mxu0 %v327
    %590 = vmatpush.msra.mxu0 %v323
    %591 = vmatpush.msra.mxu0 %v319
    %592 = vmatmul.f32.gmra.mxu0 %v60
    %v593 = vpop.f32.mrf.mxu0
    %v594 = vadd.f32 %v574, %v593
    %595 = vdwg.mxu0
    %596 = vmatpush.msra.mxu0 %v443
    %597 = vmatpush.msra.mxu0 %v439
    %598 = vmatpush.msra.mxu0 %v435
    %599 = vmatpush.msra.mxu0 %v431
    %600 = vmatpush.msra.mxu0 %v427
    %601 = vmatpush.msra.mxu0 %v423
    %602 = vmatpush.msra.mxu0 %v419
    %603 = vmatpush.msra.mxu0 %v415
    %604 = vmatpush.msra.mxu0 %v411
    %605 = vmatpush.msra.mxu0 %v407
    %606 = vmatpush.msra.mxu0 %v403
    %607 = vmatpush.msra.mxu0 %v399
    %608 = vmatpush.msra.mxu0 %v395
    %609 = vmatpush.msra.mxu0 %v391
    %610 = vmatpush.msra.mxu0 %v387
    %611 = vmatpush.msra.mxu0 %v383
    %612 = vmatmul.f32.gmra.mxu0 %v61
    %v613 = vpop.f32.mrf.mxu0
    %v614 = vadd.f32 %v594, %v613
    %615 = vdwg.mxu0
    %616 = vmatpush.msra.mxu0 %v252
    %617 = vmatpush.msra.mxu0 %v248
    %618 = vmatpush.msra.mxu0 %v244
    %619 = vmatpush.msra.mxu0 %v240
    %620 = vmatpush.msra.mxu0 %v236
    %621 = vmatpush.msra.mxu0 %v232
    %622 = vmatpush.msra.mxu0 %v228
    %623 = vmatpush.msra.mxu0 %v224
    %624 = vmatpush.msra.mxu0 %v220
    %625 = vmatpush.msra.mxu0 %v216
    %626 = vmatpush.msra.mxu0 %v212
    %627 = vmatpush.msra.mxu0 %v208
    %628 = vmatpush.msra.mxu0 %v204
    %629 = vmatpush.msra.mxu0 %v200
    %630 = vmatpush.msra.mxu0 %v196
    %631 = vmatpush.msra.mxu0 %v192
    %632 = vmatmul.f32.gmra.mxu0 %v58
    %v633 = vpop.f32.mrf.mxu0
    %v634 = vadd.f32 %v450, %v633
    %635 = vdwg.mxu0
    %636 = vmatpush.msra.mxu0 %v316
    %637 = vmatpush.msra.mxu0 %v312
    %638 = vmatpush.msra.mxu0 %v308
    %639 = vmatpush.msra.mxu0 %v304
    %640 = vmatpush.msra.mxu0 %v300
    %641 = vmatpush.msra.mxu0 %v296
    %642 = vmatpush.msra.mxu0 %v292
    %643 = vmatpush.msra.mxu0 %v288
    %644 = vmatpush.msra.mxu0 %v284
    %645 = vmatpush.msra.mxu0 %v280
    %646 = vmatpush.msra.mxu0 %v276
    %647 = vmatpush.msra.mxu0 %v272
    %648 = vmatpush.msra.mxu0 %v268
    %649 = vmatpush.msra.mxu0 %v264
    %650 = vmatpush.msra.mxu0 %v260
    %651 = vmatpush.msra.mxu0 %v256
    %652 = vmatmul.f32.gmra.mxu0 %v59
    %v653 = vpop.f32.mrf.mxu0
    %v654 = vadd.f32 %v634, %v653
    %655 = vdwg.mxu0
    %656 = vmatpush.msra.mxu0 %v380
    %657 = vmatpush.msra.mxu0 %v376
    %658 = vmatpush.msra.mxu0 %v372
    %659 = vmatpush.msra.mxu0 %v368
    %660 = vmatpush.msra.mxu0 %v364
    %661 = vmatpush.msra.mxu0 %v360
    %662 = vmatpush.msra.mxu0 %v356
    %663 = vmatpush.msra.mxu0 %v352
    %664 = vmatpush.msra.mxu0 %v348
    %665 = vmatpush.msra.mxu0 %v344
    %666 = vmatpush.msra.mxu0 %v340
    %667 = vmatpush.msra.mxu0 %v336
    %668 = vmatpush.msra.mxu0 %v332
    %669 = vmatpush.msra.mxu0 %v328
    %670 = vmatpush.msra.mxu0 %v324
    %671 = vmatpush.msra.mxu0 %v320
    %672 = vmatmul.f32.gmra.mxu0 %v60
    %v673 = vpop.f32.mrf.mxu0
    %v674 = vadd.f32 %v654, %v673
    %675 = vdwg.mxu0
    %676 = vmatpush.msra.mxu0 %v444
    %677 = vmatpush.msra.mxu0 %v440
    %678 = vmatpush.msra.mxu0 %v436
    %679 = vmatpush.msra.mxu0 %v432
    %680 = vmatpush.msra.mxu0 %v428
    %681 = vmatpush.msra.mxu0 %v424
    %682 = vmatpush.msra.mxu0 %v420
    %683 = vmatpush.msra.mxu0 %v416
    %684 = vmatpush.msra.mxu0 %v412
    %685 = vmatpush.msra.mxu0 %v408
    %686 = vmatpush.msra.mxu0 %v404
    %687 = vmatpush.msra.mxu0 %v400
    %688 = vmatpush.msra.mxu0 %v396
    %689 = vmatpush.msra.mxu0 %v392
    %690 = vmatpush.msra.mxu0 %v388
    %691 = vmatpush.msra.mxu0 %v384
    %692 = vmatmul.f32.gmra.mxu0 %v61
    %v693 = vpop.f32.mrf.mxu0
    %v694 = vadd.f32 %v674, %v693
    %695 = vdwg.mxu0
    %696 = vmatpush.msra.mxu0 %v253
    %697 = vmatpush.msra.mxu0 %v249
    %698 = vmatpush.msra.mxu0 %v245
    %699 = vmatpush.msra.mxu0 %v241
    %700 = vmatpush.msra.mxu0 %v237
    %701 = vmatpush.msra.mxu0 %v233
    %702 = vmatpush.msra.mxu0 %v229
    %703 = vmatpush.msra.mxu0 %v225
    %704 = vmatpush.msra.mxu0 %v221
    %705 = vmatpush.msra.mxu0 %v217
    %706 = vmatpush.msra.mxu0 %v213
    %707 = vmatpush.msra.mxu0 %v209
    %708 = vmatpush.msra.mxu0 %v205
    %709 = vmatpush.msra.mxu0 %v201
    %710 = vmatpush.msra.mxu0 %v197
    %711 = vmatpush.msra.mxu0 %v193
    %712 = vmatmul.f32.gmra.mxu0 %v58
    %v713 = vpop.f32.mrf.mxu0
    %v714 = vadd.f32 %v451, %v713
    %715 = vdwg.mxu0
    %716 = vmatpush.msra.mxu0 %v317
    %717 = vmatpush.msra.mxu0 %v313
    %718 = vmatpush.msra.mxu0 %v309
    %719 = vmatpush.msra.mxu0 %v305
    %720 = vmatpush.msra.mxu0 %v301
    %721 = vmatpush.msra.mxu0 %v297
    %722 = vmatpush.msra.mxu0 %v293
    %723 = vmatpush.msra.mxu0 %v289
    %724 = vmatpush.msra.mxu0 %v285
    %725 = vmatpush.msra.mxu0 %v281
    %726 = vmatpush.msra.mxu0 %v277
    %727 = vmatpush.msra.mxu0 %v273
    %728 = vmatpush.msra.mxu0 %v269
    %729 = vmatpush.msra.mxu0 %v265
    %730 = vmatpush.msra.mxu0 %v261
    %731 = vmatpush.msra.mxu0 %v257
    %732 = vmatmul.f32.gmra.mxu0 %v59
    %v733 = vpop.f32.mrf.mxu0
    %v734 = vadd.f32 %v714, %v733
    %735 = vdwg.mxu0
    %736 = vmatpush.msra.mxu0 %v381
    %737 = vmatpush.msra.mxu0 %v377
    %738 = vmatpush.msra.mxu0 %v373
    %739 = vmatpush.msra.mxu0 %v369
    %740 = vmatpush.msra.mxu0 %v365
    %741 = vmatpush.msra.mxu0 %v361
    %742 = vmatpush.msra.mxu0 %v357
    %743 = vmatpush.msra.mxu0 %v353
    %744 = vmatpush.msra.mxu0 %v349
    %745 = vmatpush.msra.mxu0 %v345
    %746 = vmatpush.msra.mxu0 %v341
    %747 = vmatpush.msra.mxu0 %v337
    %748 = vmatpush.msra.mxu0 %v333
    %749 = vmatpush.msra.mxu0 %v329
    %750 = vmatpush.msra.mxu0 %v325
    %751 = vmatpush.msra.mxu0 %v321
    %752 = vmatmul.f32.gmra.mxu0 %v60
    %v753 = vpop.f32.mrf.mxu0
    %v754 = vadd.f32 %v734, %v753
    %755 = vdwg.mxu0
    %756 = vmatpush.msra.mxu0 %v445
    %757 = vmatpush.msra.mxu0 %v441
    %758 = vmatpush.msra.mxu0 %v437
    %759 = vmatpush.msra.mxu0 %v433
    %760 = vmatpush.msra.mxu0 %v429
    %761 = vmatpush.msra.mxu0 %v425
    %762 = vmatpush.msra.mxu0 %v421
    %763 = vmatpush.msra.mxu0 %v417
    %764 = vmatpush.msra.mxu0 %v413
    %765 = vmatpush.msra.mxu0 %v409
    %766 = vmatpush.msra.mxu0 %v405
    %767 = vmatpush.msra.mxu0 %v401
    %768 = vmatpush.msra.mxu0 %v397
    %769 = vmatpush.msra.mxu0 %v393
    %770 = vmatpush.msra.mxu0 %v389
    %771 = vmatpush.msra.mxu0 %v385
    %772 = vmatmul.f32.gmra.mxu0 %v61
    %v773 = vpop.f32.mrf.mxu0
    %v774 = vadd.f32 %v754, %v773
    %775 = vdwg.mxu0
    %s776 = scalar_lea.vmem [#allocation5], 1024
    %v777 = vld [vmem:[%s776] sm:$0xff]
    %v778 = vld [vmem:[%s776 + $0x8] sm:$0xff]
    %v779 = vld [vmem:[%s776 + $0x10] sm:$0xff]
    %v780 = vld [vmem:[%s776 + $0x18] sm:$0xff]
    %v781 = vld [vmem:[%s776 + $0x20] sm:$0xff]
    %v782 = vld [vmem:[%s776 + $0x28] sm:$0xff]
    %v783 = vld [vmem:[%s776 + $0x30] sm:$0xff]
    %v784 = vld [vmem:[%s776 + $0x38] sm:$0xff]
    %v785 = vld [vmem:[%s776 + $0x40] sm:$0xff]
    %v786 = vld [vmem:[%s776 + $0x48] sm:$0xff]
    %v787 = vld [vmem:[%s776 + $0x50] sm:$0xff]
    %v788 = vld [vmem:[%s776 + $0x58] sm:$0xff]
    %v789 = vld [vmem:[%s776 + $0x60] sm:$0xff]
    %v790 = vld [vmem:[%s776 + $0x68] sm:$0xff]
    %v791 = vld [vmem:[%s776 + $0x70] sm:$0xff]
    %v792 = vld [vmem:[%s776 + $0x78] sm:$0xff]
    %v793 = vld [vmem:[%s776 + $0x80] sm:$0xff]
    %v794 = vld [vmem:[%s776 + $0x88] sm:$0xff]
    %v795 = vld [vmem:[%s776 + $0x90] sm:$0xff]
    %v796 = vld [vmem:[%s776 + $0x98] sm:$0xff]
    %v797 = vld [vmem:[%s776 + $0xa0] sm:$0xff]
    %v798 = vld [vmem:[%s776 + $0xa8] sm:$0xff]
    %v799 = vld [vmem:[%s776 + $0xb0] sm:$0xff]
    %v800 = vld [vmem:[%s776 + $0xb8] sm:$0xff]
    %v801 = vld [vmem:[%s776 + $0xc0] sm:$0xff]
    %v802 = vld [vmem:[%s776 + $0xc8] sm:$0xff]
    %v803 = vld [vmem:[%s776 + $0xd0] sm:$0xff]
    %v804 = vld [vmem:[%s776 + $0xd8] sm:$0xff]
    %v805 = vld [vmem:[%s776 + $0xe0] sm:$0xff]
    %v806 = vld [vmem:[%s776 + $0xe8] sm:$0xff]
    %v807 = vld [vmem:[%s776 + $0xf0] sm:$0xff]
    %v808 = vld [vmem:[%s776 + $0xf8] sm:$0xff]
    %v809 = vld [vmem:[%s776 + $0x100] sm:$0xff]
    %v810 = vld [vmem:[%s776 + $0x108] sm:$0xff]
    %v811 = vld [vmem:[%s776 + $0x110] sm:$0xff]
    %v812 = vld [vmem:[%s776 + $0x118] sm:$0xff]
    %v813 = vld [vmem:[%s776 + $0x120] sm:$0xff]
    %v814 = vld [vmem:[%s776 + $0x128] sm:$0xff]
    %v815 = vld [vmem:[%s776 + $0x130] sm:$0xff]
    %v816 = vld [vmem:[%s776 + $0x138] sm:$0xff]
    %v817 = vld [vmem:[%s776 + $0x140] sm:$0xff]
    %v818 = vld [vmem:[%s776 + $0x148] sm:$0xff]
    %v819 = vld [vmem:[%s776 + $0x150] sm:$0xff]
    %v820 = vld [vmem:[%s776 + $0x158] sm:$0xff]
    %v821 = vld [vmem:[%s776 + $0x160] sm:$0xff]
    %v822 = vld [vmem:[%s776 + $0x168] sm:$0xff]
    %v823 = vld [vmem:[%s776 + $0x170] sm:$0xff]
    %v824 = vld [vmem:[%s776 + $0x178] sm:$0xff]
    %v825 = vld [vmem:[%s776 + $0x180] sm:$0xff]
    %v826 = vld [vmem:[%s776 + $0x188] sm:$0xff]
    %v827 = vld [vmem:[%s776 + $0x190] sm:$0xff]
    %v828 = vld [vmem:[%s776 + $0x198] sm:$0xff]
    %v829 = vld [vmem:[%s776 + $0x1a0] sm:$0xff]
    %v830 = vld [vmem:[%s776 + $0x1a8] sm:$0xff]
    %v831 = vld [vmem:[%s776 + $0x1b0] sm:$0xff]
    %v832 = vld [vmem:[%s776 + $0x1b8] sm:$0xff]
    %v833 = vld [vmem:[%s776 + $0x1c0] sm:$0xff]
    %v834 = vld [vmem:[%s776 + $0x1c8] sm:$0xff]
    %v835 = vld [vmem:[%s776 + $0x1d0] sm:$0xff]
    %v836 = vld [vmem:[%s776 + $0x1d8] sm:$0xff]
    %v837 = vld [vmem:[%s776 + $0x1e0] sm:$0xff]
    %v838 = vld [vmem:[%s776 + $0x1e8] sm:$0xff]
    %v839 = vld [vmem:[%s776 + $0x1f0] sm:$0xff]
    %v840 = vld [vmem:[%s776 + $0x1f8] sm:$0xff]
    %v841 = vld [vmem:[%s776 + $0x200] sm:$0xff]
    %v842 = vld [vmem:[%s776 + $0x208] sm:$0xff]
    %v843 = vld [vmem:[%s776 + $0x210] sm:$0xff]
    %v844 = vld [vmem:[%s776 + $0x218] sm:$0xff]
    %v845 = vld [vmem:[%s776 + $0x220] sm:$0xff]
    %v846 = vld [vmem:[%s776 + $0x228] sm:$0xff]
    %v847 = vld [vmem:[%s776 + $0x230] sm:$0xff]
    %v848 = vld [vmem:[%s776 + $0x238] sm:$0xff]
    %v849 = vld [vmem:[%s776 + $0x240] sm:$0xff]
    %v850 = vld [vmem:[%s776 + $0x248] sm:$0xff]
    %v851 = vld [vmem:[%s776 + $0x250] sm:$0xff]
    %v852 = vld [vmem:[%s776 + $0x258] sm:$0xff]
    %v853 = vld [vmem:[%s776 + $0x260] sm:$0xff]
    %v854 = vld [vmem:[%s776 + $0x268] sm:$0xff]
    %v855 = vld [vmem:[%s776 + $0x270] sm:$0xff]
    %v856 = vld [vmem:[%s776 + $0x278] sm:$0xff]
    %v857 = vld [vmem:[%s776 + $0x280] sm:$0xff]
    %v858 = vld [vmem:[%s776 + $0x288] sm:$0xff]
    %v859 = vld [vmem:[%s776 + $0x290] sm:$0xff]
    %v860 = vld [vmem:[%s776 + $0x298] sm:$0xff]
    %v861 = vld [vmem:[%s776 + $0x2a0] sm:$0xff]
    %v862 = vld [vmem:[%s776 + $0x2a8] sm:$0xff]
    %v863 = vld [vmem:[%s776 + $0x2b0] sm:$0xff]
    %v864 = vld [vmem:[%s776 + $0x2b8] sm:$0xff]
    %v865 = vld [vmem:[%s776 + $0x2c0] sm:$0xff]
    %v866 = vld [vmem:[%s776 + $0x2c8] sm:$0xff]
    %v867 = vld [vmem:[%s776 + $0x2d0] sm:$0xff]
    %v868 = vld [vmem:[%s776 + $0x2d8] sm:$0xff]
    %v869 = vld [vmem:[%s776 + $0x2e0] sm:$0xff]
    %v870 = vld [vmem:[%s776 + $0x2e8] sm:$0xff]
    %v871 = vld [vmem:[%s776 + $0x2f0] sm:$0xff]
    %v872 = vld [vmem:[%s776 + $0x2f8] sm:$0xff]
    %v873 = vld [vmem:[%s776 + $0x300] sm:$0xff]
    %v874 = vld [vmem:[%s776 + $0x308] sm:$0xff]
    %v875 = vld [vmem:[%s776 + $0x310] sm:$0xff]
    %v876 = vld [vmem:[%s776 + $0x318] sm:$0xff]
    %v877 = vld [vmem:[%s776 + $0x320] sm:$0xff]
    %v878 = vld [vmem:[%s776 + $0x328] sm:$0xff]
    %v879 = vld [vmem:[%s776 + $0x330] sm:$0xff]
    %v880 = vld [vmem:[%s776 + $0x338] sm:$0xff]
    %v881 = vld [vmem:[%s776 + $0x340] sm:$0xff]
    %v882 = vld [vmem:[%s776 + $0x348] sm:$0xff]
    %v883 = vld [vmem:[%s776 + $0x350] sm:$0xff]
    %v884 = vld [vmem:[%s776 + $0x358] sm:$0xff]
    %v885 = vld [vmem:[%s776 + $0x360] sm:$0xff]
    %v886 = vld [vmem:[%s776 + $0x368] sm:$0xff]
    %v887 = vld [vmem:[%s776 + $0x370] sm:$0xff]
    %v888 = vld [vmem:[%s776 + $0x378] sm:$0xff]
    %v889 = vld [vmem:[%s776 + $0x380] sm:$0xff]
    %v890 = vld [vmem:[%s776 + $0x388] sm:$0xff]
    %v891 = vld [vmem:[%s776 + $0x390] sm:$0xff]
    %v892 = vld [vmem:[%s776 + $0x398] sm:$0xff]
    %v893 = vld [vmem:[%s776 + $0x3a0] sm:$0xff]
    %v894 = vld [vmem:[%s776 + $0x3a8] sm:$0xff]
    %v895 = vld [vmem:[%s776 + $0x3b0] sm:$0xff]
    %v896 = vld [vmem:[%s776 + $0x3b8] sm:$0xff]
    %v897 = vld [vmem:[%s776 + $0x3c0] sm:$0xff]
    %v898 = vld [vmem:[%s776 + $0x3c8] sm:$0xff]
    %v899 = vld [vmem:[%s776 + $0x3d0] sm:$0xff]
    %v900 = vld [vmem:[%s776 + $0x3d8] sm:$0xff]
    %v901 = vld [vmem:[%s776 + $0x3e0] sm:$0xff]
    %v902 = vld [vmem:[%s776 + $0x3e8] sm:$0xff]
    %v903 = vld [vmem:[%s776 + $0x3f0] sm:$0xff]
    %v904 = vld [vmem:[%s776 + $0x3f8] sm:$0xff]
    %v905 = vunpack.c.l.bf16 %v777
    %v906 = vunpack.c.h.bf16 %v777
    %v907 = vunpack.c.l.bf16 %v778
    %v908 = vunpack.c.h.bf16 %v778
    %v909 = vunpack.c.l.bf16 %v779
    %v910 = vunpack.c.h.bf16 %v779
    %v911 = vunpack.c.l.bf16 %v780
    %v912 = vunpack.c.h.bf16 %v780
    %v913 = vunpack.c.l.bf16 %v781
    %v914 = vunpack.c.h.bf16 %v781
    %v915 = vunpack.c.l.bf16 %v782
    %v916 = vunpack.c.h.bf16 %v782
    %v917 = vunpack.c.l.bf16 %v783
    %v918 = vunpack.c.h.bf16 %v783
    %v919 = vunpack.c.l.bf16 %v784
    %v920 = vunpack.c.h.bf16 %v784
    %v921 = vunpack.c.l.bf16 %v785
    %v922 = vunpack.c.h.bf16 %v785
    %v923 = vunpack.c.l.bf16 %v786
    %v924 = vunpack.c.h.bf16 %v786
    %v925 = vunpack.c.l.bf16 %v787
    %v926 = vunpack.c.h.bf16 %v787
    %v927 = vunpack.c.l.bf16 %v788
    %v928 = vunpack.c.h.bf16 %v788
    %v929 = vunpack.c.l.bf16 %v789
    %v930 = vunpack.c.h.bf16 %v789
    %v931 = vunpack.c.l.bf16 %v790
    %v932 = vunpack.c.h.bf16 %v790
    %v933 = vunpack.c.l.bf16 %v791
    %v934 = vunpack.c.h.bf16 %v791
    %v935 = vunpack.c.l.bf16 %v792
    %v936 = vunpack.c.h.bf16 %v792
    %v937 = vunpack.c.l.bf16 %v793
    %v938 = vunpack.c.h.bf16 %v793
    %v939 = vunpack.c.l.bf16 %v794
    %v940 = vunpack.c.h.bf16 %v794
    %v941 = vunpack.c.l.bf16 %v795
    %v942 = vunpack.c.h.bf16 %v795
    %v943 = vunpack.c.l.bf16 %v796
    %v944 = vunpack.c.h.bf16 %v796
    %v945 = vunpack.c.l.bf16 %v797
    %v946 = vunpack.c.h.bf16 %v797
    %v947 = vunpack.c.l.bf16 %v798
    %v948 = vunpack.c.h.bf16 %v798
    %v949 = vunpack.c.l.bf16 %v799
    %v950 = vunpack.c.h.bf16 %v799
    %v951 = vunpack.c.l.bf16 %v800
    %v952 = vunpack.c.h.bf16 %v800
    %v953 = vunpack.c.l.bf16 %v801
    %v954 = vunpack.c.h.bf16 %v801
    %v955 = vunpack.c.l.bf16 %v802
    %v956 = vunpack.c.h.bf16 %v802
    %v957 = vunpack.c.l.bf16 %v803
    %v958 = vunpack.c.h.bf16 %v803
    %v959 = vunpack.c.l.bf16 %v804
    %v960 = vunpack.c.h.bf16 %v804
    %v961 = vunpack.c.l.bf16 %v805
    %v962 = vunpack.c.h.bf16 %v805
    %v963 = vunpack.c.l.bf16 %v806
    %v964 = vunpack.c.h.bf16 %v806
    %v965 = vunpack.c.l.bf16 %v807
    %v966 = vunpack.c.h.bf16 %v807
    %v967 = vunpack.c.l.bf16 %v808
    %v968 = vunpack.c.h.bf16 %v808
    %v969 = vunpack.c.l.bf16 %v809
    %v970 = vunpack.c.h.bf16 %v809
    %v971 = vunpack.c.l.bf16 %v810
    %v972 = vunpack.c.h.bf16 %v810
    %v973 = vunpack.c.l.bf16 %v811
    %v974 = vunpack.c.h.bf16 %v811
    %v975 = vunpack.c.l.bf16 %v812
    %v976 = vunpack.c.h.bf16 %v812
    %v977 = vunpack.c.l.bf16 %v813
    %v978 = vunpack.c.h.bf16 %v813
    %v979 = vunpack.c.l.bf16 %v814
    %v980 = vunpack.c.h.bf16 %v814
    %v981 = vunpack.c.l.bf16 %v815
    %v982 = vunpack.c.h.bf16 %v815
    %v983 = vunpack.c.l.bf16 %v816
    %v984 = vunpack.c.h.bf16 %v816
    %v985 = vunpack.c.l.bf16 %v817
    %v986 = vunpack.c.h.bf16 %v817
    %v987 = vunpack.c.l.bf16 %v818
    %v988 = vunpack.c.h.bf16 %v818
    %v989 = vunpack.c.l.bf16 %v819
    %v990 = vunpack.c.h.bf16 %v819
    %v991 = vunpack.c.l.bf16 %v820
    %v992 = vunpack.c.h.bf16 %v820
    %v993 = vunpack.c.l.bf16 %v821
    %v994 = vunpack.c.h.bf16 %v821
    %v995 = vunpack.c.l.bf16 %v822
    %v996 = vunpack.c.h.bf16 %v822
    %v997 = vunpack.c.l.bf16 %v823
    %v998 = vunpack.c.h.bf16 %v823
    %v999 = vunpack.c.l.bf16 %v824
    %v1000 = vunpack.c.h.bf16 %v824
    %v1001 = vunpack.c.l.bf16 %v825
    %v1002 = vunpack.c.h.bf16 %v825
    %v1003 = vunpack.c.l.bf16 %v826
    %v1004 = vunpack.c.h.bf16 %v826
    %v1005 = vunpack.c.l.bf16 %v827
    %v1006 = vunpack.c.h.bf16 %v827
    %v1007 = vunpack.c.l.bf16 %v828
    %v1008 = vunpack.c.h.bf16 %v828
    %v1009 = vunpack.c.l.bf16 %v829
    %v1010 = vunpack.c.h.bf16 %v829
    %v1011 = vunpack.c.l.bf16 %v830
    %v1012 = vunpack.c.h.bf16 %v830
    %v1013 = vunpack.c.l.bf16 %v831
    %v1014 = vunpack.c.h.bf16 %v831
    %v1015 = vunpack.c.l.bf16 %v832
    %v1016 = vunpack.c.h.bf16 %v832
    %v1017 = vunpack.c.l.bf16 %v833
    %v1018 = vunpack.c.h.bf16 %v833
    %v1019 = vunpack.c.l.bf16 %v834
    %v1020 = vunpack.c.h.bf16 %v834
    %v1021 = vunpack.c.l.bf16 %v835
    %v1022 = vunpack.c.h.bf16 %v835
    %v1023 = vunpack.c.l.bf16 %v836
    %v1024 = vunpack.c.h.bf16 %v836
    %v1025 = vunpack.c.l.bf16 %v837
    %v1026 = vunpack.c.h.bf16 %v837
    %v1027 = vunpack.c.l.bf16 %v838
    %v1028 = vunpack.c.h.bf16 %v838
    %v1029 = vunpack.c.l.bf16 %v839
    %v1030 = vunpack.c.h.bf16 %v839
    %v1031 = vunpack.c.l.bf16 %v840
    %v1032 = vunpack.c.h.bf16 %v840
    %v1033 = vunpack.c.l.bf16 %v841
    %v1034 = vunpack.c.h.bf16 %v841
    %v1035 = vunpack.c.l.bf16 %v842
    %v1036 = vunpack.c.h.bf16 %v842
    %v1037 = vunpack.c.l.bf16 %v843
    %v1038 = vunpack.c.h.bf16 %v843
    %v1039 = vunpack.c.l.bf16 %v844
    %v1040 = vunpack.c.h.bf16 %v844
    %v1041 = vunpack.c.l.bf16 %v845
    %v1042 = vunpack.c.h.bf16 %v845
    %v1043 = vunpack.c.l.bf16 %v846
    %v1044 = vunpack.c.h.bf16 %v846
    %v1045 = vunpack.c.l.bf16 %v847
    %v1046 = vunpack.c.h.bf16 %v847
    %v1047 = vunpack.c.l.bf16 %v848
    %v1048 = vunpack.c.h.bf16 %v848
    %v1049 = vunpack.c.l.bf16 %v849
    %v1050 = vunpack.c.h.bf16 %v849
    %v1051 = vunpack.c.l.bf16 %v850
    %v1052 = vunpack.c.h.bf16 %v850
    %v1053 = vunpack.c.l.bf16 %v851
    %v1054 = vunpack.c.h.bf16 %v851
    %v1055 = vunpack.c.l.bf16 %v852
    %v1056 = vunpack.c.h.bf16 %v852
    %v1057 = vunpack.c.l.bf16 %v853
    %v1058 = vunpack.c.h.bf16 %v853
    %v1059 = vunpack.c.l.bf16 %v854
    %v1060 = vunpack.c.h.bf16 %v854
    %v1061 = vunpack.c.l.bf16 %v855
    %v1062 = vunpack.c.h.bf16 %v855
    %v1063 = vunpack.c.l.bf16 %v856
    %v1064 = vunpack.c.h.bf16 %v856
    %v1065 = vunpack.c.l.bf16 %v857
    %v1066 = vunpack.c.h.bf16 %v857
    %v1067 = vunpack.c.l.bf16 %v858
    %v1068 = vunpack.c.h.bf16 %v858
    %v1069 = vunpack.c.l.bf16 %v859
    %v1070 = vunpack.c.h.bf16 %v859
    %v1071 = vunpack.c.l.bf16 %v860
    %v1072 = vunpack.c.h.bf16 %v860
    %v1073 = vunpack.c.l.bf16 %v861
    %v1074 = vunpack.c.h.bf16 %v861
    %v1075 = vunpack.c.l.bf16 %v862
    %v1076 = vunpack.c.h.bf16 %v862
    %v1077 = vunpack.c.l.bf16 %v863
    %v1078 = vunpack.c.h.bf16 %v863
    %v1079 = vunpack.c.l.bf16 %v864
    %v1080 = vunpack.c.h.bf16 %v864
    %v1081 = vunpack.c.l.bf16 %v865
    %v1082 = vunpack.c.h.bf16 %v865
    %v1083 = vunpack.c.l.bf16 %v866
    %v1084 = vunpack.c.h.bf16 %v866
    %v1085 = vunpack.c.l.bf16 %v867
    %v1086 = vunpack.c.h.bf16 %v867
    %v1087 = vunpack.c.l.bf16 %v868
    %v1088 = vunpack.c.h.bf16 %v868
    %v1089 = vunpack.c.l.bf16 %v869
    %v1090 = vunpack.c.h.bf16 %v869
    %v1091 = vunpack.c.l.bf16 %v870
    %v1092 = vunpack.c.h.bf16 %v870
    %v1093 = vunpack.c.l.bf16 %v871
    %v1094 = vunpack.c.h.bf16 %v871
    %v1095 = vunpack.c.l.bf16 %v872
    %v1096 = vunpack.c.h.bf16 %v872
    %v1097 = vunpack.c.l.bf16 %v873
    %v1098 = vunpack.c.h.bf16 %v873
    %v1099 = vunpack.c.l.bf16 %v874
    %v1100 = vunpack.c.h.bf16 %v874
    %v1101 = vunpack.c.l.bf16 %v875
    %v1102 = vunpack.c.h.bf16 %v875
    %v1103 = vunpack.c.l.bf16 %v876
    %v1104 = vunpack.c.h.bf16 %v876
    %v1105 = vunpack.c.l.bf16 %v877
    %v1106 = vunpack.c.h.bf16 %v877
    %v1107 = vunpack.c.l.bf16 %v878
    %v1108 = vunpack.c.h.bf16 %v878
    %v1109 = vunpack.c.l.bf16 %v879
    %v1110 = vunpack.c.h.bf16 %v879
    %v1111 = vunpack.c.l.bf16 %v880
    %v1112 = vunpack.c.h.bf16 %v880
    %v1113 = vunpack.c.l.bf16 %v881
    %v1114 = vunpack.c.h.bf16 %v881
    %v1115 = vunpack.c.l.bf16 %v882
    %v1116 = vunpack.c.h.bf16 %v882
    %v1117 = vunpack.c.l.bf16 %v883
    %v1118 = vunpack.c.h.bf16 %v883
    %v1119 = vunpack.c.l.bf16 %v884
    %v1120 = vunpack.c.h.bf16 %v884
    %v1121 = vunpack.c.l.bf16 %v885
    %v1122 = vunpack.c.h.bf16 %v885
    %v1123 = vunpack.c.l.bf16 %v886
    %v1124 = vunpack.c.h.bf16 %v886
    %v1125 = vunpack.c.l.bf16 %v887
    %v1126 = vunpack.c.h.bf16 %v887
    %v1127 = vunpack.c.l.bf16 %v888
    %v1128 = vunpack.c.h.bf16 %v888
    %v1129 = vunpack.c.l.bf16 %v889
    %v1130 = vunpack.c.h.bf16 %v889
    %v1131 = vunpack.c.l.bf16 %v890
    %v1132 = vunpack.c.h.bf16 %v890
    %v1133 = vunpack.c.l.bf16 %v891
    %v1134 = vunpack.c.h.bf16 %v891
    %v1135 = vunpack.c.l.bf16 %v892
    %v1136 = vunpack.c.h.bf16 %v892
    %v1137 = vunpack.c.l.bf16 %v893
    %v1138 = vunpack.c.h.bf16 %v893
    %v1139 = vunpack.c.l.bf16 %v894
    %v1140 = vunpack.c.h.bf16 %v894
    %v1141 = vunpack.c.l.bf16 %v895
    %v1142 = vunpack.c.h.bf16 %v895
    %v1143 = vunpack.c.l.bf16 %v896
    %v1144 = vunpack.c.h.bf16 %v896
    %v1145 = vunpack.c.l.bf16 %v897
    %v1146 = vunpack.c.h.bf16 %v897
    %v1147 = vunpack.c.l.bf16 %v898
    %v1148 = vunpack.c.h.bf16 %v898
    %v1149 = vunpack.c.l.bf16 %v899
    %v1150 = vunpack.c.h.bf16 %v899
    %v1151 = vunpack.c.l.bf16 %v900
    %v1152 = vunpack.c.h.bf16 %v900
    %v1153 = vunpack.c.l.bf16 %v901
    %v1154 = vunpack.c.h.bf16 %v901
    %v1155 = vunpack.c.l.bf16 %v902
    %v1156 = vunpack.c.h.bf16 %v902
    %v1157 = vunpack.c.l.bf16 %v903
    %v1158 = vunpack.c.h.bf16 %v903
    %v1159 = vunpack.c.l.bf16 %v904
    %v1160 = vunpack.c.h.bf16 %v904
    %s1161 = scalar_lea.vmem [#allocation7], 1
    %v1162 = vld [vmem:[%s1161] ss:$8 sm:$0xf]
    %v1164 = vperm.slane %v1162, 0
    %v1165 = vperm.slane %v1162, 1
    %v1166 = vperm.slane %v1162, 2
    %v1167 = vperm.slane %v1162, 3
    %1172 = vmatpush.msra.mxu0 %v965
    %1173 = vmatpush.msra.mxu0 %v961
    %1174 = vmatpush.msra.mxu0 %v957
    %1175 = vmatpush.msra.mxu0 %v953
    %1176 = vmatpush.msra.mxu0 %v949
    %1177 = vmatpush.msra.mxu0 %v945
    %1178 = vmatpush.msra.mxu0 %v941
    %1179 = vmatpush.msra.mxu0 %v937
    %1180 = vmatpush.msra.mxu0 %v933
    %1181 = vmatpush.msra.mxu0 %v929
    %1182 = vmatpush.msra.mxu0 %v925
    %1183 = vmatpush.msra.mxu0 %v921
    %1184 = vmatpush.msra.mxu0 %v917
    %1185 = vmatpush.msra.mxu0 %v913
    %1186 = vmatpush.msra.mxu0 %v909
    %1187 = vmatpush.msra.mxu0 %v905
    %1188 = vmatmul.f32.gmra.mxu0 %v534
    %v1189 = vpop.f32.mrf.mxu0
    %v1190 = vadd.f32 %v1164, %v1189
    %1191 = vdwg.mxu0
    %1192 = vmatpush.msra.mxu0 %v1029
    %1193 = vmatpush.msra.mxu0 %v1025
    %1194 = vmatpush.msra.mxu0 %v1021
    %1195 = vmatpush.msra.mxu0 %v1017
    %1196 = vmatpush.msra.mxu0 %v1013
    %1197 = vmatpush.msra.mxu0 %v1009
    %1198 = vmatpush.msra.mxu0 %v1005
    %1199 = vmatpush.msra.mxu0 %v1001
    %1200 = vmatpush.msra.mxu0 %v997
    %1201 = vmatpush.msra.mxu0 %v993
    %1202 = vmatpush.msra.mxu0 %v989
    %1203 = vmatpush.msra.mxu0 %v985
    %1204 = vmatpush.msra.mxu0 %v981
    %1205 = vmatpush.msra.mxu0 %v977
    %1206 = vmatpush.msra.mxu0 %v973
    %1207 = vmatpush.msra.mxu0 %v969
    %1208 = vmatmul.f32.gmra.mxu0 %v614
    %v1209 = vpop.f32.mrf.mxu0
    %v1210 = vadd.f32 %v1190, %v1209
    %1211 = vdwg.mxu0
    %1212 = vmatpush.msra.mxu0 %v1093
    %1213 = vmatpush.msra.mxu0 %v1089
    %1214 = vmatpush.msra.mxu0 %v1085
    %1215 = vmatpush.msra.mxu0 %v1081
    %1216 = vmatpush.msra.mxu0 %v1077
    %1217 = vmatpush.msra.mxu0 %v1073
    %1218 = vmatpush.msra.mxu0 %v1069
    %1219 = vmatpush.msra.mxu0 %v1065
    %1220 = vmatpush.msra.mxu0 %v1061
    %1221 = vmatpush.msra.mxu0 %v1057
    %1222 = vmatpush.msra.mxu0 %v1053
    %1223 = vmatpush.msra.mxu0 %v1049
    %1224 = vmatpush.msra.mxu0 %v1045
    %1225 = vmatpush.msra.mxu0 %v1041
    %1226 = vmatpush.msra.mxu0 %v1037
    %1227 = vmatpush.msra.mxu0 %v1033
    %1228 = vmatmul.f32.gmra.mxu0 %v694
    %v1229 = vpop.f32.mrf.mxu0
    %v1230 = vadd.f32 %v1210, %v1229
    %1231 = vdwg.mxu0
    %1232 = vmatpush.msra.mxu0 %v1157
    %1233 = vmatpush.msra.mxu0 %v1153
    %1234 = vmatpush.msra.mxu0 %v1149
    %1235 = vmatpush.msra.mxu0 %v1145
    %1236 = vmatpush.msra.mxu0 %v1141
    %1237 = vmatpush.msra.mxu0 %v1137
    %1238 = vmatpush.msra.mxu0 %v1133
    %1239 = vmatpush.msra.mxu0 %v1129
    %1240 = vmatpush.msra.mxu0 %v1125
    %1241 = vmatpush.msra.mxu0 %v1121
    %1242 = vmatpush.msra.mxu0 %v1117
    %1243 = vmatpush.msra.mxu0 %v1113
    %1244 = vmatpush.msra.mxu0 %v1109
    %1245 = vmatpush.msra.mxu0 %v1105
    %1246 = vmatpush.msra.mxu0 %v1101
    %1247 = vmatpush.msra.mxu0 %v1097
    %1248 = vmatmul.f32.gmra.mxu0 %v774
    %v1249 = vpop.f32.mrf.mxu0
    %v1250 = vadd.f32 %v1230, %v1249
    %1251 = vdwg.mxu0
    %1252 = vmatpush.msra.mxu0 %v966
    %1253 = vmatpush.msra.mxu0 %v962
    %1254 = vmatpush.msra.mxu0 %v958
    %1255 = vmatpush.msra.mxu0 %v954
    %1256 = vmatpush.msra.mxu0 %v950
    %1257 = vmatpush.msra.mxu0 %v946
    %1258 = vmatpush.msra.mxu0 %v942
    %1259 = vmatpush.msra.mxu0 %v938
    %1260 = vmatpush.msra.mxu0 %v934
    %1261 = vmatpush.msra.mxu0 %v930
    %1262 = vmatpush.msra.mxu0 %v926
    %1263 = vmatpush.msra.mxu0 %v922
    %1264 = vmatpush.msra.mxu0 %v918
    %1265 = vmatpush.msra.mxu0 %v914
    %1266 = vmatpush.msra.mxu0 %v910
    %1267 = vmatpush.msra.mxu0 %v906
    %1268 = vmatmul.f32.gmra.mxu0 %v534
    %v1269 = vpop.f32.mrf.mxu0
    %v1270 = vadd.f32 %v1165, %v1269
    %1271 = vdwg.mxu0
    %1272 = vmatpush.msra.mxu0 %v1030
    %1273 = vmatpush.msra.mxu0 %v1026
    %1274 = vmatpush.msra.mxu0 %v1022
    %1275 = vmatpush.msra.mxu0 %v1018
    %1276 = vmatpush.msra.mxu0 %v1014
    %1277 = vmatpush.msra.mxu0 %v1010
    %1278 = vmatpush.msra.mxu0 %v1006
    %1279 = vmatpush.msra.mxu0 %v1002
    %1280 = vmatpush.msra.mxu0 %v998
    %1281 = vmatpush.msra.mxu0 %v994
    %1282 = vmatpush.msra.mxu0 %v990
    %1283 = vmatpush.msra.mxu0 %v986
    %1284 = vmatpush.msra.mxu0 %v982
    %1285 = vmatpush.msra.mxu0 %v978
    %1286 = vmatpush.msra.mxu0 %v974
    %1287 = vmatpush.msra.mxu0 %v970
    %1288 = vmatmul.f32.gmra.mxu0 %v614
    %v1289 = vpop.f32.mrf.mxu0
    %v1290 = vadd.f32 %v1270, %v1289
    %1291 = vdwg.mxu0
    %1292 = vmatpush.msra.mxu0 %v1094
    %1293 = vmatpush.msra.mxu0 %v1090
    %1294 = vmatpush.msra.mxu0 %v1086
    %1295 = vmatpush.msra.mxu0 %v1082
    %1296 = vmatpush.msra.mxu0 %v1078
    %1297 = vmatpush.msra.mxu0 %v1074
    %1298 = vmatpush.msra.mxu0 %v1070
    %1299 = vmatpush.msra.mxu0 %v1066
    %1300 = vmatpush.msra.mxu0 %v1062
    %1301 = vmatpush.msra.mxu0 %v1058
    %1302 = vmatpush.msra.mxu0 %v1054
    %1303 = vmatpush.msra.mxu0 %v1050
    %1304 = vmatpush.msra.mxu0 %v1046
    %1305 = vmatpush.msra.mxu0 %v1042
    %1306 = vmatpush.msra.mxu0 %v1038
    %1307 = vmatpush.msra.mxu0 %v1034
    %1308 = vmatmul.f32.gmra.mxu0 %v694
    %v1309 = vpop.f32.mrf.mxu0
    %v1310 = vadd.f32 %v1290, %v1309
    %1311 = vdwg.mxu0
    %1312 = vmatpush.msra.mxu0 %v1158
    %1313 = vmatpush.msra.mxu0 %v1154
    %1314 = vmatpush.msra.mxu0 %v1150
    %1315 = vmatpush.msra.mxu0 %v1146
    %1316 = vmatpush.msra.mxu0 %v1142
    %1317 = vmatpush.msra.mxu0 %v1138
    %1318 = vmatpush.msra.mxu0 %v1134
    %1319 = vmatpush.msra.mxu0 %v1130
    %1320 = vmatpush.msra.mxu0 %v1126
    %1321 = vmatpush.msra.mxu0 %v1122
    %1322 = vmatpush.msra.mxu0 %v1118
    %1323 = vmatpush.msra.mxu0 %v1114
    %1324 = vmatpush.msra.mxu0 %v1110
    %1325 = vmatpush.msra.mxu0 %v1106
    %1326 = vmatpush.msra.mxu0 %v1102
    %1327 = vmatpush.msra.mxu0 %v1098
    %1328 = vmatmul.f32.gmra.mxu0 %v774
    %v1329 = vpop.f32.mrf.mxu0
    %v1330 = vadd.f32 %v1310, %v1329
    %1331 = vdwg.mxu0
    %1332 = vmatpush.msra.mxu0 %v967
    %1333 = vmatpush.msra.mxu0 %v963
    %1334 = vmatpush.msra.mxu0 %v959
    %1335 = vmatpush.msra.mxu0 %v955
    %1336 = vmatpush.msra.mxu0 %v951
    %1337 = vmatpush.msra.mxu0 %v947
    %1338 = vmatpush.msra.mxu0 %v943
    %1339 = vmatpush.msra.mxu0 %v939
    %1340 = vmatpush.msra.mxu0 %v935
    %1341 = vmatpush.msra.mxu0 %v931
    %1342 = vmatpush.msra.mxu0 %v927
    %1343 = vmatpush.msra.mxu0 %v923
    %1344 = vmatpush.msra.mxu0 %v919
    %1345 = vmatpush.msra.mxu0 %v915
    %1346 = vmatpush.msra.mxu0 %v911
    %1347 = vmatpush.msra.mxu0 %v907
    %1348 = vmatmul.f32.gmra.mxu0 %v534
    %v1349 = vpop.f32.mrf.mxu0
    %v1350 = vadd.f32 %v1166, %v1349
    %1351 = vdwg.mxu0
    %1352 = vmatpush.msra.mxu0 %v1031
    %1353 = vmatpush.msra.mxu0 %v1027
    %1354 = vmatpush.msra.mxu0 %v1023
    %1355 = vmatpush.msra.mxu0 %v1019
    %1356 = vmatpush.msra.mxu0 %v1015
    %1357 = vmatpush.msra.mxu0 %v1011
    %1358 = vmatpush.msra.mxu0 %v1007
    %1359 = vmatpush.msra.mxu0 %v1003
    %1360 = vmatpush.msra.mxu0 %v999
    %1361 = vmatpush.msra.mxu0 %v995
    %1362 = vmatpush.msra.mxu0 %v991
    %1363 = vmatpush.msra.mxu0 %v987
    %1364 = vmatpush.msra.mxu0 %v983
    %1365 = vmatpush.msra.mxu0 %v979
    %1366 = vmatpush.msra.mxu0 %v975
    %1367 = vmatpush.msra.mxu0 %v971
    %1368 = vmatmul.f32.gmra.mxu0 %v614
    %v1369 = vpop.f32.mrf.mxu0
    %v1370 = vadd.f32 %v1350, %v1369
    %1371 = vdwg.mxu0
    %1372 = vmatpush.msra.mxu0 %v1095
    %1373 = vmatpush.msra.mxu0 %v1091
    %1374 = vmatpush.msra.mxu0 %v1087
    %1375 = vmatpush.msra.mxu0 %v1083
    %1376 = vmatpush.msra.mxu0 %v1079
    %1377 = vmatpush.msra.mxu0 %v1075
    %1378 = vmatpush.msra.mxu0 %v1071
    %1379 = vmatpush.msra.mxu0 %v1067
    %1380 = vmatpush.msra.mxu0 %v1063
    %1381 = vmatpush.msra.mxu0 %v1059
    %1382 = vmatpush.msra.mxu0 %v1055
    %1383 = vmatpush.msra.mxu0 %v1051
    %1384 = vmatpush.msra.mxu0 %v1047
    %1385 = vmatpush.msra.mxu0 %v1043
    %1386 = vmatpush.msra.mxu0 %v1039
    %1387 = vmatpush.msra.mxu0 %v1035
    %1388 = vmatmul.f32.gmra.mxu0 %v694
    %v1389 = vpop.f32.mrf.mxu0
    %v1390 = vadd.f32 %v1370, %v1389
    %1391 = vdwg.mxu0
    %1392 = vmatpush.msra.mxu0 %v1159
    %1393 = vmatpush.msra.mxu0 %v1155
    %1394 = vmatpush.msra.mxu0 %v1151
    %1395 = vmatpush.msra.mxu0 %v1147
    %1396 = vmatpush.msra.mxu0 %v1143
    %1397 = vmatpush.msra.mxu0 %v1139
    %1398 = vmatpush.msra.mxu0 %v1135
    %1399 = vmatpush.msra.mxu0 %v1131
    %1400 = vmatpush.msra.mxu0 %v1127
    %1401 = vmatpush.msra.mxu0 %v1123
    %1402 = vmatpush.msra.mxu0 %v1119
    %1403 = vmatpush.msra.mxu0 %v1115
    %1404 = vmatpush.msra.mxu0 %v1111
    %1405 = vmatpush.msra.mxu0 %v1107
    %1406 = vmatpush.msra.mxu0 %v1103
    %1407 = vmatpush.msra.mxu0 %v1099
    %1408 = vmatmul.f32.gmra.mxu0 %v774
    %v1409 = vpop.f32.mrf.mxu0
    %v1410 = vadd.f32 %v1390, %v1409
    %1411 = vdwg.mxu0
    %1412 = vmatpush.msra.mxu0 %v968
    %1413 = vmatpush.msra.mxu0 %v964
    %1414 = vmatpush.msra.mxu0 %v960
    %1415 = vmatpush.msra.mxu0 %v956
    %1416 = vmatpush.msra.mxu0 %v952
    %1417 = vmatpush.msra.mxu0 %v948
    %1418 = vmatpush.msra.mxu0 %v944
    %1419 = vmatpush.msra.mxu0 %v940
    %1420 = vmatpush.msra.mxu0 %v936
    %1421 = vmatpush.msra.mxu0 %v932
    %1422 = vmatpush.msra.mxu0 %v928
    %1423 = vmatpush.msra.mxu0 %v924
    %1424 = vmatpush.msra.mxu0 %v920
    %1425 = vmatpush.msra.mxu0 %v916
    %1426 = vmatpush.msra.mxu0 %v912
    %1427 = vmatpush.msra.mxu0 %v908
    %1428 = vmatmul.f32.gmra.mxu0 %v534
    %v1429 = vpop.f32.mrf.mxu0
    %v1430 = vadd.f32 %v1167, %v1429
    %1431 = vdwg.mxu0
    %1432 = vmatpush.msra.mxu0 %v1032
    %1433 = vmatpush.msra.mxu0 %v1028
    %1434 = vmatpush.msra.mxu0 %v1024
    %1435 = vmatpush.msra.mxu0 %v1020
    %1436 = vmatpush.msra.mxu0 %v1016
    %1437 = vmatpush.msra.mxu0 %v1012
    %1438 = vmatpush.msra.mxu0 %v1008
    %1439 = vmatpush.msra.mxu0 %v1004
    %1440 = vmatpush.msra.mxu0 %v1000
    %1441 = vmatpush.msra.mxu0 %v996
    %1442 = vmatpush.msra.mxu0 %v992
    %1443 = vmatpush.msra.mxu0 %v988
    %1444 = vmatpush.msra.mxu0 %v984
    %1445 = vmatpush.msra.mxu0 %v980
    %1446 = vmatpush.msra.mxu0 %v976
    %1447 = vmatpush.msra.mxu0 %v972
    %1448 = vmatmul.f32.gmra.mxu0 %v614
    %v1449 = vpop.f32.mrf.mxu0
    %v1450 = vadd.f32 %v1430, %v1449
    %1451 = vdwg.mxu0
    %1452 = vmatpush.msra.mxu0 %v1096
    %1453 = vmatpush.msra.mxu0 %v1092
    %1454 = vmatpush.msra.mxu0 %v1088
    %1455 = vmatpush.msra.mxu0 %v1084
    %1456 = vmatpush.msra.mxu0 %v1080
    %1457 = vmatpush.msra.mxu0 %v1076
    %1458 = vmatpush.msra.mxu0 %v1072
    %1459 = vmatpush.msra.mxu0 %v1068
    %1460 = vmatpush.msra.mxu0 %v1064
    %1461 = vmatpush.msra.mxu0 %v1060
    %1462 = vmatpush.msra.mxu0 %v1056
    %1463 = vmatpush.msra.mxu0 %v1052
    %1464 = vmatpush.msra.mxu0 %v1048
    %1465 = vmatpush.msra.mxu0 %v1044
    %1466 = vmatpush.msra.mxu0 %v1040
    %1467 = vmatpush.msra.mxu0 %v1036
    %1468 = vmatmul.f32.gmra.mxu0 %v694
    %v1469 = vpop.f32.mrf.mxu0
    %v1470 = vadd.f32 %v1450, %v1469
    %1471 = vdwg.mxu0
    %1472 = vmatpush.msra.mxu0 %v1160
    %1473 = vmatpush.msra.mxu0 %v1156
    %1474 = vmatpush.msra.mxu0 %v1152
    %1475 = vmatpush.msra.mxu0 %v1148
    %1476 = vmatpush.msra.mxu0 %v1144
    %1477 = vmatpush.msra.mxu0 %v1140
    %1478 = vmatpush.msra.mxu0 %v1136
    %1479 = vmatpush.msra.mxu0 %v1132
    %1480 = vmatpush.msra.mxu0 %v1128
    %1481 = vmatpush.msra.mxu0 %v1124
    %1482 = vmatpush.msra.mxu0 %v1120
    %1483 = vmatpush.msra.mxu0 %v1116
    %1484 = vmatpush.msra.mxu0 %v1112
    %1485 = vmatpush.msra.mxu0 %v1108
    %1486 = vmatpush.msra.mxu0 %v1104
    %1487 = vmatpush.msra.mxu0 %v1100
    %1488 = vmatmul.f32.gmra.mxu0 %v774
    %v1489 = vpop.f32.mrf.mxu0
    %v1490 = vadd.f32 %v1470, %v1489
    %1491 = vdwg.mxu0
    %s1492 = scalar_lea.vmem [#allocation5], 2048
    %v1493 = vld [vmem:[%s1492] sm:$0xff]
    %v1494 = vld [vmem:[%s1492 + $0x8] sm:$0xff]
    %v1495 = vld [vmem:[%s1492 + $0x10] sm:$0xff]
    %v1496 = vld [vmem:[%s1492 + $0x18] sm:$0xff]
    %v1497 = vld [vmem:[%s1492 + $0x20] sm:$0xff]
    %v1498 = vld [vmem:[%s1492 + $0x28] sm:$0xff]
    %v1499 = vld [vmem:[%s1492 + $0x30] sm:$0xff]
    %v1500 = vld [vmem:[%s1492 + $0x38] sm:$0xff]
    %v1501 = vld [vmem:[%s1492 + $0x40] sm:$0xff]
    %v1502 = vld [vmem:[%s1492 + $0x48] sm:$0xff]
    %v1503 = vld [vmem:[%s1492 + $0x50] sm:$0xff]
    %v1504 = vld [vmem:[%s1492 + $0x58] sm:$0xff]
    %v1505 = vld [vmem:[%s1492 + $0x60] sm:$0xff]
    %v1506 = vld [vmem:[%s1492 + $0x68] sm:$0xff]
    %v1507 = vld [vmem:[%s1492 + $0x70] sm:$0xff]
    %v1508 = vld [vmem:[%s1492 + $0x78] sm:$0xff]
    %v1509 = vld [vmem:[%s1492 + $0x80] sm:$0xff]
    %v1510 = vld [vmem:[%s1492 + $0x88] sm:$0xff]
    %v1511 = vld [vmem:[%s1492 + $0x90] sm:$0xff]
    %v1512 = vld [vmem:[%s1492 + $0x98] sm:$0xff]
    %v1513 = vld [vmem:[%s1492 + $0xa0] sm:$0xff]
    %v1514 = vld [vmem:[%s1492 + $0xa8] sm:$0xff]
    %v1515 = vld [vmem:[%s1492 + $0xb0] sm:$0xff]
    %v1516 = vld [vmem:[%s1492 + $0xb8] sm:$0xff]
    %v1517 = vld [vmem:[%s1492 + $0xc0] sm:$0xff]
    %v1518 = vld [vmem:[%s1492 + $0xc8] sm:$0xff]
    %v1519 = vld [vmem:[%s1492 + $0xd0] sm:$0xff]
    %v1520 = vld [vmem:[%s1492 + $0xd8] sm:$0xff]
    %v1521 = vld [vmem:[%s1492 + $0xe0] sm:$0xff]
    %v1522 = vld [vmem:[%s1492 + $0xe8] sm:$0xff]
    %v1523 = vld [vmem:[%s1492 + $0xf0] sm:$0xff]
    %v1524 = vld [vmem:[%s1492 + $0xf8] sm:$0xff]
    %v1525 = vld [vmem:[%s1492 + $0x100] sm:$0xff]
    %v1526 = vld [vmem:[%s1492 + $0x108] sm:$0xff]
    %v1527 = vld [vmem:[%s1492 + $0x110] sm:$0xff]
    %v1528 = vld [vmem:[%s1492 + $0x118] sm:$0xff]
    %v1529 = vld [vmem:[%s1492 + $0x120] sm:$0xff]
    %v1530 = vld [vmem:[%s1492 + $0x128] sm:$0xff]
    %v1531 = vld [vmem:[%s1492 + $0x130] sm:$0xff]
    %v1532 = vld [vmem:[%s1492 + $0x138] sm:$0xff]
    %v1533 = vld [vmem:[%s1492 + $0x140] sm:$0xff]
    %v1534 = vld [vmem:[%s1492 + $0x148] sm:$0xff]
    %v1535 = vld [vmem:[%s1492 + $0x150] sm:$0xff]
    %v1536 = vld [vmem:[%s1492 + $0x158] sm:$0xff]
    %v1537 = vld [vmem:[%s1492 + $0x160] sm:$0xff]
    %v1538 = vld [vmem:[%s1492 + $0x168] sm:$0xff]
    %v1539 = vld [vmem:[%s1492 + $0x170] sm:$0xff]
    %v1540 = vld [vmem:[%s1492 + $0x178] sm:$0xff]
    %v1541 = vld [vmem:[%s1492 + $0x180] sm:$0xff]
    %v1542 = vld [vmem:[%s1492 + $0x188] sm:$0xff]
    %v1543 = vld [vmem:[%s1492 + $0x190] sm:$0xff]
    %v1544 = vld [vmem:[%s1492 + $0x198] sm:$0xff]
    %v1545 = vld [vmem:[%s1492 + $0x1a0] sm:$0xff]
    %v1546 = vld [vmem:[%s1492 + $0x1a8] sm:$0xff]
    %v1547 = vld [vmem:[%s1492 + $0x1b0] sm:$0xff]
    %v1548 = vld [vmem:[%s1492 + $0x1b8] sm:$0xff]
    %v1549 = vld [vmem:[%s1492 + $0x1c0] sm:$0xff]
    %v1550 = vld [vmem:[%s1492 + $0x1c8] sm:$0xff]
    %v1551 = vld [vmem:[%s1492 + $0x1d0] sm:$0xff]
    %v1552 = vld [vmem:[%s1492 + $0x1d8] sm:$0xff]
    %v1553 = vld [vmem:[%s1492 + $0x1e0] sm:$0xff]
    %v1554 = vld [vmem:[%s1492 + $0x1e8] sm:$0xff]
    %v1555 = vld [vmem:[%s1492 + $0x1f0] sm:$0xff]
    %v1556 = vld [vmem:[%s1492 + $0x1f8] sm:$0xff]
    %v1557 = vld [vmem:[%s1492 + $0x200] sm:$0xff]
    %v1558 = vld [vmem:[%s1492 + $0x208] sm:$0xff]
    %v1559 = vld [vmem:[%s1492 + $0x210] sm:$0xff]
    %v1560 = vld [vmem:[%s1492 + $0x218] sm:$0xff]
    %v1561 = vld [vmem:[%s1492 + $0x220] sm:$0xff]
    %v1562 = vld [vmem:[%s1492 + $0x228] sm:$0xff]
    %v1563 = vld [vmem:[%s1492 + $0x230] sm:$0xff]
    %v1564 = vld [vmem:[%s1492 + $0x238] sm:$0xff]
    %v1565 = vld [vmem:[%s1492 + $0x240] sm:$0xff]
    %v1566 = vld [vmem:[%s1492 + $0x248] sm:$0xff]
    %v1567 = vld [vmem:[%s1492 + $0x250] sm:$0xff]
    %v1568 = vld [vmem:[%s1492 + $0x258] sm:$0xff]
    %v1569 = vld [vmem:[%s1492 + $0x260] sm:$0xff]
    %v1570 = vld [vmem:[%s1492 + $0x268] sm:$0xff]
    %v1571 = vld [vmem:[%s1492 + $0x270] sm:$0xff]
    %v1572 = vld [vmem:[%s1492 + $0x278] sm:$0xff]
    %v1573 = vld [vmem:[%s1492 + $0x280] sm:$0xff]
    %v1574 = vld [vmem:[%s1492 + $0x288] sm:$0xff]
    %v1575 = vld [vmem:[%s1492 + $0x290] sm:$0xff]
    %v1576 = vld [vmem:[%s1492 + $0x298] sm:$0xff]
    %v1577 = vld [vmem:[%s1492 + $0x2a0] sm:$0xff]
    %v1578 = vld [vmem:[%s1492 + $0x2a8] sm:$0xff]
    %v1579 = vld [vmem:[%s1492 + $0x2b0] sm:$0xff]
    %v1580 = vld [vmem:[%s1492 + $0x2b8] sm:$0xff]
    %v1581 = vld [vmem:[%s1492 + $0x2c0] sm:$0xff]
    %v1582 = vld [vmem:[%s1492 + $0x2c8] sm:$0xff]
    %v1583 = vld [vmem:[%s1492 + $0x2d0] sm:$0xff]
    %v1584 = vld [vmem:[%s1492 + $0x2d8] sm:$0xff]
    %v1585 = vld [vmem:[%s1492 + $0x2e0] sm:$0xff]
    %v1586 = vld [vmem:[%s1492 + $0x2e8] sm:$0xff]
    %v1587 = vld [vmem:[%s1492 + $0x2f0] sm:$0xff]
    %v1588 = vld [vmem:[%s1492 + $0x2f8] sm:$0xff]
    %v1589 = vld [vmem:[%s1492 + $0x300] sm:$0xff]
    %v1590 = vld [vmem:[%s1492 + $0x308] sm:$0xff]
    %v1591 = vld [vmem:[%s1492 + $0x310] sm:$0xff]
    %v1592 = vld [vmem:[%s1492 + $0x318] sm:$0xff]
    %v1593 = vld [vmem:[%s1492 + $0x320] sm:$0xff]
    %v1594 = vld [vmem:[%s1492 + $0x328] sm:$0xff]
    %v1595 = vld [vmem:[%s1492 + $0x330] sm:$0xff]
    %v1596 = vld [vmem:[%s1492 + $0x338] sm:$0xff]
    %v1597 = vld [vmem:[%s1492 + $0x340] sm:$0xff]
    %v1598 = vld [vmem:[%s1492 + $0x348] sm:$0xff]
    %v1599 = vld [vmem:[%s1492 + $0x350] sm:$0xff]
    %v1600 = vld [vmem:[%s1492 + $0x358] sm:$0xff]
    %v1601 = vld [vmem:[%s1492 + $0x360] sm:$0xff]
    %v1602 = vld [vmem:[%s1492 + $0x368] sm:$0xff]
    %v1603 = vld [vmem:[%s1492 + $0x370] sm:$0xff]
    %v1604 = vld [vmem:[%s1492 + $0x378] sm:$0xff]
    %v1605 = vld [vmem:[%s1492 + $0x380] sm:$0xff]
    %v1606 = vld [vmem:[%s1492 + $0x388] sm:$0xff]
    %v1607 = vld [vmem:[%s1492 + $0x390] sm:$0xff]
    %v1608 = vld [vmem:[%s1492 + $0x398] sm:$0xff]
    %v1609 = vld [vmem:[%s1492 + $0x3a0] sm:$0xff]
    %v1610 = vld [vmem:[%s1492 + $0x3a8] sm:$0xff]
    %v1611 = vld [vmem:[%s1492 + $0x3b0] sm:$0xff]
    %v1612 = vld [vmem:[%s1492 + $0x3b8] sm:$0xff]
    %v1613 = vld [vmem:[%s1492 + $0x3c0] sm:$0xff]
    %v1614 = vld [vmem:[%s1492 + $0x3c8] sm:$0xff]
    %v1615 = vld [vmem:[%s1492 + $0x3d0] sm:$0xff]
    %v1616 = vld [vmem:[%s1492 + $0x3d8] sm:$0xff]
    %v1617 = vld [vmem:[%s1492 + $0x3e0] sm:$0xff]
    %v1618 = vld [vmem:[%s1492 + $0x3e8] sm:$0xff]
    %v1619 = vld [vmem:[%s1492 + $0x3f0] sm:$0xff]
    %v1620 = vld [vmem:[%s1492 + $0x3f8] sm:$0xff]
    %v1621 = vunpack.c.l.bf16 %v1493
    %v1622 = vunpack.c.h.bf16 %v1493
    %v1623 = vunpack.c.l.bf16 %v1494
    %v1624 = vunpack.c.h.bf16 %v1494
    %v1625 = vunpack.c.l.bf16 %v1495
    %v1626 = vunpack.c.h.bf16 %v1495
    %v1627 = vunpack.c.l.bf16 %v1496
    %v1628 = vunpack.c.h.bf16 %v1496
    %v1629 = vunpack.c.l.bf16 %v1497
    %v1630 = vunpack.c.h.bf16 %v1497
    %v1631 = vunpack.c.l.bf16 %v1498
    %v1632 = vunpack.c.h.bf16 %v1498
    %v1633 = vunpack.c.l.bf16 %v1499
    %v1634 = vunpack.c.h.bf16 %v1499
    %v1635 = vunpack.c.l.bf16 %v1500
    %v1636 = vunpack.c.h.bf16 %v1500
    %v1637 = vunpack.c.l.bf16 %v1501
    %v1638 = vunpack.c.h.bf16 %v1501
    %v1639 = vunpack.c.l.bf16 %v1502
    %v1640 = vunpack.c.h.bf16 %v1502
    %v1641 = vunpack.c.l.bf16 %v1503
    %v1642 = vunpack.c.h.bf16 %v1503
    %v1643 = vunpack.c.l.bf16 %v1504
    %v1644 = vunpack.c.h.bf16 %v1504
    %v1645 = vunpack.c.l.bf16 %v1505
    %v1646 = vunpack.c.h.bf16 %v1505
    %v1647 = vunpack.c.l.bf16 %v1506
    %v1648 = vunpack.c.h.bf16 %v1506
    %v1649 = vunpack.c.l.bf16 %v1507
    %v1650 = vunpack.c.h.bf16 %v1507
    %v1651 = vunpack.c.l.bf16 %v1508
    %v1652 = vunpack.c.h.bf16 %v1508
    %v1653 = vunpack.c.l.bf16 %v1509
    %v1654 = vunpack.c.h.bf16 %v1509
    %v1655 = vunpack.c.l.bf16 %v1510
    %v1656 = vunpack.c.h.bf16 %v1510
    %v1657 = vunpack.c.l.bf16 %v1511
    %v1658 = vunpack.c.h.bf16 %v1511
    %v1659 = vunpack.c.l.bf16 %v1512
    %v1660 = vunpack.c.h.bf16 %v1512
    %v1661 = vunpack.c.l.bf16 %v1513
    %v1662 = vunpack.c.h.bf16 %v1513
    %v1663 = vunpack.c.l.bf16 %v1514
    %v1664 = vunpack.c.h.bf16 %v1514
    %v1665 = vunpack.c.l.bf16 %v1515
    %v1666 = vunpack.c.h.bf16 %v1515
    %v1667 = vunpack.c.l.bf16 %v1516
    %v1668 = vunpack.c.h.bf16 %v1516
    %v1669 = vunpack.c.l.bf16 %v1517
    %v1670 = vunpack.c.h.bf16 %v1517
    %v1671 = vunpack.c.l.bf16 %v1518
    %v1672 = vunpack.c.h.bf16 %v1518
    %v1673 = vunpack.c.l.bf16 %v1519
    %v1674 = vunpack.c.h.bf16 %v1519
    %v1675 = vunpack.c.l.bf16 %v1520
    %v1676 = vunpack.c.h.bf16 %v1520
    %v1677 = vunpack.c.l.bf16 %v1521
    %v1678 = vunpack.c.h.bf16 %v1521
    %v1679 = vunpack.c.l.bf16 %v1522
    %v1680 = vunpack.c.h.bf16 %v1522
    %v1681 = vunpack.c.l.bf16 %v1523
    %v1682 = vunpack.c.h.bf16 %v1523
    %v1683 = vunpack.c.l.bf16 %v1524
    %v1684 = vunpack.c.h.bf16 %v1524
    %v1685 = vunpack.c.l.bf16 %v1525
    %v1686 = vunpack.c.h.bf16 %v1525
    %v1687 = vunpack.c.l.bf16 %v1526
    %v1688 = vunpack.c.h.bf16 %v1526
    %v1689 = vunpack.c.l.bf16 %v1527
    %v1690 = vunpack.c.h.bf16 %v1527
    %v1691 = vunpack.c.l.bf16 %v1528
    %v1692 = vunpack.c.h.bf16 %v1528
    %v1693 = vunpack.c.l.bf16 %v1529
    %v1694 = vunpack.c.h.bf16 %v1529
    %v1695 = vunpack.c.l.bf16 %v1530
    %v1696 = vunpack.c.h.bf16 %v1530
    %v1697 = vunpack.c.l.bf16 %v1531
    %v1698 = vunpack.c.h.bf16 %v1531
    %v1699 = vunpack.c.l.bf16 %v1532
    %v1700 = vunpack.c.h.bf16 %v1532
    %v1701 = vunpack.c.l.bf16 %v1533
    %v1702 = vunpack.c.h.bf16 %v1533
    %v1703 = vunpack.c.l.bf16 %v1534
    %v1704 = vunpack.c.h.bf16 %v1534
    %v1705 = vunpack.c.l.bf16 %v1535
    %v1706 = vunpack.c.h.bf16 %v1535
    %v1707 = vunpack.c.l.bf16 %v1536
    %v1708 = vunpack.c.h.bf16 %v1536
    %v1709 = vunpack.c.l.bf16 %v1537
    %v1710 = vunpack.c.h.bf16 %v1537
    %v1711 = vunpack.c.l.bf16 %v1538
    %v1712 = vunpack.c.h.bf16 %v1538
    %v1713 = vunpack.c.l.bf16 %v1539
    %v1714 = vunpack.c.h.bf16 %v1539
    %v1715 = vunpack.c.l.bf16 %v1540
    %v1716 = vunpack.c.h.bf16 %v1540
    %v1717 = vunpack.c.l.bf16 %v1541
    %v1718 = vunpack.c.h.bf16 %v1541
    %v1719 = vunpack.c.l.bf16 %v1542
    %v1720 = vunpack.c.h.bf16 %v1542
    %v1721 = vunpack.c.l.bf16 %v1543
    %v1722 = vunpack.c.h.bf16 %v1543
    %v1723 = vunpack.c.l.bf16 %v1544
    %v1724 = vunpack.c.h.bf16 %v1544
    %v1725 = vunpack.c.l.bf16 %v1545
    %v1726 = vunpack.c.h.bf16 %v1545
    %v1727 = vunpack.c.l.bf16 %v1546
    %v1728 = vunpack.c.h.bf16 %v1546
    %v1729 = vunpack.c.l.bf16 %v1547
    %v1730 = vunpack.c.h.bf16 %v1547
    %v1731 = vunpack.c.l.bf16 %v1548
    %v1732 = vunpack.c.h.bf16 %v1548
    %v1733 = vunpack.c.l.bf16 %v1549
    %v1734 = vunpack.c.h.bf16 %v1549
    %v1735 = vunpack.c.l.bf16 %v1550
    %v1736 = vunpack.c.h.bf16 %v1550
    %v1737 = vunpack.c.l.bf16 %v1551
    %v1738 = vunpack.c.h.bf16 %v1551
    %v1739 = vunpack.c.l.bf16 %v1552
    %v1740 = vunpack.c.h.bf16 %v1552
    %v1741 = vunpack.c.l.bf16 %v1553
    %v1742 = vunpack.c.h.bf16 %v1553
    %v1743 = vunpack.c.l.bf16 %v1554
    %v1744 = vunpack.c.h.bf16 %v1554
    %v1745 = vunpack.c.l.bf16 %v1555
    %v1746 = vunpack.c.h.bf16 %v1555
    %v1747 = vunpack.c.l.bf16 %v1556
    %v1748 = vunpack.c.h.bf16 %v1556
    %v1749 = vunpack.c.l.bf16 %v1557
    %v1750 = vunpack.c.h.bf16 %v1557
    %v1751 = vunpack.c.l.bf16 %v1558
    %v1752 = vunpack.c.h.bf16 %v1558
    %v1753 = vunpack.c.l.bf16 %v1559
    %v1754 = vunpack.c.h.bf16 %v1559
    %v1755 = vunpack.c.l.bf16 %v1560
    %v1756 = vunpack.c.h.bf16 %v1560
    %v1757 = vunpack.c.l.bf16 %v1561
    %v1758 = vunpack.c.h.bf16 %v1561
    %v1759 = vunpack.c.l.bf16 %v1562
    %v1760 = vunpack.c.h.bf16 %v1562
    %v1761 = vunpack.c.l.bf16 %v1563
    %v1762 = vunpack.c.h.bf16 %v1563
    %v1763 = vunpack.c.l.bf16 %v1564
    %v1764 = vunpack.c.h.bf16 %v1564
    %v1765 = vunpack.c.l.bf16 %v1565
    %v1766 = vunpack.c.h.bf16 %v1565
    %v1767 = vunpack.c.l.bf16 %v1566
    %v1768 = vunpack.c.h.bf16 %v1566
    %v1769 = vunpack.c.l.bf16 %v1567
    %v1770 = vunpack.c.h.bf16 %v1567
    %v1771 = vunpack.c.l.bf16 %v1568
    %v1772 = vunpack.c.h.bf16 %v1568
    %v1773 = vunpack.c.l.bf16 %v1569
    %v1774 = vunpack.c.h.bf16 %v1569
    %v1775 = vunpack.c.l.bf16 %v1570
    %v1776 = vunpack.c.h.bf16 %v1570
    %v1777 = vunpack.c.l.bf16 %v1571
    %v1778 = vunpack.c.h.bf16 %v1571
    %v1779 = vunpack.c.l.bf16 %v1572
    %v1780 = vunpack.c.h.bf16 %v1572
    %v1781 = vunpack.c.l.bf16 %v1573
    %v1782 = vunpack.c.h.bf16 %v1573
    %v1783 = vunpack.c.l.bf16 %v1574
    %v1784 = vunpack.c.h.bf16 %v1574
    %v1785 = vunpack.c.l.bf16 %v1575
    %v1786 = vunpack.c.h.bf16 %v1575
    %v1787 = vunpack.c.l.bf16 %v1576
    %v1788 = vunpack.c.h.bf16 %v1576
    %v1789 = vunpack.c.l.bf16 %v1577
    %v1790 = vunpack.c.h.bf16 %v1577
    %v1791 = vunpack.c.l.bf16 %v1578
    %v1792 = vunpack.c.h.bf16 %v1578
    %v1793 = vunpack.c.l.bf16 %v1579
    %v1794 = vunpack.c.h.bf16 %v1579
    %v1795 = vunpack.c.l.bf16 %v1580
    %v1796 = vunpack.c.h.bf16 %v1580
    %v1797 = vunpack.c.l.bf16 %v1581
    %v1798 = vunpack.c.h.bf16 %v1581
    %v1799 = vunpack.c.l.bf16 %v1582
    %v1800 = vunpack.c.h.bf16 %v1582
    %v1801 = vunpack.c.l.bf16 %v1583
    %v1802 = vunpack.c.h.bf16 %v1583
    %v1803 = vunpack.c.l.bf16 %v1584
    %v1804 = vunpack.c.h.bf16 %v1584
    %v1805 = vunpack.c.l.bf16 %v1585
    %v1806 = vunpack.c.h.bf16 %v1585
    %v1807 = vunpack.c.l.bf16 %v1586
    %v1808 = vunpack.c.h.bf16 %v1586
    %v1809 = vunpack.c.l.bf16 %v1587
    %v1810 = vunpack.c.h.bf16 %v1587
    %v1811 = vunpack.c.l.bf16 %v1588
    %v1812 = vunpack.c.h.bf16 %v1588
    %v1813 = vunpack.c.l.bf16 %v1589
    %v1814 = vunpack.c.h.bf16 %v1589
    %v1815 = vunpack.c.l.bf16 %v1590
    %v1816 = vunpack.c.h.bf16 %v1590
    %v1817 = vunpack.c.l.bf16 %v1591
    %v1818 = vunpack.c.h.bf16 %v1591
    %v1819 = vunpack.c.l.bf16 %v1592
    %v1820 = vunpack.c.h.bf16 %v1592
    %v1821 = vunpack.c.l.bf16 %v1593
    %v1822 = vunpack.c.h.bf16 %v1593
    %v1823 = vunpack.c.l.bf16 %v1594
    %v1824 = vunpack.c.h.bf16 %v1594
    %v1825 = vunpack.c.l.bf16 %v1595
    %v1826 = vunpack.c.h.bf16 %v1595
    %v1827 = vunpack.c.l.bf16 %v1596
    %v1828 = vunpack.c.h.bf16 %v1596
    %v1829 = vunpack.c.l.bf16 %v1597
    %v1830 = vunpack.c.h.bf16 %v1597
    %v1831 = vunpack.c.l.bf16 %v1598
    %v1832 = vunpack.c.h.bf16 %v1598
    %v1833 = vunpack.c.l.bf16 %v1599
    %v1834 = vunpack.c.h.bf16 %v1599
    %v1835 = vunpack.c.l.bf16 %v1600
    %v1836 = vunpack.c.h.bf16 %v1600
    %v1837 = vunpack.c.l.bf16 %v1601
    %v1838 = vunpack.c.h.bf16 %v1601
    %v1839 = vunpack.c.l.bf16 %v1602
    %v1840 = vunpack.c.h.bf16 %v1602
    %v1841 = vunpack.c.l.bf16 %v1603
    %v1842 = vunpack.c.h.bf16 %v1603
    %v1843 = vunpack.c.l.bf16 %v1604
    %v1844 = vunpack.c.h.bf16 %v1604
    %v1845 = vunpack.c.l.bf16 %v1605
    %v1846 = vunpack.c.h.bf16 %v1605
    %v1847 = vunpack.c.l.bf16 %v1606
    %v1848 = vunpack.c.h.bf16 %v1606
    %v1849 = vunpack.c.l.bf16 %v1607
    %v1850 = vunpack.c.h.bf16 %v1607
    %v1851 = vunpack.c.l.bf16 %v1608
    %v1852 = vunpack.c.h.bf16 %v1608
    %v1853 = vunpack.c.l.bf16 %v1609
    %v1854 = vunpack.c.h.bf16 %v1609
    %v1855 = vunpack.c.l.bf16 %v1610
    %v1856 = vunpack.c.h.bf16 %v1610
    %v1857 = vunpack.c.l.bf16 %v1611
    %v1858 = vunpack.c.h.bf16 %v1611
    %v1859 = vunpack.c.l.bf16 %v1612
    %v1860 = vunpack.c.h.bf16 %v1612
    %v1861 = vunpack.c.l.bf16 %v1613
    %v1862 = vunpack.c.h.bf16 %v1613
    %v1863 = vunpack.c.l.bf16 %v1614
    %v1864 = vunpack.c.h.bf16 %v1614
    %v1865 = vunpack.c.l.bf16 %v1615
    %v1866 = vunpack.c.h.bf16 %v1615
    %v1867 = vunpack.c.l.bf16 %v1616
    %v1868 = vunpack.c.h.bf16 %v1616
    %v1869 = vunpack.c.l.bf16 %v1617
    %v1870 = vunpack.c.h.bf16 %v1617
    %v1871 = vunpack.c.l.bf16 %v1618
    %v1872 = vunpack.c.h.bf16 %v1618
    %v1873 = vunpack.c.l.bf16 %v1619
    %v1874 = vunpack.c.h.bf16 %v1619
    %v1875 = vunpack.c.l.bf16 %v1620
    %v1876 = vunpack.c.h.bf16 %v1620
    %s1877 = scalar_lea.vmem [#allocation7], 2
    %v1878 = vld [vmem:[%s1877] ss:$8 sm:$0xf]
    %v1880 = vperm.slane %v1878, 0
    %v1881 = vperm.slane %v1878, 1
    %v1882 = vperm.slane %v1878, 2
    %v1883 = vperm.slane %v1878, 3
    %1888 = vmatpush.msra.mxu0 %v1681
    %1889 = vmatpush.msra.mxu0 %v1677
    %1890 = vmatpush.msra.mxu0 %v1673
    %1891 = vmatpush.msra.mxu0 %v1669
    %1892 = vmatpush.msra.mxu0 %v1665
    %1893 = vmatpush.msra.mxu0 %v1661
    %1894 = vmatpush.msra.mxu0 %v1657
    %1895 = vmatpush.msra.mxu0 %v1653
    %1896 = vmatpush.msra.mxu0 %v1649
    %1897 = vmatpush.msra.mxu0 %v1645
    %1898 = vmatpush.msra.mxu0 %v1641
    %1899 = vmatpush.msra.mxu0 %v1637
    %1900 = vmatpush.msra.mxu0 %v1633
    %1901 = vmatpush.msra.mxu0 %v1629
    %1902 = vmatpush.msra.mxu0 %v1625
    %1903 = vmatpush.msra.mxu0 %v1621
    %1904 = vmatmul.f32.gmra.mxu0 %v1250
    %v1905 = vpop.f32.mrf.mxu0
    %v1906 = vadd.f32 %v1880, %v1905
    %1907 = vdwg.mxu0
    %1908 = vmatpush.msra.mxu0 %v1745
    %1909 = vmatpush.msra.mxu0 %v1741
    %1910 = vmatpush.msra.mxu0 %v1737
    %1911 = vmatpush.msra.mxu0 %v1733
    %1912 = vmatpush.msra.mxu0 %v1729
    %1913 = vmatpush.msra.mxu0 %v1725
    %1914 = vmatpush.msra.mxu0 %v1721
    %1915 = vmatpush.msra.mxu0 %v1717
    %1916 = vmatpush.msra.mxu0 %v1713
    %1917 = vmatpush.msra.mxu0 %v1709
    %1918 = vmatpush.msra.mxu0 %v1705
    %1919 = vmatpush.msra.mxu0 %v1701
    %1920 = vmatpush.msra.mxu0 %v1697
    %1921 = vmatpush.msra.mxu0 %v1693
    %1922 = vmatpush.msra.mxu0 %v1689
    %1923 = vmatpush.msra.mxu0 %v1685
    %1924 = vmatmul.f32.gmra.mxu0 %v1330
    %v1925 = vpop.f32.mrf.mxu0
    %v1926 = vadd.f32 %v1906, %v1925
    %1927 = vdwg.mxu0
    %1928 = vmatpush.msra.mxu0 %v1809
    %1929 = vmatpush.msra.mxu0 %v1805
    %1930 = vmatpush.msra.mxu0 %v1801
    %1931 = vmatpush.msra.mxu0 %v1797
    %1932 = vmatpush.msra.mxu0 %v1793
    %1933 = vmatpush.msra.mxu0 %v1789
    %1934 = vmatpush.msra.mxu0 %v1785
    %1935 = vmatpush.msra.mxu0 %v1781
    %1936 = vmatpush.msra.mxu0 %v1777
    %1937 = vmatpush.msra.mxu0 %v1773
    %1938 = vmatpush.msra.mxu0 %v1769
    %1939 = vmatpush.msra.mxu0 %v1765
    %1940 = vmatpush.msra.mxu0 %v1761
    %1941 = vmatpush.msra.mxu0 %v1757
    %1942 = vmatpush.msra.mxu0 %v1753
    %1943 = vmatpush.msra.mxu0 %v1749
    %1944 = vmatmul.f32.gmra.mxu0 %v1410
    %v1945 = vpop.f32.mrf.mxu0
    %v1946 = vadd.f32 %v1926, %v1945
    %1947 = vdwg.mxu0
    %1948 = vmatpush.msra.mxu0 %v1873
    %1949 = vmatpush.msra.mxu0 %v1869
    %1950 = vmatpush.msra.mxu0 %v1865
    %1951 = vmatpush.msra.mxu0 %v1861
    %1952 = vmatpush.msra.mxu0 %v1857
    %1953 = vmatpush.msra.mxu0 %v1853
    %1954 = vmatpush.msra.mxu0 %v1849
    %1955 = vmatpush.msra.mxu0 %v1845
    %1956 = vmatpush.msra.mxu0 %v1841
    %1957 = vmatpush.msra.mxu0 %v1837
    %1958 = vmatpush.msra.mxu0 %v1833
    %1959 = vmatpush.msra.mxu0 %v1829
    %1960 = vmatpush.msra.mxu0 %v1825
    %1961 = vmatpush.msra.mxu0 %v1821
    %1962 = vmatpush.msra.mxu0 %v1817
    %1963 = vmatpush.msra.mxu0 %v1813
    %1964 = vmatmul.f32.gmra.mxu0 %v1490
    %v1965 = vpop.f32.mrf.mxu0
    %v1966 = vadd.f32 %v1946, %v1965
    %1967 = vdwg.mxu0
    %1968 = vmatpush.msra.mxu0 %v1682
    %1969 = vmatpush.msra.mxu0 %v1678
    %1970 = vmatpush.msra.mxu0 %v1674
    %1971 = vmatpush.msra.mxu0 %v1670
    %1972 = vmatpush.msra.mxu0 %v1666
    %1973 = vmatpush.msra.mxu0 %v1662
    %1974 = vmatpush.msra.mxu0 %v1658
    %1975 = vmatpush.msra.mxu0 %v1654
    %1976 = vmatpush.msra.mxu0 %v1650
    %1977 = vmatpush.msra.mxu0 %v1646
    %1978 = vmatpush.msra.mxu0 %v1642
    %1979 = vmatpush.msra.mxu0 %v1638
    %1980 = vmatpush.msra.mxu0 %v1634
    %1981 = vmatpush.msra.mxu0 %v1630
    %1982 = vmatpush.msra.mxu0 %v1626
    %1983 = vmatpush.msra.mxu0 %v1622
    %1984 = vmatmul.f32.gmra.mxu0 %v1250
    %v1985 = vpop.f32.mrf.mxu0
    %v1986 = vadd.f32 %v1881, %v1985
    %1987 = vdwg.mxu0
    %1988 = vmatpush.msra.mxu0 %v1746
    %1989 = vmatpush.msra.mxu0 %v1742
    %1990 = vmatpush.msra.mxu0 %v1738
    %1991 = vmatpush.msra.mxu0 %v1734
    %1992 = vmatpush.msra.mxu0 %v1730
    %1993 = vmatpush.msra.mxu0 %v1726
    %1994 = vmatpush.msra.mxu0 %v1722
    %1995 = vmatpush.msra.mxu0 %v1718
    %1996 = vmatpush.msra.mxu0 %v1714
    %1997 = vmatpush.msra.mxu0 %v1710
    %1998 = vmatpush.msra.mxu0 %v1706
    %1999 = vmatpush.msra.mxu0 %v1702
    %2000 = vmatpush.msra.mxu0 %v1698
    %2001 = vmatpush.msra.mxu0 %v1694
    %2002 = vmatpush.msra.mxu0 %v1690
    %2003 = vmatpush.msra.mxu0 %v1686
    %2004 = vmatmul.f32.gmra.mxu0 %v1330
    %v2005 = vpop.f32.mrf.mxu0
    %v2006 = vadd.f32 %v1986, %v2005
    %2007 = vdwg.mxu0
    %2008 = vmatpush.msra.mxu0 %v1810
    %2009 = vmatpush.msra.mxu0 %v1806
    %2010 = vmatpush.msra.mxu0 %v1802
    %2011 = vmatpush.msra.mxu0 %v1798
    %2012 = vmatpush.msra.mxu0 %v1794
    %2013 = vmatpush.msra.mxu0 %v1790
    %2014 = vmatpush.msra.mxu0 %v1786
    %2015 = vmatpush.msra.mxu0 %v1782
    %2016 = vmatpush.msra.mxu0 %v1778
    %2017 = vmatpush.msra.mxu0 %v1774
    %2018 = vmatpush.msra.mxu0 %v1770
    %2019 = vmatpush.msra.mxu0 %v1766
    %2020 = vmatpush.msra.mxu0 %v1762
    %2021 = vmatpush.msra.mxu0 %v1758
    %2022 = vmatpush.msra.mxu0 %v1754
    %2023 = vmatpush.msra.mxu0 %v1750
    %2024 = vmatmul.f32.gmra.mxu0 %v1410
    %v2025 = vpop.f32.mrf.mxu0
    %v2026 = vadd.f32 %v2006, %v2025
    %2027 = vdwg.mxu0
    %2028 = vmatpush.msra.mxu0 %v1874
    %2029 = vmatpush.msra.mxu0 %v1870
    %2030 = vmatpush.msra.mxu0 %v1866
    %2031 = vmatpush.msra.mxu0 %v1862
    %2032 = vmatpush.msra.mxu0 %v1858
    %2033 = vmatpush.msra.mxu0 %v1854
    %2034 = vmatpush.msra.mxu0 %v1850
    %2035 = vmatpush.msra.mxu0 %v1846
    %2036 = vmatpush.msra.mxu0 %v1842
    %2037 = vmatpush.msra.mxu0 %v1838
    %2038 = vmatpush.msra.mxu0 %v1834
    %2039 = vmatpush.msra.mxu0 %v1830
    %2040 = vmatpush.msra.mxu0 %v1826
    %2041 = vmatpush.msra.mxu0 %v1822
    %2042 = vmatpush.msra.mxu0 %v1818
    %2043 = vmatpush.msra.mxu0 %v1814
    %2044 = vmatmul.f32.gmra.mxu0 %v1490
    %v2045 = vpop.f32.mrf.mxu0
    %v2046 = vadd.f32 %v2026, %v2045
    %2047 = vdwg.mxu0
    %2048 = vmatpush.msra.mxu0 %v1683
    %2049 = vmatpush.msra.mxu0 %v1679
    %2050 = vmatpush.msra.mxu0 %v1675
    %2051 = vmatpush.msra.mxu0 %v1671
    %2052 = vmatpush.msra.mxu0 %v1667
    %2053 = vmatpush.msra.mxu0 %v1663
    %2054 = vmatpush.msra.mxu0 %v1659
    %2055 = vmatpush.msra.mxu0 %v1655
    %2056 = vmatpush.msra.mxu0 %v1651
    %2057 = vmatpush.msra.mxu0 %v1647
    %2058 = vmatpush.msra.mxu0 %v1643
    %2059 = vmatpush.msra.mxu0 %v1639
    %2060 = vmatpush.msra.mxu0 %v1635
    %2061 = vmatpush.msra.mxu0 %v1631
    %2062 = vmatpush.msra.mxu0 %v1627
    %2063 = vmatpush.msra.mxu0 %v1623
    %2064 = vmatmul.f32.gmra.mxu0 %v1250
    %v2065 = vpop.f32.mrf.mxu0
    %v2066 = vadd.f32 %v1882, %v2065
    %2067 = vdwg.mxu0
    %2068 = vmatpush.msra.mxu0 %v1747
    %2069 = vmatpush.msra.mxu0 %v1743
    %2070 = vmatpush.msra.mxu0 %v1739
    %2071 = vmatpush.msra.mxu0 %v1735
    %2072 = vmatpush.msra.mxu0 %v1731
    %2073 = vmatpush.msra.mxu0 %v1727
    %2074 = vmatpush.msra.mxu0 %v1723
    %2075 = vmatpush.msra.mxu0 %v1719
    %2076 = vmatpush.msra.mxu0 %v1715
    %2077 = vmatpush.msra.mxu0 %v1711
    %2078 = vmatpush.msra.mxu0 %v1707
    %2079 = vmatpush.msra.mxu0 %v1703
    %2080 = vmatpush.msra.mxu0 %v1699
    %2081 = vmatpush.msra.mxu0 %v1695
    %2082 = vmatpush.msra.mxu0 %v1691
    %2083 = vmatpush.msra.mxu0 %v1687
    %2084 = vmatmul.f32.gmra.mxu0 %v1330
    %v2085 = vpop.f32.mrf.mxu0
    %v2086 = vadd.f32 %v2066, %v2085
    %2087 = vdwg.mxu0
    %2088 = vmatpush.msra.mxu0 %v1811
    %2089 = vmatpush.msra.mxu0 %v1807
    %2090 = vmatpush.msra.mxu0 %v1803
    %2091 = vmatpush.msra.mxu0 %v1799
    %2092 = vmatpush.msra.mxu0 %v1795
    %2093 = vmatpush.msra.mxu0 %v1791
    %2094 = vmatpush.msra.mxu0 %v1787
    %2095 = vmatpush.msra.mxu0 %v1783
    %2096 = vmatpush.msra.mxu0 %v1779
    %2097 = vmatpush.msra.mxu0 %v1775
    %2098 = vmatpush.msra.mxu0 %v1771
    %2099 = vmatpush.msra.mxu0 %v1767
    %2100 = vmatpush.msra.mxu0 %v1763
    %2101 = vmatpush.msra.mxu0 %v1759
    %2102 = vmatpush.msra.mxu0 %v1755
    %2103 = vmatpush.msra.mxu0 %v1751
    %2104 = vmatmul.f32.gmra.mxu0 %v1410
    %v2105 = vpop.f32.mrf.mxu0
    %v2106 = vadd.f32 %v2086, %v2105
    %2107 = vdwg.mxu0
    %2108 = vmatpush.msra.mxu0 %v1875
    %2109 = vmatpush.msra.mxu0 %v1871
    %2110 = vmatpush.msra.mxu0 %v1867
    %2111 = vmatpush.msra.mxu0 %v1863
    %2112 = vmatpush.msra.mxu0 %v1859
    %2113 = vmatpush.msra.mxu0 %v1855
    %2114 = vmatpush.msra.mxu0 %v1851
    %2115 = vmatpush.msra.mxu0 %v1847
    %2116 = vmatpush.msra.mxu0 %v1843
    %2117 = vmatpush.msra.mxu0 %v1839
    %2118 = vmatpush.msra.mxu0 %v1835
    %2119 = vmatpush.msra.mxu0 %v1831
    %2120 = vmatpush.msra.mxu0 %v1827
    %2121 = vmatpush.msra.mxu0 %v1823
    %2122 = vmatpush.msra.mxu0 %v1819
    %2123 = vmatpush.msra.mxu0 %v1815
    %2124 = vmatmul.f32.gmra.mxu0 %v1490
    %v2125 = vpop.f32.mrf.mxu0
    %v2126 = vadd.f32 %v2106, %v2125
    %2127 = vdwg.mxu0
    %2128 = vmatpush.msra.mxu0 %v1684
    %2129 = vmatpush.msra.mxu0 %v1680
    %2130 = vmatpush.msra.mxu0 %v1676
    %2131 = vmatpush.msra.mxu0 %v1672
    %2132 = vmatpush.msra.mxu0 %v1668
    %2133 = vmatpush.msra.mxu0 %v1664
    %2134 = vmatpush.msra.mxu0 %v1660
    %2135 = vmatpush.msra.mxu0 %v1656
    %2136 = vmatpush.msra.mxu0 %v1652
    %2137 = vmatpush.msra.mxu0 %v1648
    %2138 = vmatpush.msra.mxu0 %v1644
    %2139 = vmatpush.msra.mxu0 %v1640
    %2140 = vmatpush.msra.mxu0 %v1636
    %2141 = vmatpush.msra.mxu0 %v1632
    %2142 = vmatpush.msra.mxu0 %v1628
    %2143 = vmatpush.msra.mxu0 %v1624
    %2144 = vmatmul.f32.gmra.mxu0 %v1250
    %v2145 = vpop.f32.mrf.mxu0
    %v2146 = vadd.f32 %v1883, %v2145
    %2147 = vdwg.mxu0
    %2148 = vmatpush.msra.mxu0 %v1748
    %2149 = vmatpush.msra.mxu0 %v1744
    %2150 = vmatpush.msra.mxu0 %v1740
    %2151 = vmatpush.msra.mxu0 %v1736
    %2152 = vmatpush.msra.mxu0 %v1732
    %2153 = vmatpush.msra.mxu0 %v1728
    %2154 = vmatpush.msra.mxu0 %v1724
    %2155 = vmatpush.msra.mxu0 %v1720
    %2156 = vmatpush.msra.mxu0 %v1716
    %2157 = vmatpush.msra.mxu0 %v1712
    %2158 = vmatpush.msra.mxu0 %v1708
    %2159 = vmatpush.msra.mxu0 %v1704
    %2160 = vmatpush.msra.mxu0 %v1700
    %2161 = vmatpush.msra.mxu0 %v1696
    %2162 = vmatpush.msra.mxu0 %v1692
    %2163 = vmatpush.msra.mxu0 %v1688
    %2164 = vmatmul.f32.gmra.mxu0 %v1330
    %v2165 = vpop.f32.mrf.mxu0
    %v2166 = vadd.f32 %v2146, %v2165
    %2167 = vdwg.mxu0
    %2168 = vmatpush.msra.mxu0 %v1812
    %2169 = vmatpush.msra.mxu0 %v1808
    %2170 = vmatpush.msra.mxu0 %v1804
    %2171 = vmatpush.msra.mxu0 %v1800
    %2172 = vmatpush.msra.mxu0 %v1796
    %2173 = vmatpush.msra.mxu0 %v1792
    %2174 = vmatpush.msra.mxu0 %v1788
    %2175 = vmatpush.msra.mxu0 %v1784
    %2176 = vmatpush.msra.mxu0 %v1780
    %2177 = vmatpush.msra.mxu0 %v1776
    %2178 = vmatpush.msra.mxu0 %v1772
    %2179 = vmatpush.msra.mxu0 %v1768
    %2180 = vmatpush.msra.mxu0 %v1764
    %2181 = vmatpush.msra.mxu0 %v1760
    %2182 = vmatpush.msra.mxu0 %v1756
    %2183 = vmatpush.msra.mxu0 %v1752
    %2184 = vmatmul.f32.gmra.mxu0 %v1410
    %v2185 = vpop.f32.mrf.mxu0
    %v2186 = vadd.f32 %v2166, %v2185
    %2187 = vdwg.mxu0
    %2188 = vmatpush.msra.mxu0 %v1876
    %2189 = vmatpush.msra.mxu0 %v1872
    %2190 = vmatpush.msra.mxu0 %v1868
    %2191 = vmatpush.msra.mxu0 %v1864
    %2192 = vmatpush.msra.mxu0 %v1860
    %2193 = vmatpush.msra.mxu0 %v1856
    %2194 = vmatpush.msra.mxu0 %v1852
    %2195 = vmatpush.msra.mxu0 %v1848
    %2196 = vmatpush.msra.mxu0 %v1844
    %2197 = vmatpush.msra.mxu0 %v1840
    %2198 = vmatpush.msra.mxu0 %v1836
    %2199 = vmatpush.msra.mxu0 %v1832
    %2200 = vmatpush.msra.mxu0 %v1828
    %2201 = vmatpush.msra.mxu0 %v1824
    %2202 = vmatpush.msra.mxu0 %v1820
    %2203 = vmatpush.msra.mxu0 %v1816
    %2204 = vmatmul.f32.gmra.mxu0 %v1490
    %v2205 = vpop.f32.mrf.mxu0
    %v2206 = vadd.f32 %v2186, %v2205
    %2207 = vdwg.mxu0
    %s2208 = scalar_lea.vmem [#allocation5], 3072
    %v2209 = vld [vmem:[%s2208] sm:$0xff]
    %v2210 = vld [vmem:[%s2208 + $0x8] sm:$0xff]
    %v2211 = vld [vmem:[%s2208 + $0x10] sm:$0xff]
    %v2212 = vld [vmem:[%s2208 + $0x18] sm:$0xff]
    %v2213 = vld [vmem:[%s2208 + $0x20] sm:$0xff]
    %v2214 = vld [vmem:[%s2208 + $0x28] sm:$0xff]
    %v2215 = vld [vmem:[%s2208 + $0x30] sm:$0xff]
    %v2216 = vld [vmem:[%s2208 + $0x38] sm:$0xff]
    %v2217 = vld [vmem:[%s2208 + $0x40] sm:$0xff]
    %v2218 = vld [vmem:[%s2208 + $0x48] sm:$0xff]
    %v2219 = vld [vmem:[%s2208 + $0x50] sm:$0xff]
    %v2220 = vld [vmem:[%s2208 + $0x58] sm:$0xff]
    %v2221 = vld [vmem:[%s2208 + $0x60] sm:$0xff]
    %v2222 = vld [vmem:[%s2208 + $0x68] sm:$0xff]
    %v2223 = vld [vmem:[%s2208 + $0x70] sm:$0xff]
    %v2224 = vld [vmem:[%s2208 + $0x78] sm:$0xff]
    %v2225 = vld [vmem:[%s2208 + $0x80] sm:$0xff]
    %v2226 = vld [vmem:[%s2208 + $0x88] sm:$0xff]
    %v2227 = vld [vmem:[%s2208 + $0x90] sm:$0xff]
    %v2228 = vld [vmem:[%s2208 + $0x98] sm:$0xff]
    %v2229 = vld [vmem:[%s2208 + $0xa0] sm:$0xff]
    %v2230 = vld [vmem:[%s2208 + $0xa8] sm:$0xff]
    %v2231 = vld [vmem:[%s2208 + $0xb0] sm:$0xff]
    %v2232 = vld [vmem:[%s2208 + $0xb8] sm:$0xff]
    %v2233 = vld [vmem:[%s2208 + $0xc0] sm:$0xff]
    %v2234 = vld [vmem:[%s2208 + $0xc8] sm:$0xff]
    %v2235 = vld [vmem:[%s2208 + $0xd0] sm:$0xff]
    %v2236 = vld [vmem:[%s2208 + $0xd8] sm:$0xff]
    %v2237 = vld [vmem:[%s2208 + $0xe0] sm:$0xff]
    %v2238 = vld [vmem:[%s2208 + $0xe8] sm:$0xff]
    %v2239 = vld [vmem:[%s2208 + $0xf0] sm:$0xff]
    %v2240 = vld [vmem:[%s2208 + $0xf8] sm:$0xff]
    %v2241 = vld [vmem:[%s2208 + $0x100] sm:$0xff]
    %v2242 = vld [vmem:[%s2208 + $0x108] sm:$0xff]
    %v2243 = vld [vmem:[%s2208 + $0x110] sm:$0xff]
    %v2244 = vld [vmem:[%s2208 + $0x118] sm:$0xff]
    %v2245 = vld [vmem:[%s2208 + $0x120] sm:$0xff]
    %v2246 = vld [vmem:[%s2208 + $0x128] sm:$0xff]
    %v2247 = vld [vmem:[%s2208 + $0x130] sm:$0xff]
    %v2248 = vld [vmem:[%s2208 + $0x138] sm:$0xff]
    %v2249 = vld [vmem:[%s2208 + $0x140] sm:$0xff]
    %v2250 = vld [vmem:[%s2208 + $0x148] sm:$0xff]
    %v2251 = vld [vmem:[%s2208 + $0x150] sm:$0xff]
    %v2252 = vld [vmem:[%s2208 + $0x158] sm:$0xff]
    %v2253 = vld [vmem:[%s2208 + $0x160] sm:$0xff]
    %v2254 = vld [vmem:[%s2208 + $0x168] sm:$0xff]
    %v2255 = vld [vmem:[%s2208 + $0x170] sm:$0xff]
    %v2256 = vld [vmem:[%s2208 + $0x178] sm:$0xff]
    %v2257 = vld [vmem:[%s2208 + $0x180] sm:$0xff]
    %v2258 = vld [vmem:[%s2208 + $0x188] sm:$0xff]
    %v2259 = vld [vmem:[%s2208 + $0x190] sm:$0xff]
    %v2260 = vld [vmem:[%s2208 + $0x198] sm:$0xff]
    %v2261 = vld [vmem:[%s2208 + $0x1a0] sm:$0xff]
    %v2262 = vld [vmem:[%s2208 + $0x1a8] sm:$0xff]
    %v2263 = vld [vmem:[%s2208 + $0x1b0] sm:$0xff]
    %v2264 = vld [vmem:[%s2208 + $0x1b8] sm:$0xff]
    %v2265 = vld [vmem:[%s2208 + $0x1c0] sm:$0xff]
    %v2266 = vld [vmem:[%s2208 + $0x1c8] sm:$0xff]
    %v2267 = vld [vmem:[%s2208 + $0x1d0] sm:$0xff]
    %v2268 = vld [vmem:[%s2208 + $0x1d8] sm:$0xff]
    %v2269 = vld [vmem:[%s2208 + $0x1e0] sm:$0xff]
    %v2270 = vld [vmem:[%s2208 + $0x1e8] sm:$0xff]
    %v2271 = vld [vmem:[%s2208 + $0x1f0] sm:$0xff]
    %v2272 = vld [vmem:[%s2208 + $0x1f8] sm:$0xff]
    %v2273 = vld [vmem:[%s2208 + $0x200] sm:$0xff]
    %v2274 = vld [vmem:[%s2208 + $0x208] sm:$0xff]
    %v2275 = vld [vmem:[%s2208 + $0x210] sm:$0xff]
    %v2276 = vld [vmem:[%s2208 + $0x218] sm:$0xff]
    %v2277 = vld [vmem:[%s2208 + $0x220] sm:$0xff]
    %v2278 = vld [vmem:[%s2208 + $0x228] sm:$0xff]
    %v2279 = vld [vmem:[%s2208 + $0x230] sm:$0xff]
    %v2280 = vld [vmem:[%s2208 + $0x238] sm:$0xff]
    %v2281 = vld [vmem:[%s2208 + $0x240] sm:$0xff]
    %v2282 = vld [vmem:[%s2208 + $0x248] sm:$0xff]
    %v2283 = vld [vmem:[%s2208 + $0x250] sm:$0xff]
    %v2284 = vld [vmem:[%s2208 + $0x258] sm:$0xff]
    %v2285 = vld [vmem:[%s2208 + $0x260] sm:$0xff]
    %v2286 = vld [vmem:[%s2208 + $0x268] sm:$0xff]
    %v2287 = vld [vmem:[%s2208 + $0x270] sm:$0xff]
    %v2288 = vld [vmem:[%s2208 + $0x278] sm:$0xff]
    %v2289 = vld [vmem:[%s2208 + $0x280] sm:$0xff]
    %v2290 = vld [vmem:[%s2208 + $0x288] sm:$0xff]
    %v2291 = vld [vmem:[%s2208 + $0x290] sm:$0xff]
    %v2292 = vld [vmem:[%s2208 + $0x298] sm:$0xff]
    %v2293 = vld [vmem:[%s2208 + $0x2a0] sm:$0xff]
    %v2294 = vld [vmem:[%s2208 + $0x2a8] sm:$0xff]
    %v2295 = vld [vmem:[%s2208 + $0x2b0] sm:$0xff]
    %v2296 = vld [vmem:[%s2208 + $0x2b8] sm:$0xff]
    %v2297 = vld [vmem:[%s2208 + $0x2c0] sm:$0xff]
    %v2298 = vld [vmem:[%s2208 + $0x2c8] sm:$0xff]
    %v2299 = vld [vmem:[%s2208 + $0x2d0] sm:$0xff]
    %v2300 = vld [vmem:[%s2208 + $0x2d8] sm:$0xff]
    %v2301 = vld [vmem:[%s2208 + $0x2e0] sm:$0xff]
    %v2302 = vld [vmem:[%s2208 + $0x2e8] sm:$0xff]
    %v2303 = vld [vmem:[%s2208 + $0x2f0] sm:$0xff]
    %v2304 = vld [vmem:[%s2208 + $0x2f8] sm:$0xff]
    %v2305 = vld [vmem:[%s2208 + $0x300] sm:$0xff]
    %v2306 = vld [vmem:[%s2208 + $0x308] sm:$0xff]
    %v2307 = vld [vmem:[%s2208 + $0x310] sm:$0xff]
    %v2308 = vld [vmem:[%s2208 + $0x318] sm:$0xff]
    %v2309 = vld [vmem:[%s2208 + $0x320] sm:$0xff]
    %v2310 = vld [vmem:[%s2208 + $0x328] sm:$0xff]
    %v2311 = vld [vmem:[%s2208 + $0x330] sm:$0xff]
    %v2312 = vld [vmem:[%s2208 + $0x338] sm:$0xff]
    %v2313 = vld [vmem:[%s2208 + $0x340] sm:$0xff]
    %v2314 = vld [vmem:[%s2208 + $0x348] sm:$0xff]
    %v2315 = vld [vmem:[%s2208 + $0x350] sm:$0xff]
    %v2316 = vld [vmem:[%s2208 + $0x358] sm:$0xff]
    %v2317 = vld [vmem:[%s2208 + $0x360] sm:$0xff]
    %v2318 = vld [vmem:[%s2208 + $0x368] sm:$0xff]
    %v2319 = vld [vmem:[%s2208 + $0x370] sm:$0xff]
    %v2320 = vld [vmem:[%s2208 + $0x378] sm:$0xff]
    %v2321 = vld [vmem:[%s2208 + $0x380] sm:$0xff]
    %v2322 = vld [vmem:[%s2208 + $0x388] sm:$0xff]
    %v2323 = vld [vmem:[%s2208 + $0x390] sm:$0xff]
    %v2324 = vld [vmem:[%s2208 + $0x398] sm:$0xff]
    %v2325 = vld [vmem:[%s2208 + $0x3a0] sm:$0xff]
    %v2326 = vld [vmem:[%s2208 + $0x3a8] sm:$0xff]
    %v2327 = vld [vmem:[%s2208 + $0x3b0] sm:$0xff]
    %v2328 = vld [vmem:[%s2208 + $0x3b8] sm:$0xff]
    %v2329 = vld [vmem:[%s2208 + $0x3c0] sm:$0xff]
    %v2330 = vld [vmem:[%s2208 + $0x3c8] sm:$0xff]
    %v2331 = vld [vmem:[%s2208 + $0x3d0] sm:$0xff]
    %v2332 = vld [vmem:[%s2208 + $0x3d8] sm:$0xff]
    %v2333 = vld [vmem:[%s2208 + $0x3e0] sm:$0xff]
    %v2334 = vld [vmem:[%s2208 + $0x3e8] sm:$0xff]
    %v2335 = vld [vmem:[%s2208 + $0x3f0] sm:$0xff]
    %v2336 = vld [vmem:[%s2208 + $0x3f8] sm:$0xff]
    %v2337 = vunpack.c.l.bf16 %v2209
    %v2338 = vunpack.c.h.bf16 %v2209
    %v2339 = vunpack.c.l.bf16 %v2210
    %v2340 = vunpack.c.h.bf16 %v2210
    %v2341 = vunpack.c.l.bf16 %v2211
    %v2342 = vunpack.c.h.bf16 %v2211
    %v2343 = vunpack.c.l.bf16 %v2212
    %v2344 = vunpack.c.h.bf16 %v2212
    %v2345 = vunpack.c.l.bf16 %v2213
    %v2346 = vunpack.c.h.bf16 %v2213
    %v2347 = vunpack.c.l.bf16 %v2214
    %v2348 = vunpack.c.h.bf16 %v2214
    %v2349 = vunpack.c.l.bf16 %v2215
    %v2350 = vunpack.c.h.bf16 %v2215
    %v2351 = vunpack.c.l.bf16 %v2216
    %v2352 = vunpack.c.h.bf16 %v2216
    %v2353 = vunpack.c.l.bf16 %v2217
    %v2354 = vunpack.c.h.bf16 %v2217
    %v2355 = vunpack.c.l.bf16 %v2218
    %v2356 = vunpack.c.h.bf16 %v2218
    %v2357 = vunpack.c.l.bf16 %v2219
    %v2358 = vunpack.c.h.bf16 %v2219
    %v2359 = vunpack.c.l.bf16 %v2220
    %v2360 = vunpack.c.h.bf16 %v2220
    %v2361 = vunpack.c.l.bf16 %v2221
    %v2362 = vunpack.c.h.bf16 %v2221
    %v2363 = vunpack.c.l.bf16 %v2222
    %v2364 = vunpack.c.h.bf16 %v2222
    %v2365 = vunpack.c.l.bf16 %v2223
    %v2366 = vunpack.c.h.bf16 %v2223
    %v2367 = vunpack.c.l.bf16 %v2224
    %v2368 = vunpack.c.h.bf16 %v2224
    %v2369 = vunpack.c.l.bf16 %v2225
    %v2370 = vunpack.c.h.bf16 %v2225
    %v2371 = vunpack.c.l.bf16 %v2226
    %v2372 = vunpack.c.h.bf16 %v2226
    %v2373 = vunpack.c.l.bf16 %v2227
    %v2374 = vunpack.c.h.bf16 %v2227
    %v2375 = vunpack.c.l.bf16 %v2228
    %v2376 = vunpack.c.h.bf16 %v2228
    %v2377 = vunpack.c.l.bf16 %v2229
    %v2378 = vunpack.c.h.bf16 %v2229
    %v2379 = vunpack.c.l.bf16 %v2230
    %v2380 = vunpack.c.h.bf16 %v2230
    %v2381 = vunpack.c.l.bf16 %v2231
    %v2382 = vunpack.c.h.bf16 %v2231
    %v2383 = vunpack.c.l.bf16 %v2232
    %v2384 = vunpack.c.h.bf16 %v2232
    %v2385 = vunpack.c.l.bf16 %v2233
    %v2386 = vunpack.c.h.bf16 %v2233
    %v2387 = vunpack.c.l.bf16 %v2234
    %v2388 = vunpack.c.h.bf16 %v2234
    %v2389 = vunpack.c.l.bf16 %v2235
    %v2390 = vunpack.c.h.bf16 %v2235
    %v2391 = vunpack.c.l.bf16 %v2236
    %v2392 = vunpack.c.h.bf16 %v2236
    %v2393 = vunpack.c.l.bf16 %v2237
    %v2394 = vunpack.c.h.bf16 %v2237
    %v2395 = vunpack.c.l.bf16 %v2238
    %v2396 = vunpack.c.h.bf16 %v2238
    %v2397 = vunpack.c.l.bf16 %v2239
    %v2398 = vunpack.c.h.bf16 %v2239
    %v2399 = vunpack.c.l.bf16 %v2240
    %v2400 = vunpack.c.h.bf16 %v2240
    %v2401 = vunpack.c.l.bf16 %v2241
    %v2402 = vunpack.c.h.bf16 %v2241
    %v2403 = vunpack.c.l.bf16 %v2242
    %v2404 = vunpack.c.h.bf16 %v2242
    %v2405 = vunpack.c.l.bf16 %v2243
    %v2406 = vunpack.c.h.bf16 %v2243
    %v2407 = vunpack.c.l.bf16 %v2244
    %v2408 = vunpack.c.h.bf16 %v2244
    %v2409 = vunpack.c.l.bf16 %v2245
    %v2410 = vunpack.c.h.bf16 %v2245
    %v2411 = vunpack.c.l.bf16 %v2246
    %v2412 = vunpack.c.h.bf16 %v2246
    %v2413 = vunpack.c.l.bf16 %v2247
    %v2414 = vunpack.c.h.bf16 %v2247
    %v2415 = vunpack.c.l.bf16 %v2248
    %v2416 = vunpack.c.h.bf16 %v2248
    %v2417 = vunpack.c.l.bf16 %v2249
    %v2418 = vunpack.c.h.bf16 %v2249
    %v2419 = vunpack.c.l.bf16 %v2250
    %v2420 = vunpack.c.h.bf16 %v2250
    %v2421 = vunpack.c.l.bf16 %v2251
    %v2422 = vunpack.c.h.bf16 %v2251
    %v2423 = vunpack.c.l.bf16 %v2252
    %v2424 = vunpack.c.h.bf16 %v2252
    %v2425 = vunpack.c.l.bf16 %v2253
    %v2426 = vunpack.c.h.bf16 %v2253
    %v2427 = vunpack.c.l.bf16 %v2254
    %v2428 = vunpack.c.h.bf16 %v2254
    %v2429 = vunpack.c.l.bf16 %v2255
    %v2430 = vunpack.c.h.bf16 %v2255
    %v2431 = vunpack.c.l.bf16 %v2256
    %v2432 = vunpack.c.h.bf16 %v2256
    %v2433 = vunpack.c.l.bf16 %v2257
    %v2434 = vunpack.c.h.bf16 %v2257
    %v2435 = vunpack.c.l.bf16 %v2258
    %v2436 = vunpack.c.h.bf16 %v2258
    %v2437 = vunpack.c.l.bf16 %v2259
    %v2438 = vunpack.c.h.bf16 %v2259
    %v2439 = vunpack.c.l.bf16 %v2260
    %v2440 = vunpack.c.h.bf16 %v2260
    %v2441 = vunpack.c.l.bf16 %v2261
    %v2442 = vunpack.c.h.bf16 %v2261
    %v2443 = vunpack.c.l.bf16 %v2262
    %v2444 = vunpack.c.h.bf16 %v2262
    %v2445 = vunpack.c.l.bf16 %v2263
    %v2446 = vunpack.c.h.bf16 %v2263
    %v2447 = vunpack.c.l.bf16 %v2264
    %v2448 = vunpack.c.h.bf16 %v2264
    %v2449 = vunpack.c.l.bf16 %v2265
    %v2450 = vunpack.c.h.bf16 %v2265
    %v2451 = vunpack.c.l.bf16 %v2266
    %v2452 = vunpack.c.h.bf16 %v2266
    %v2453 = vunpack.c.l.bf16 %v2267
    %v2454 = vunpack.c.h.bf16 %v2267
    %v2455 = vunpack.c.l.bf16 %v2268
    %v2456 = vunpack.c.h.bf16 %v2268
    %v2457 = vunpack.c.l.bf16 %v2269
    %v2458 = vunpack.c.h.bf16 %v2269
    %v2459 = vunpack.c.l.bf16 %v2270
    %v2460 = vunpack.c.h.bf16 %v2270
    %v2461 = vunpack.c.l.bf16 %v2271
    %v2462 = vunpack.c.h.bf16 %v2271
    %v2463 = vunpack.c.l.bf16 %v2272
    %v2464 = vunpack.c.h.bf16 %v2272
    %v2465 = vunpack.c.l.bf16 %v2273
    %v2466 = vunpack.c.h.bf16 %v2273
    %v2467 = vunpack.c.l.bf16 %v2274
    %v2468 = vunpack.c.h.bf16 %v2274
    %v2469 = vunpack.c.l.bf16 %v2275
    %v2470 = vunpack.c.h.bf16 %v2275
    %v2471 = vunpack.c.l.bf16 %v2276
    %v2472 = vunpack.c.h.bf16 %v2276
    %v2473 = vunpack.c.l.bf16 %v2277
    %v2474 = vunpack.c.h.bf16 %v2277
    %v2475 = vunpack.c.l.bf16 %v2278
    %v2476 = vunpack.c.h.bf16 %v2278
    %v2477 = vunpack.c.l.bf16 %v2279
    %v2478 = vunpack.c.h.bf16 %v2279
    %v2479 = vunpack.c.l.bf16 %v2280
    %v2480 = vunpack.c.h.bf16 %v2280
    %v2481 = vunpack.c.l.bf16 %v2281
    %v2482 = vunpack.c.h.bf16 %v2281
    %v2483 = vunpack.c.l.bf16 %v2282
    %v2484 = vunpack.c.h.bf16 %v2282
    %v2485 = vunpack.c.l.bf16 %v2283
    %v2486 = vunpack.c.h.bf16 %v2283
    %v2487 = vunpack.c.l.bf16 %v2284
    %v2488 = vunpack.c.h.bf16 %v2284
    %v2489 = vunpack.c.l.bf16 %v2285
    %v2490 = vunpack.c.h.bf16 %v2285
    %v2491 = vunpack.c.l.bf16 %v2286
    %v2492 = vunpack.c.h.bf16 %v2286
    %v2493 = vunpack.c.l.bf16 %v2287
    %v2494 = vunpack.c.h.bf16 %v2287
    %v2495 = vunpack.c.l.bf16 %v2288
    %v2496 = vunpack.c.h.bf16 %v2288
    %v2497 = vunpack.c.l.bf16 %v2289
    %v2498 = vunpack.c.h.bf16 %v2289
    %v2499 = vunpack.c.l.bf16 %v2290
    %v2500 = vunpack.c.h.bf16 %v2290
    %v2501 = vunpack.c.l.bf16 %v2291
    %v2502 = vunpack.c.h.bf16 %v2291
    %v2503 = vunpack.c.l.bf16 %v2292
    %v2504 = vunpack.c.h.bf16 %v2292
    %v2505 = vunpack.c.l.bf16 %v2293
    %v2506 = vunpack.c.h.bf16 %v2293
    %v2507 = vunpack.c.l.bf16 %v2294
    %v2508 = vunpack.c.h.bf16 %v2294
    %v2509 = vunpack.c.l.bf16 %v2295
    %v2510 = vunpack.c.h.bf16 %v2295
    %v2511 = vunpack.c.l.bf16 %v2296
    %v2512 = vunpack.c.h.bf16 %v2296
    %v2513 = vunpack.c.l.bf16 %v2297
    %v2514 = vunpack.c.h.bf16 %v2297
    %v2515 = vunpack.c.l.bf16 %v2298
    %v2516 = vunpack.c.h.bf16 %v2298
    %v2517 = vunpack.c.l.bf16 %v2299
    %v2518 = vunpack.c.h.bf16 %v2299
    %v2519 = vunpack.c.l.bf16 %v2300
    %v2520 = vunpack.c.h.bf16 %v2300
    %v2521 = vunpack.c.l.bf16 %v2301
    %v2522 = vunpack.c.h.bf16 %v2301
    %v2523 = vunpack.c.l.bf16 %v2302
    %v2524 = vunpack.c.h.bf16 %v2302
    %v2525 = vunpack.c.l.bf16 %v2303
    %v2526 = vunpack.c.h.bf16 %v2303
    %v2527 = vunpack.c.l.bf16 %v2304
    %v2528 = vunpack.c.h.bf16 %v2304
    %v2529 = vunpack.c.l.bf16 %v2305
    %v2530 = vunpack.c.h.bf16 %v2305
    %v2531 = vunpack.c.l.bf16 %v2306
    %v2532 = vunpack.c.h.bf16 %v2306
    %v2533 = vunpack.c.l.bf16 %v2307
    %v2534 = vunpack.c.h.bf16 %v2307
    %v2535 = vunpack.c.l.bf16 %v2308
    %v2536 = vunpack.c.h.bf16 %v2308
    %v2537 = vunpack.c.l.bf16 %v2309
    %v2538 = vunpack.c.h.bf16 %v2309
    %v2539 = vunpack.c.l.bf16 %v2310
    %v2540 = vunpack.c.h.bf16 %v2310
    %v2541 = vunpack.c.l.bf16 %v2311
    %v2542 = vunpack.c.h.bf16 %v2311
    %v2543 = vunpack.c.l.bf16 %v2312
    %v2544 = vunpack.c.h.bf16 %v2312
    %v2545 = vunpack.c.l.bf16 %v2313
    %v2546 = vunpack.c.h.bf16 %v2313
    %v2547 = vunpack.c.l.bf16 %v2314
    %v2548 = vunpack.c.h.bf16 %v2314
    %v2549 = vunpack.c.l.bf16 %v2315
    %v2550 = vunpack.c.h.bf16 %v2315
    %v2551 = vunpack.c.l.bf16 %v2316
    %v2552 = vunpack.c.h.bf16 %v2316
    %v2553 = vunpack.c.l.bf16 %v2317
    %v2554 = vunpack.c.h.bf16 %v2317
    %v2555 = vunpack.c.l.bf16 %v2318
    %v2556 = vunpack.c.h.bf16 %v2318
    %v2557 = vunpack.c.l.bf16 %v2319
    %v2558 = vunpack.c.h.bf16 %v2319
    %v2559 = vunpack.c.l.bf16 %v2320
    %v2560 = vunpack.c.h.bf16 %v2320
    %v2561 = vunpack.c.l.bf16 %v2321
    %v2562 = vunpack.c.h.bf16 %v2321
    %v2563 = vunpack.c.l.bf16 %v2322
    %v2564 = vunpack.c.h.bf16 %v2322
    %v2565 = vunpack.c.l.bf16 %v2323
    %v2566 = vunpack.c.h.bf16 %v2323
    %v2567 = vunpack.c.l.bf16 %v2324
    %v2568 = vunpack.c.h.bf16 %v2324
    %v2569 = vunpack.c.l.bf16 %v2325
    %v2570 = vunpack.c.h.bf16 %v2325
    %v2571 = vunpack.c.l.bf16 %v2326
    %v2572 = vunpack.c.h.bf16 %v2326
    %v2573 = vunpack.c.l.bf16 %v2327
    %v2574 = vunpack.c.h.bf16 %v2327
    %v2575 = vunpack.c.l.bf16 %v2328
    %v2576 = vunpack.c.h.bf16 %v2328
    %v2577 = vunpack.c.l.bf16 %v2329
    %v2578 = vunpack.c.h.bf16 %v2329
    %v2579 = vunpack.c.l.bf16 %v2330
    %v2580 = vunpack.c.h.bf16 %v2330
    %v2581 = vunpack.c.l.bf16 %v2331
    %v2582 = vunpack.c.h.bf16 %v2331
    %v2583 = vunpack.c.l.bf16 %v2332
    %v2584 = vunpack.c.h.bf16 %v2332
    %v2585 = vunpack.c.l.bf16 %v2333
    %v2586 = vunpack.c.h.bf16 %v2333
    %v2587 = vunpack.c.l.bf16 %v2334
    %v2588 = vunpack.c.h.bf16 %v2334
    %v2589 = vunpack.c.l.bf16 %v2335
    %v2590 = vunpack.c.h.bf16 %v2335
    %v2591 = vunpack.c.l.bf16 %v2336
    %v2592 = vunpack.c.h.bf16 %v2336
    %s2593 = scalar_lea.vmem [#allocation7], 3
    %v2594 = vld [vmem:[%s2593] ss:$8 sm:$0xf]
    %v2596 = vperm.slane %v2594, 0
    %v2597 = vperm.slane %v2594, 1
    %v2598 = vperm.slane %v2594, 2
    %v2599 = vperm.slane %v2594, 3
    %2604 = vmatpush.msra.mxu0 %v2397
    %2605 = vmatpush.msra.mxu0 %v2393
    %2606 = vmatpush.msra.mxu0 %v2389
    %2607 = vmatpush.msra.mxu0 %v2385
    %2608 = vmatpush.msra.mxu0 %v2381
    %2609 = vmatpush.msra.mxu0 %v2377
    %2610 = vmatpush.msra.mxu0 %v2373
    %2611 = vmatpush.msra.mxu0 %v2369
    %2612 = vmatpush.msra.mxu0 %v2365
    %2613 = vmatpush.msra.mxu0 %v2361
    %2614 = vmatpush.msra.mxu0 %v2357
    %2615 = vmatpush.msra.mxu0 %v2353
    %2616 = vmatpush.msra.mxu0 %v2349
    %2617 = vmatpush.msra.mxu0 %v2345
    %2618 = vmatpush.msra.mxu0 %v2341
    %2619 = vmatpush.msra.mxu0 %v2337
    %2620 = vmatmul.f32.gmra.mxu0 %v1966
    %v2621 = vpop.f32.mrf.mxu0
    %v2622 = vadd.f32 %v2596, %v2621
    %2623 = vdwg.mxu0
    %2624 = vmatpush.msra.mxu0 %v2461
    %2625 = vmatpush.msra.mxu0 %v2457
    %2626 = vmatpush.msra.mxu0 %v2453
    %2627 = vmatpush.msra.mxu0 %v2449
    %2628 = vmatpush.msra.mxu0 %v2445
    %2629 = vmatpush.msra.mxu0 %v2441
    %2630 = vmatpush.msra.mxu0 %v2437
    %2631 = vmatpush.msra.mxu0 %v2433
    %2632 = vmatpush.msra.mxu0 %v2429
    %2633 = vmatpush.msra.mxu0 %v2425
    %2634 = vmatpush.msra.mxu0 %v2421
    %2635 = vmatpush.msra.mxu0 %v2417
    %2636 = vmatpush.msra.mxu0 %v2413
    %2637 = vmatpush.msra.mxu0 %v2409
    %2638 = vmatpush.msra.mxu0 %v2405
    %2639 = vmatpush.msra.mxu0 %v2401
    %2640 = vmatmul.f32.gmra.mxu0 %v2046
    %v2641 = vpop.f32.mrf.mxu0
    %v2642 = vadd.f32 %v2622, %v2641
    %2643 = vdwg.mxu0
    %2644 = vmatpush.msra.mxu0 %v2525
    %2645 = vmatpush.msra.mxu0 %v2521
    %2646 = vmatpush.msra.mxu0 %v2517
    %2647 = vmatpush.msra.mxu0 %v2513
    %2648 = vmatpush.msra.mxu0 %v2509
    %2649 = vmatpush.msra.mxu0 %v2505
    %2650 = vmatpush.msra.mxu0 %v2501
    %2651 = vmatpush.msra.mxu0 %v2497
    %2652 = vmatpush.msra.mxu0 %v2493
    %2653 = vmatpush.msra.mxu0 %v2489
    %2654 = vmatpush.msra.mxu0 %v2485
    %2655 = vmatpush.msra.mxu0 %v2481
    %2656 = vmatpush.msra.mxu0 %v2477
    %2657 = vmatpush.msra.mxu0 %v2473
    %2658 = vmatpush.msra.mxu0 %v2469
    %2659 = vmatpush.msra.mxu0 %v2465
    %2660 = vmatmul.f32.gmra.mxu0 %v2126
    %v2661 = vpop.f32.mrf.mxu0
    %v2662 = vadd.f32 %v2642, %v2661
    %2663 = vdwg.mxu0
    %2664 = vmatpush.msra.mxu0 %v2589
    %2665 = vmatpush.msra.mxu0 %v2585
    %2666 = vmatpush.msra.mxu0 %v2581
    %2667 = vmatpush.msra.mxu0 %v2577
    %2668 = vmatpush.msra.mxu0 %v2573
    %2669 = vmatpush.msra.mxu0 %v2569
    %2670 = vmatpush.msra.mxu0 %v2565
    %2671 = vmatpush.msra.mxu0 %v2561
    %2672 = vmatpush.msra.mxu0 %v2557
    %2673 = vmatpush.msra.mxu0 %v2553
    %2674 = vmatpush.msra.mxu0 %v2549
    %2675 = vmatpush.msra.mxu0 %v2545
    %2676 = vmatpush.msra.mxu0 %v2541
    %2677 = vmatpush.msra.mxu0 %v2537
    %2678 = vmatpush.msra.mxu0 %v2533
    %2679 = vmatpush.msra.mxu0 %v2529
    %2680 = vmatmul.f32.gmra.mxu0 %v2206
    %v2681 = vpop.f32.mrf.mxu0
    %v2682 = vadd.f32 %v2662, %v2681
    %2683 = vdwg.mxu0
    %2684 = vmatpush.msra.mxu0 %v2398
    %2685 = vmatpush.msra.mxu0 %v2394
    %2686 = vmatpush.msra.mxu0 %v2390
    %2687 = vmatpush.msra.mxu0 %v2386
    %2688 = vmatpush.msra.mxu0 %v2382
    %2689 = vmatpush.msra.mxu0 %v2378
    %2690 = vmatpush.msra.mxu0 %v2374
    %2691 = vmatpush.msra.mxu0 %v2370
    %2692 = vmatpush.msra.mxu0 %v2366
    %2693 = vmatpush.msra.mxu0 %v2362
    %2694 = vmatpush.msra.mxu0 %v2358
    %2695 = vmatpush.msra.mxu0 %v2354
    %2696 = vmatpush.msra.mxu0 %v2350
    %2697 = vmatpush.msra.mxu0 %v2346
    %2698 = vmatpush.msra.mxu0 %v2342
    %2699 = vmatpush.msra.mxu0 %v2338
    %2700 = vmatmul.f32.gmra.mxu0 %v1966
    %v2701 = vpop.f32.mrf.mxu0
    %v2702 = vadd.f32 %v2597, %v2701
    %2703 = vdwg.mxu0
    %2704 = vmatpush.msra.mxu0 %v2462
    %2705 = vmatpush.msra.mxu0 %v2458
    %2706 = vmatpush.msra.mxu0 %v2454
    %2707 = vmatpush.msra.mxu0 %v2450
    %2708 = vmatpush.msra.mxu0 %v2446
    %2709 = vmatpush.msra.mxu0 %v2442
    %2710 = vmatpush.msra.mxu0 %v2438
    %2711 = vmatpush.msra.mxu0 %v2434
    %2712 = vmatpush.msra.mxu0 %v2430
    %2713 = vmatpush.msra.mxu0 %v2426
    %2714 = vmatpush.msra.mxu0 %v2422
    %2715 = vmatpush.msra.mxu0 %v2418
    %2716 = vmatpush.msra.mxu0 %v2414
    %2717 = vmatpush.msra.mxu0 %v2410
    %2718 = vmatpush.msra.mxu0 %v2406
    %2719 = vmatpush.msra.mxu0 %v2402
    %2720 = vmatmul.f32.gmra.mxu0 %v2046
    %v2721 = vpop.f32.mrf.mxu0
    %v2722 = vadd.f32 %v2702, %v2721
    %2723 = vdwg.mxu0
    %2724 = vmatpush.msra.mxu0 %v2526
    %2725 = vmatpush.msra.mxu0 %v2522
    %2726 = vmatpush.msra.mxu0 %v2518
    %2727 = vmatpush.msra.mxu0 %v2514
    %2728 = vmatpush.msra.mxu0 %v2510
    %2729 = vmatpush.msra.mxu0 %v2506
    %2730 = vmatpush.msra.mxu0 %v2502
    %2731 = vmatpush.msra.mxu0 %v2498
    %2732 = vmatpush.msra.mxu0 %v2494
    %2733 = vmatpush.msra.mxu0 %v2490
    %2734 = vmatpush.msra.mxu0 %v2486
    %2735 = vmatpush.msra.mxu0 %v2482
    %2736 = vmatpush.msra.mxu0 %v2478
    %2737 = vmatpush.msra.mxu0 %v2474
    %2738 = vmatpush.msra.mxu0 %v2470
    %2739 = vmatpush.msra.mxu0 %v2466
    %2740 = vmatmul.f32.gmra.mxu0 %v2126
    %v2741 = vpop.f32.mrf.mxu0
    %v2742 = vadd.f32 %v2722, %v2741
    %2743 = vdwg.mxu0
    %2744 = vmatpush.msra.mxu0 %v2590
    %2745 = vmatpush.msra.mxu0 %v2586
    %2746 = vmatpush.msra.mxu0 %v2582
    %2747 = vmatpush.msra.mxu0 %v2578
    %2748 = vmatpush.msra.mxu0 %v2574
    %2749 = vmatpush.msra.mxu0 %v2570
    %2750 = vmatpush.msra.mxu0 %v2566
    %2751 = vmatpush.msra.mxu0 %v2562
    %2752 = vmatpush.msra.mxu0 %v2558
    %2753 = vmatpush.msra.mxu0 %v2554
    %2754 = vmatpush.msra.mxu0 %v2550
    %2755 = vmatpush.msra.mxu0 %v2546
    %2756 = vmatpush.msra.mxu0 %v2542
    %2757 = vmatpush.msra.mxu0 %v2538
    %2758 = vmatpush.msra.mxu0 %v2534
    %2759 = vmatpush.msra.mxu0 %v2530
    %2760 = vmatmul.f32.gmra.mxu0 %v2206
    %v2761 = vpop.f32.mrf.mxu0
    %v2762 = vadd.f32 %v2742, %v2761
    %2763 = vdwg.mxu0
    %2764 = vmatpush.msra.mxu0 %v2399
    %2765 = vmatpush.msra.mxu0 %v2395
    %2766 = vmatpush.msra.mxu0 %v2391
    %2767 = vmatpush.msra.mxu0 %v2387
    %2768 = vmatpush.msra.mxu0 %v2383
    %2769 = vmatpush.msra.mxu0 %v2379
    %2770 = vmatpush.msra.mxu0 %v2375
    %2771 = vmatpush.msra.mxu0 %v2371
    %2772 = vmatpush.msra.mxu0 %v2367
    %2773 = vmatpush.msra.mxu0 %v2363
    %2774 = vmatpush.msra.mxu0 %v2359
    %2775 = vmatpush.msra.mxu0 %v2355
    %2776 = vmatpush.msra.mxu0 %v2351
    %2777 = vmatpush.msra.mxu0 %v2347
    %2778 = vmatpush.msra.mxu0 %v2343
    %2779 = vmatpush.msra.mxu0 %v2339
    %2780 = vmatmul.f32.gmra.mxu0 %v1966
    %v2781 = vpop.f32.mrf.mxu0
    %v2782 = vadd.f32 %v2598, %v2781
    %2783 = vdwg.mxu0
    %2784 = vmatpush.msra.mxu0 %v2463
    %2785 = vmatpush.msra.mxu0 %v2459
    %2786 = vmatpush.msra.mxu0 %v2455
    %2787 = vmatpush.msra.mxu0 %v2451
    %2788 = vmatpush.msra.mxu0 %v2447
    %2789 = vmatpush.msra.mxu0 %v2443
    %2790 = vmatpush.msra.mxu0 %v2439
    %2791 = vmatpush.msra.mxu0 %v2435
    %2792 = vmatpush.msra.mxu0 %v2431
    %2793 = vmatpush.msra.mxu0 %v2427
    %2794 = vmatpush.msra.mxu0 %v2423
    %2795 = vmatpush.msra.mxu0 %v2419
    %2796 = vmatpush.msra.mxu0 %v2415
    %2797 = vmatpush.msra.mxu0 %v2411
    %2798 = vmatpush.msra.mxu0 %v2407
    %2799 = vmatpush.msra.mxu0 %v2403
    %2800 = vmatmul.f32.gmra.mxu0 %v2046
    %v2801 = vpop.f32.mrf.mxu0
    %v2802 = vadd.f32 %v2782, %v2801
    %2803 = vdwg.mxu0
    %2804 = vmatpush.msra.mxu0 %v2527
    %2805 = vmatpush.msra.mxu0 %v2523
    %2806 = vmatpush.msra.mxu0 %v2519
    %2807 = vmatpush.msra.mxu0 %v2515
    %2808 = vmatpush.msra.mxu0 %v2511
    %2809 = vmatpush.msra.mxu0 %v2507
    %2810 = vmatpush.msra.mxu0 %v2503
    %2811 = vmatpush.msra.mxu0 %v2499
    %2812 = vmatpush.msra.mxu0 %v2495
    %2813 = vmatpush.msra.mxu0 %v2491
    %2814 = vmatpush.msra.mxu0 %v2487
    %2815 = vmatpush.msra.mxu0 %v2483
    %2816 = vmatpush.msra.mxu0 %v2479
    %2817 = vmatpush.msra.mxu0 %v2475
    %2818 = vmatpush.msra.mxu0 %v2471
    %2819 = vmatpush.msra.mxu0 %v2467
    %2820 = vmatmul.f32.gmra.mxu0 %v2126
    %v2821 = vpop.f32.mrf.mxu0
    %v2822 = vadd.f32 %v2802, %v2821
    %2823 = vdwg.mxu0
    %2824 = vmatpush.msra.mxu0 %v2591
    %2825 = vmatpush.msra.mxu0 %v2587
    %2826 = vmatpush.msra.mxu0 %v2583
    %2827 = vmatpush.msra.mxu0 %v2579
    %2828 = vmatpush.msra.mxu0 %v2575
    %2829 = vmatpush.msra.mxu0 %v2571
    %2830 = vmatpush.msra.mxu0 %v2567
    %2831 = vmatpush.msra.mxu0 %v2563
    %2832 = vmatpush.msra.mxu0 %v2559
    %2833 = vmatpush.msra.mxu0 %v2555
    %2834 = vmatpush.msra.mxu0 %v2551
    %2835 = vmatpush.msra.mxu0 %v2547
    %2836 = vmatpush.msra.mxu0 %v2543
    %2837 = vmatpush.msra.mxu0 %v2539
    %2838 = vmatpush.msra.mxu0 %v2535
    %2839 = vmatpush.msra.mxu0 %v2531
    %2840 = vmatmul.f32.gmra.mxu0 %v2206
    %v2841 = vpop.f32.mrf.mxu0
    %v2842 = vadd.f32 %v2822, %v2841
    %2843 = vdwg.mxu0
    %2844 = vmatpush.msra.mxu0 %v2400
    %2845 = vmatpush.msra.mxu0 %v2396
    %2846 = vmatpush.msra.mxu0 %v2392
    %2847 = vmatpush.msra.mxu0 %v2388
    %2848 = vmatpush.msra.mxu0 %v2384
    %2849 = vmatpush.msra.mxu0 %v2380
    %2850 = vmatpush.msra.mxu0 %v2376
    %2851 = vmatpush.msra.mxu0 %v2372
    %2852 = vmatpush.msra.mxu0 %v2368
    %2853 = vmatpush.msra.mxu0 %v2364
    %2854 = vmatpush.msra.mxu0 %v2360
    %2855 = vmatpush.msra.mxu0 %v2356
    %2856 = vmatpush.msra.mxu0 %v2352
    %2857 = vmatpush.msra.mxu0 %v2348
    %2858 = vmatpush.msra.mxu0 %v2344
    %2859 = vmatpush.msra.mxu0 %v2340
    %2860 = vmatmul.f32.gmra.mxu0 %v1966
    %v2861 = vpop.f32.mrf.mxu0
    %v2862 = vadd.f32 %v2599, %v2861
    %2863 = vdwg.mxu0
    %2864 = vmatpush.msra.mxu0 %v2464
    %2865 = vmatpush.msra.mxu0 %v2460
    %2866 = vmatpush.msra.mxu0 %v2456
    %2867 = vmatpush.msra.mxu0 %v2452
    %2868 = vmatpush.msra.mxu0 %v2448
    %2869 = vmatpush.msra.mxu0 %v2444
    %2870 = vmatpush.msra.mxu0 %v2440
    %2871 = vmatpush.msra.mxu0 %v2436
    %2872 = vmatpush.msra.mxu0 %v2432
    %2873 = vmatpush.msra.mxu0 %v2428
    %2874 = vmatpush.msra.mxu0 %v2424
    %2875 = vmatpush.msra.mxu0 %v2420
    %2876 = vmatpush.msra.mxu0 %v2416
    %2877 = vmatpush.msra.mxu0 %v2412
    %2878 = vmatpush.msra.mxu0 %v2408
    %2879 = vmatpush.msra.mxu0 %v2404
    %2880 = vmatmul.f32.gmra.mxu0 %v2046
    %v2881 = vpop.f32.mrf.mxu0
    %v2882 = vadd.f32 %v2862, %v2881
    %2883 = vdwg.mxu0
    %2884 = vmatpush.msra.mxu0 %v2528
    %2885 = vmatpush.msra.mxu0 %v2524
    %2886 = vmatpush.msra.mxu0 %v2520
    %2887 = vmatpush.msra.mxu0 %v2516
    %2888 = vmatpush.msra.mxu0 %v2512
    %2889 = vmatpush.msra.mxu0 %v2508
    %2890 = vmatpush.msra.mxu0 %v2504
    %2891 = vmatpush.msra.mxu0 %v2500
    %2892 = vmatpush.msra.mxu0 %v2496
    %2893 = vmatpush.msra.mxu0 %v2492
    %2894 = vmatpush.msra.mxu0 %v2488
    %2895 = vmatpush.msra.mxu0 %v2484
    %2896 = vmatpush.msra.mxu0 %v2480
    %2897 = vmatpush.msra.mxu0 %v2476
    %2898 = vmatpush.msra.mxu0 %v2472
    %2899 = vmatpush.msra.mxu0 %v2468
    %2900 = vmatmul.f32.gmra.mxu0 %v2126
    %v2901 = vpop.f32.mrf.mxu0
    %v2902 = vadd.f32 %v2882, %v2901
    %2903 = vdwg.mxu0
    %2904 = vmatpush.msra.mxu0 %v2592
    %2905 = vmatpush.msra.mxu0 %v2588
    %2906 = vmatpush.msra.mxu0 %v2584
    %2907 = vmatpush.msra.mxu0 %v2580
    %2908 = vmatpush.msra.mxu0 %v2576
    %2909 = vmatpush.msra.mxu0 %v2572
    %2910 = vmatpush.msra.mxu0 %v2568
    %2911 = vmatpush.msra.mxu0 %v2564
    %2912 = vmatpush.msra.mxu0 %v2560
    %2913 = vmatpush.msra.mxu0 %v2556
    %2914 = vmatpush.msra.mxu0 %v2552
    %2915 = vmatpush.msra.mxu0 %v2548
    %2916 = vmatpush.msra.mxu0 %v2544
    %2917 = vmatpush.msra.mxu0 %v2540
    %2918 = vmatpush.msra.mxu0 %v2536
    %2919 = vmatpush.msra.mxu0 %v2532
    %2920 = vmatmul.f32.gmra.mxu0 %v2206
    %v2921 = vpop.f32.mrf.mxu0
    %v2922 = vadd.f32 %v2902, %v2921
    %2923 = vdwg.mxu0
    %s2924 = scalar_lea.vmem [#allocation5], 4096
    %v2925 = vld [vmem:[%s2924] sm:$0xff]
    %v2926 = vld [vmem:[%s2924 + $0x8] sm:$0xff]
    %v2927 = vld [vmem:[%s2924 + $0x10] sm:$0xff]
    %v2928 = vld [vmem:[%s2924 + $0x18] sm:$0xff]
    %v2929 = vld [vmem:[%s2924 + $0x20] sm:$0xff]
    %v2930 = vld [vmem:[%s2924 + $0x28] sm:$0xff]
    %v2931 = vld [vmem:[%s2924 + $0x30] sm:$0xff]
    %v2932 = vld [vmem:[%s2924 + $0x38] sm:$0xff]
    %v2933 = vld [vmem:[%s2924 + $0x40] sm:$0xff]
    %v2934 = vld [vmem:[%s2924 + $0x48] sm:$0xff]
    %v2935 = vld [vmem:[%s2924 + $0x50] sm:$0xff]
    %v2936 = vld [vmem:[%s2924 + $0x58] sm:$0xff]
    %v2937 = vld [vmem:[%s2924 + $0x60] sm:$0xff]
    %v2938 = vld [vmem:[%s2924 + $0x68] sm:$0xff]
    %v2939 = vld [vmem:[%s2924 + $0x70] sm:$0xff]
    %v2940 = vld [vmem:[%s2924 + $0x78] sm:$0xff]
    %v2941 = vld [vmem:[%s2924 + $0x80] sm:$0xff]
    %v2942 = vld [vmem:[%s2924 + $0x88] sm:$0xff]
    %v2943 = vld [vmem:[%s2924 + $0x90] sm:$0xff]
    %v2944 = vld [vmem:[%s2924 + $0x98] sm:$0xff]
    %v2945 = vld [vmem:[%s2924 + $0xa0] sm:$0xff]
    %v2946 = vld [vmem:[%s2924 + $0xa8] sm:$0xff]
    %v2947 = vld [vmem:[%s2924 + $0xb0] sm:$0xff]
    %v2948 = vld [vmem:[%s2924 + $0xb8] sm:$0xff]
    %v2949 = vld [vmem:[%s2924 + $0xc0] sm:$0xff]
    %v2950 = vld [vmem:[%s2924 + $0xc8] sm:$0xff]
    %v2951 = vld [vmem:[%s2924 + $0xd0] sm:$0xff]
    %v2952 = vld [vmem:[%s2924 + $0xd8] sm:$0xff]
    %v2953 = vld [vmem:[%s2924 + $0xe0] sm:$0xff]
    %v2954 = vld [vmem:[%s2924 + $0xe8] sm:$0xff]
    %v2955 = vld [vmem:[%s2924 + $0xf0] sm:$0xff]
    %v2956 = vld [vmem:[%s2924 + $0xf8] sm:$0xff]
    %v2957 = vld [vmem:[%s2924 + $0x100] sm:$0xff]
    %v2958 = vld [vmem:[%s2924 + $0x108] sm:$0xff]
    %v2959 = vld [vmem:[%s2924 + $0x110] sm:$0xff]
    %v2960 = vld [vmem:[%s2924 + $0x118] sm:$0xff]
    %v2961 = vld [vmem:[%s2924 + $0x120] sm:$0xff]
    %v2962 = vld [vmem:[%s2924 + $0x128] sm:$0xff]
    %v2963 = vld [vmem:[%s2924 + $0x130] sm:$0xff]
    %v2964 = vld [vmem:[%s2924 + $0x138] sm:$0xff]
    %v2965 = vld [vmem:[%s2924 + $0x140] sm:$0xff]
    %v2966 = vld [vmem:[%s2924 + $0x148] sm:$0xff]
    %v2967 = vld [vmem:[%s2924 + $0x150] sm:$0xff]
    %v2968 = vld [vmem:[%s2924 + $0x158] sm:$0xff]
    %v2969 = vld [vmem:[%s2924 + $0x160] sm:$0xff]
    %v2970 = vld [vmem:[%s2924 + $0x168] sm:$0xff]
    %v2971 = vld [vmem:[%s2924 + $0x170] sm:$0xff]
    %v2972 = vld [vmem:[%s2924 + $0x178] sm:$0xff]
    %v2973 = vld [vmem:[%s2924 + $0x180] sm:$0xff]
    %v2974 = vld [vmem:[%s2924 + $0x188] sm:$0xff]
    %v2975 = vld [vmem:[%s2924 + $0x190] sm:$0xff]
    %v2976 = vld [vmem:[%s2924 + $0x198] sm:$0xff]
    %v2977 = vld [vmem:[%s2924 + $0x1a0] sm:$0xff]
    %v2978 = vld [vmem:[%s2924 + $0x1a8] sm:$0xff]
    %v2979 = vld [vmem:[%s2924 + $0x1b0] sm:$0xff]
    %v2980 = vld [vmem:[%s2924 + $0x1b8] sm:$0xff]
    %v2981 = vld [vmem:[%s2924 + $0x1c0] sm:$0xff]
    %v2982 = vld [vmem:[%s2924 + $0x1c8] sm:$0xff]
    %v2983 = vld [vmem:[%s2924 + $0x1d0] sm:$0xff]
    %v2984 = vld [vmem:[%s2924 + $0x1d8] sm:$0xff]
    %v2985 = vld [vmem:[%s2924 + $0x1e0] sm:$0xff]
    %v2986 = vld [vmem:[%s2924 + $0x1e8] sm:$0xff]
    %v2987 = vld [vmem:[%s2924 + $0x1f0] sm:$0xff]
    %v2988 = vld [vmem:[%s2924 + $0x1f8] sm:$0xff]
    %v2989 = vld [vmem:[%s2924 + $0x200] sm:$0xff]
    %v2990 = vld [vmem:[%s2924 + $0x208] sm:$0xff]
    %v2991 = vld [vmem:[%s2924 + $0x210] sm:$0xff]
    %v2992 = vld [vmem:[%s2924 + $0x218] sm:$0xff]
    %v2993 = vld [vmem:[%s2924 + $0x220] sm:$0xff]
    %v2994 = vld [vmem:[%s2924 + $0x228] sm:$0xff]
    %v2995 = vld [vmem:[%s2924 + $0x230] sm:$0xff]
    %v2996 = vld [vmem:[%s2924 + $0x238] sm:$0xff]
    %v2997 = vld [vmem:[%s2924 + $0x240] sm:$0xff]
    %v2998 = vld [vmem:[%s2924 + $0x248] sm:$0xff]
    %v2999 = vld [vmem:[%s2924 + $0x250] sm:$0xff]
    %v3000 = vld [vmem:[%s2924 + $0x258] sm:$0xff]
    %v3001 = vld [vmem:[%s2924 + $0x260] sm:$0xff]
    %v3002 = vld [vmem:[%s2924 + $0x268] sm:$0xff]
    %v3003 = vld [vmem:[%s2924 + $0x270] sm:$0xff]
    %v3004 = vld [vmem:[%s2924 + $0x278] sm:$0xff]
    %v3005 = vld [vmem:[%s2924 + $0x280] sm:$0xff]
    %v3006 = vld [vmem:[%s2924 + $0x288] sm:$0xff]
    %v3007 = vld [vmem:[%s2924 + $0x290] sm:$0xff]
    %v3008 = vld [vmem:[%s2924 + $0x298] sm:$0xff]
    %v3009 = vld [vmem:[%s2924 + $0x2a0] sm:$0xff]
    %v3010 = vld [vmem:[%s2924 + $0x2a8] sm:$0xff]
    %v3011 = vld [vmem:[%s2924 + $0x2b0] sm:$0xff]
    %v3012 = vld [vmem:[%s2924 + $0x2b8] sm:$0xff]
    %v3013 = vld [vmem:[%s2924 + $0x2c0] sm:$0xff]
    %v3014 = vld [vmem:[%s2924 + $0x2c8] sm:$0xff]
    %v3015 = vld [vmem:[%s2924 + $0x2d0] sm:$0xff]
    %v3016 = vld [vmem:[%s2924 + $0x2d8] sm:$0xff]
    %v3017 = vld [vmem:[%s2924 + $0x2e0] sm:$0xff]
    %v3018 = vld [vmem:[%s2924 + $0x2e8] sm:$0xff]
    %v3019 = vld [vmem:[%s2924 + $0x2f0] sm:$0xff]
    %v3020 = vld [vmem:[%s2924 + $0x2f8] sm:$0xff]
    %v3021 = vld [vmem:[%s2924 + $0x300] sm:$0xff]
    %v3022 = vld [vmem:[%s2924 + $0x308] sm:$0xff]
    %v3023 = vld [vmem:[%s2924 + $0x310] sm:$0xff]
    %v3024 = vld [vmem:[%s2924 + $0x318] sm:$0xff]
    %v3025 = vld [vmem:[%s2924 + $0x320] sm:$0xff]
    %v3026 = vld [vmem:[%s2924 + $0x328] sm:$0xff]
    %v3027 = vld [vmem:[%s2924 + $0x330] sm:$0xff]
    %v3028 = vld [vmem:[%s2924 + $0x338] sm:$0xff]
    %v3029 = vld [vmem:[%s2924 + $0x340] sm:$0xff]
    %v3030 = vld [vmem:[%s2924 + $0x348] sm:$0xff]
    %v3031 = vld [vmem:[%s2924 + $0x350] sm:$0xff]
    %v3032 = vld [vmem:[%s2924 + $0x358] sm:$0xff]
    %v3033 = vld [vmem:[%s2924 + $0x360] sm:$0xff]
    %v3034 = vld [vmem:[%s2924 + $0x368] sm:$0xff]
    %v3035 = vld [vmem:[%s2924 + $0x370] sm:$0xff]
    %v3036 = vld [vmem:[%s2924 + $0x378] sm:$0xff]
    %v3037 = vld [vmem:[%s2924 + $0x380] sm:$0xff]
    %v3038 = vld [vmem:[%s2924 + $0x388] sm:$0xff]
    %v3039 = vld [vmem:[%s2924 + $0x390] sm:$0xff]
    %v3040 = vld [vmem:[%s2924 + $0x398] sm:$0xff]
    %v3041 = vld [vmem:[%s2924 + $0x3a0] sm:$0xff]
    %v3042 = vld [vmem:[%s2924 + $0x3a8] sm:$0xff]
    %v3043 = vld [vmem:[%s2924 + $0x3b0] sm:$0xff]
    %v3044 = vld [vmem:[%s2924 + $0x3b8] sm:$0xff]
    %v3045 = vld [vmem:[%s2924 + $0x3c0] sm:$0xff]
    %v3046 = vld [vmem:[%s2924 + $0x3c8] sm:$0xff]
    %v3047 = vld [vmem:[%s2924 + $0x3d0] sm:$0xff]
    %v3048 = vld [vmem:[%s2924 + $0x3d8] sm:$0xff]
    %v3049 = vld [vmem:[%s2924 + $0x3e0] sm:$0xff]
    %v3050 = vld [vmem:[%s2924 + $0x3e8] sm:$0xff]
    %v3051 = vld [vmem:[%s2924 + $0x3f0] sm:$0xff]
    %v3052 = vld [vmem:[%s2924 + $0x3f8] sm:$0xff]
    %v3053 = vunpack.c.l.bf16 %v2925
    %v3054 = vunpack.c.h.bf16 %v2925
    %v3055 = vunpack.c.l.bf16 %v2926
    %v3056 = vunpack.c.h.bf16 %v2926
    %v3057 = vunpack.c.l.bf16 %v2927
    %v3058 = vunpack.c.h.bf16 %v2927
    %v3059 = vunpack.c.l.bf16 %v2928
    %v3060 = vunpack.c.h.bf16 %v2928
    %v3061 = vunpack.c.l.bf16 %v2929
    %v3062 = vunpack.c.h.bf16 %v2929
    %v3063 = vunpack.c.l.bf16 %v2930
    %v3064 = vunpack.c.h.bf16 %v2930
    %v3065 = vunpack.c.l.bf16 %v2931
    %v3066 = vunpack.c.h.bf16 %v2931
    %v3067 = vunpack.c.l.bf16 %v2932
    %v3068 = vunpack.c.h.bf16 %v2932
    %v3069 = vunpack.c.l.bf16 %v2933
    %v3070 = vunpack.c.h.bf16 %v2933
    %v3071 = vunpack.c.l.bf16 %v2934
    %v3072 = vunpack.c.h.bf16 %v2934
    %v3073 = vunpack.c.l.bf16 %v2935
    %v3074 = vunpack.c.h.bf16 %v2935
    %v3075 = vunpack.c.l.bf16 %v2936
    %v3076 = vunpack.c.h.bf16 %v2936
    %v3077 = vunpack.c.l.bf16 %v2937
    %v3078 = vunpack.c.h.bf16 %v2937
    %v3079 = vunpack.c.l.bf16 %v2938
    %v3080 = vunpack.c.h.bf16 %v2938
    %v3081 = vunpack.c.l.bf16 %v2939
    %v3082 = vunpack.c.h.bf16 %v2939
    %v3083 = vunpack.c.l.bf16 %v2940
    %v3084 = vunpack.c.h.bf16 %v2940
    %v3085 = vunpack.c.l.bf16 %v2941
    %v3086 = vunpack.c.h.bf16 %v2941
    %v3087 = vunpack.c.l.bf16 %v2942
    %v3088 = vunpack.c.h.bf16 %v2942
    %v3089 = vunpack.c.l.bf16 %v2943
    %v3090 = vunpack.c.h.bf16 %v2943
    %v3091 = vunpack.c.l.bf16 %v2944
    %v3092 = vunpack.c.h.bf16 %v2944
    %v3093 = vunpack.c.l.bf16 %v2945
    %v3094 = vunpack.c.h.bf16 %v2945
    %v3095 = vunpack.c.l.bf16 %v2946
    %v3096 = vunpack.c.h.bf16 %v2946
    %v3097 = vunpack.c.l.bf16 %v2947
    %v3098 = vunpack.c.h.bf16 %v2947
    %v3099 = vunpack.c.l.bf16 %v2948
    %v3100 = vunpack.c.h.bf16 %v2948
    %v3101 = vunpack.c.l.bf16 %v2949
    %v3102 = vunpack.c.h.bf16 %v2949
    %v3103 = vunpack.c.l.bf16 %v2950
    %v3104 = vunpack.c.h.bf16 %v2950
    %v3105 = vunpack.c.l.bf16 %v2951
    %v3106 = vunpack.c.h.bf16 %v2951
    %v3107 = vunpack.c.l.bf16 %v2952
    %v3108 = vunpack.c.h.bf16 %v2952
    %v3109 = vunpack.c.l.bf16 %v2953
    %v3110 = vunpack.c.h.bf16 %v2953
    %v3111 = vunpack.c.l.bf16 %v2954
    %v3112 = vunpack.c.h.bf16 %v2954
    %v3113 = vunpack.c.l.bf16 %v2955
    %v3114 = vunpack.c.h.bf16 %v2955
    %v3115 = vunpack.c.l.bf16 %v2956
    %v3116 = vunpack.c.h.bf16 %v2956
    %v3117 = vunpack.c.l.bf16 %v2957
    %v3118 = vunpack.c.h.bf16 %v2957
    %v3119 = vunpack.c.l.bf16 %v2958
    %v3120 = vunpack.c.h.bf16 %v2958
    %v3121 = vunpack.c.l.bf16 %v2959
    %v3122 = vunpack.c.h.bf16 %v2959
    %v3123 = vunpack.c.l.bf16 %v2960
    %v3124 = vunpack.c.h.bf16 %v2960
    %v3125 = vunpack.c.l.bf16 %v2961
    %v3126 = vunpack.c.h.bf16 %v2961
    %v3127 = vunpack.c.l.bf16 %v2962
    %v3128 = vunpack.c.h.bf16 %v2962
    %v3129 = vunpack.c.l.bf16 %v2963
    %v3130 = vunpack.c.h.bf16 %v2963
    %v3131 = vunpack.c.l.bf16 %v2964
    %v3132 = vunpack.c.h.bf16 %v2964
    %v3133 = vunpack.c.l.bf16 %v2965
    %v3134 = vunpack.c.h.bf16 %v2965
    %v3135 = vunpack.c.l.bf16 %v2966
    %v3136 = vunpack.c.h.bf16 %v2966
    %v3137 = vunpack.c.l.bf16 %v2967
    %v3138 = vunpack.c.h.bf16 %v2967
    %v3139 = vunpack.c.l.bf16 %v2968
    %v3140 = vunpack.c.h.bf16 %v2968
    %v3141 = vunpack.c.l.bf16 %v2969
    %v3142 = vunpack.c.h.bf16 %v2969
    %v3143 = vunpack.c.l.bf16 %v2970
    %v3144 = vunpack.c.h.bf16 %v2970
    %v3145 = vunpack.c.l.bf16 %v2971
    %v3146 = vunpack.c.h.bf16 %v2971
    %v3147 = vunpack.c.l.bf16 %v2972
    %v3148 = vunpack.c.h.bf16 %v2972
    %v3149 = vunpack.c.l.bf16 %v2973
    %v3150 = vunpack.c.h.bf16 %v2973
    %v3151 = vunpack.c.l.bf16 %v2974
    %v3152 = vunpack.c.h.bf16 %v2974
    %v3153 = vunpack.c.l.bf16 %v2975
    %v3154 = vunpack.c.h.bf16 %v2975
    %v3155 = vunpack.c.l.bf16 %v2976
    %v3156 = vunpack.c.h.bf16 %v2976
    %v3157 = vunpack.c.l.bf16 %v2977
    %v3158 = vunpack.c.h.bf16 %v2977
    %v3159 = vunpack.c.l.bf16 %v2978
    %v3160 = vunpack.c.h.bf16 %v2978
    %v3161 = vunpack.c.l.bf16 %v2979
    %v3162 = vunpack.c.h.bf16 %v2979
    %v3163 = vunpack.c.l.bf16 %v2980
    %v3164 = vunpack.c.h.bf16 %v2980
    %v3165 = vunpack.c.l.bf16 %v2981
    %v3166 = vunpack.c.h.bf16 %v2981
    %v3167 = vunpack.c.l.bf16 %v2982
    %v3168 = vunpack.c.h.bf16 %v2982
    %v3169 = vunpack.c.l.bf16 %v2983
    %v3170 = vunpack.c.h.bf16 %v2983
    %v3171 = vunpack.c.l.bf16 %v2984
    %v3172 = vunpack.c.h.bf16 %v2984
    %v3173 = vunpack.c.l.bf16 %v2985
    %v3174 = vunpack.c.h.bf16 %v2985
    %v3175 = vunpack.c.l.bf16 %v2986
    %v3176 = vunpack.c.h.bf16 %v2986
    %v3177 = vunpack.c.l.bf16 %v2987
    %v3178 = vunpack.c.h.bf16 %v2987
    %v3179 = vunpack.c.l.bf16 %v2988
    %v3180 = vunpack.c.h.bf16 %v2988
    %v3181 = vunpack.c.l.bf16 %v2989
    %v3182 = vunpack.c.h.bf16 %v2989
    %v3183 = vunpack.c.l.bf16 %v2990
    %v3184 = vunpack.c.h.bf16 %v2990
    %v3185 = vunpack.c.l.bf16 %v2991
    %v3186 = vunpack.c.h.bf16 %v2991
    %v3187 = vunpack.c.l.bf16 %v2992
    %v3188 = vunpack.c.h.bf16 %v2992
    %v3189 = vunpack.c.l.bf16 %v2993
    %v3190 = vunpack.c.h.bf16 %v2993
    %v3191 = vunpack.c.l.bf16 %v2994
    %v3192 = vunpack.c.h.bf16 %v2994
    %v3193 = vunpack.c.l.bf16 %v2995
    %v3194 = vunpack.c.h.bf16 %v2995
    %v3195 = vunpack.c.l.bf16 %v2996
    %v3196 = vunpack.c.h.bf16 %v2996
    %v3197 = vunpack.c.l.bf16 %v2997
    %v3198 = vunpack.c.h.bf16 %v2997
    %v3199 = vunpack.c.l.bf16 %v2998
    %v3200 = vunpack.c.h.bf16 %v2998
    %v3201 = vunpack.c.l.bf16 %v2999
    %v3202 = vunpack.c.h.bf16 %v2999
    %v3203 = vunpack.c.l.bf16 %v3000
    %v3204 = vunpack.c.h.bf16 %v3000
    %v3205 = vunpack.c.l.bf16 %v3001
    %v3206 = vunpack.c.h.bf16 %v3001
    %v3207 = vunpack.c.l.bf16 %v3002
    %v3208 = vunpack.c.h.bf16 %v3002
    %v3209 = vunpack.c.l.bf16 %v3003
    %v3210 = vunpack.c.h.bf16 %v3003
    %v3211 = vunpack.c.l.bf16 %v3004
    %v3212 = vunpack.c.h.bf16 %v3004
    %v3213 = vunpack.c.l.bf16 %v3005
    %v3214 = vunpack.c.h.bf16 %v3005
    %v3215 = vunpack.c.l.bf16 %v3006
    %v3216 = vunpack.c.h.bf16 %v3006
    %v3217 = vunpack.c.l.bf16 %v3007
    %v3218 = vunpack.c.h.bf16 %v3007
    %v3219 = vunpack.c.l.bf16 %v3008
    %v3220 = vunpack.c.h.bf16 %v3008
    %v3221 = vunpack.c.l.bf16 %v3009
    %v3222 = vunpack.c.h.bf16 %v3009
    %v3223 = vunpack.c.l.bf16 %v3010
    %v3224 = vunpack.c.h.bf16 %v3010
    %v3225 = vunpack.c.l.bf16 %v3011
    %v3226 = vunpack.c.h.bf16 %v3011
    %v3227 = vunpack.c.l.bf16 %v3012
    %v3228 = vunpack.c.h.bf16 %v3012
    %v3229 = vunpack.c.l.bf16 %v3013
    %v3230 = vunpack.c.h.bf16 %v3013
    %v3231 = vunpack.c.l.bf16 %v3014
    %v3232 = vunpack.c.h.bf16 %v3014
    %v3233 = vunpack.c.l.bf16 %v3015
    %v3234 = vunpack.c.h.bf16 %v3015
    %v3235 = vunpack.c.l.bf16 %v3016
    %v3236 = vunpack.c.h.bf16 %v3016
    %v3237 = vunpack.c.l.bf16 %v3017
    %v3238 = vunpack.c.h.bf16 %v3017
    %v3239 = vunpack.c.l.bf16 %v3018
    %v3240 = vunpack.c.h.bf16 %v3018
    %v3241 = vunpack.c.l.bf16 %v3019
    %v3242 = vunpack.c.h.bf16 %v3019
    %v3243 = vunpack.c.l.bf16 %v3020
    %v3244 = vunpack.c.h.bf16 %v3020
    %v3245 = vunpack.c.l.bf16 %v3021
    %v3246 = vunpack.c.h.bf16 %v3021
    %v3247 = vunpack.c.l.bf16 %v3022
    %v3248 = vunpack.c.h.bf16 %v3022
    %v3249 = vunpack.c.l.bf16 %v3023
    %v3250 = vunpack.c.h.bf16 %v3023
    %v3251 = vunpack.c.l.bf16 %v3024
    %v3252 = vunpack.c.h.bf16 %v3024
    %v3253 = vunpack.c.l.bf16 %v3025
    %v3254 = vunpack.c.h.bf16 %v3025
    %v3255 = vunpack.c.l.bf16 %v3026
    %v3256 = vunpack.c.h.bf16 %v3026
    %v3257 = vunpack.c.l.bf16 %v3027
    %v3258 = vunpack.c.h.bf16 %v3027
    %v3259 = vunpack.c.l.bf16 %v3028
    %v3260 = vunpack.c.h.bf16 %v3028
    %v3261 = vunpack.c.l.bf16 %v3029
    %v3262 = vunpack.c.h.bf16 %v3029
    %v3263 = vunpack.c.l.bf16 %v3030
    %v3264 = vunpack.c.h.bf16 %v3030
    %v3265 = vunpack.c.l.bf16 %v3031
    %v3266 = vunpack.c.h.bf16 %v3031
    %v3267 = vunpack.c.l.bf16 %v3032
    %v3268 = vunpack.c.h.bf16 %v3032
    %v3269 = vunpack.c.l.bf16 %v3033
    %v3270 = vunpack.c.h.bf16 %v3033
    %v3271 = vunpack.c.l.bf16 %v3034
    %v3272 = vunpack.c.h.bf16 %v3034
    %v3273 = vunpack.c.l.bf16 %v3035
    %v3274 = vunpack.c.h.bf16 %v3035
    %v3275 = vunpack.c.l.bf16 %v3036
    %v3276 = vunpack.c.h.bf16 %v3036
    %v3277 = vunpack.c.l.bf16 %v3037
    %v3278 = vunpack.c.h.bf16 %v3037
    %v3279 = vunpack.c.l.bf16 %v3038
    %v3280 = vunpack.c.h.bf16 %v3038
    %v3281 = vunpack.c.l.bf16 %v3039
    %v3282 = vunpack.c.h.bf16 %v3039
    %v3283 = vunpack.c.l.bf16 %v3040
    %v3284 = vunpack.c.h.bf16 %v3040
    %v3285 = vunpack.c.l.bf16 %v3041
    %v3286 = vunpack.c.h.bf16 %v3041
    %v3287 = vunpack.c.l.bf16 %v3042
    %v3288 = vunpack.c.h.bf16 %v3042
    %v3289 = vunpack.c.l.bf16 %v3043
    %v3290 = vunpack.c.h.bf16 %v3043
    %v3291 = vunpack.c.l.bf16 %v3044
    %v3292 = vunpack.c.h.bf16 %v3044
    %v3293 = vunpack.c.l.bf16 %v3045
    %v3294 = vunpack.c.h.bf16 %v3045
    %v3295 = vunpack.c.l.bf16 %v3046
    %v3296 = vunpack.c.h.bf16 %v3046
    %v3297 = vunpack.c.l.bf16 %v3047
    %v3298 = vunpack.c.h.bf16 %v3047
    %v3299 = vunpack.c.l.bf16 %v3048
    %v3300 = vunpack.c.h.bf16 %v3048
    %v3301 = vunpack.c.l.bf16 %v3049
    %v3302 = vunpack.c.h.bf16 %v3049
    %v3303 = vunpack.c.l.bf16 %v3050
    %v3304 = vunpack.c.h.bf16 %v3050
    %v3305 = vunpack.c.l.bf16 %v3051
    %v3306 = vunpack.c.h.bf16 %v3051
    %v3307 = vunpack.c.l.bf16 %v3052
    %v3308 = vunpack.c.h.bf16 %v3052
    %s3309 = scalar_lea.vmem [#allocation7], 4
    %v3310 = vld [vmem:[%s3309] ss:$8 sm:$0xf]
    %v3312 = vperm.slane %v3310, 0
    %v3313 = vperm.slane %v3310, 1
    %v3314 = vperm.slane %v3310, 2
    %v3315 = vperm.slane %v3310, 3
    %3320 = vmatpush.msra.mxu0 %v3113
    %3321 = vmatpush.msra.mxu0 %v3109
    %3322 = vmatpush.msra.mxu0 %v3105
    %3323 = vmatpush.msra.mxu0 %v3101
    %3324 = vmatpush.msra.mxu0 %v3097
    %3325 = vmatpush.msra.mxu0 %v3093
    %3326 = vmatpush.msra.mxu0 %v3089
    %3327 = vmatpush.msra.mxu0 %v3085
    %3328 = vmatpush.msra.mxu0 %v3081
    %3329 = vmatpush.msra.mxu0 %v3077
    %3330 = vmatpush.msra.mxu0 %v3073
    %3331 = vmatpush.msra.mxu0 %v3069
    %3332 = vmatpush.msra.mxu0 %v3065
    %3333 = vmatpush.msra.mxu0 %v3061
    %3334 = vmatpush.msra.mxu0 %v3057
    %3335 = vmatpush.msra.mxu0 %v3053
    %3336 = vmatmul.f32.gmra.mxu0 %v2682
    %v3337 = vpop.f32.mrf.mxu0
    %v3338 = vadd.f32 %v3312, %v3337
    %3339 = vdwg.mxu0
    %3340 = vmatpush.msra.mxu0 %v3177
    %3341 = vmatpush.msra.mxu0 %v3173
    %3342 = vmatpush.msra.mxu0 %v3169
    %3343 = vmatpush.msra.mxu0 %v3165
    %3344 = vmatpush.msra.mxu0 %v3161
    %3345 = vmatpush.msra.mxu0 %v3157
    %3346 = vmatpush.msra.mxu0 %v3153
    %3347 = vmatpush.msra.mxu0 %v3149
    %3348 = vmatpush.msra.mxu0 %v3145
    %3349 = vmatpush.msra.mxu0 %v3141
    %3350 = vmatpush.msra.mxu0 %v3137
    %3351 = vmatpush.msra.mxu0 %v3133
    %3352 = vmatpush.msra.mxu0 %v3129
    %3353 = vmatpush.msra.mxu0 %v3125
    %3354 = vmatpush.msra.mxu0 %v3121
    %3355 = vmatpush.msra.mxu0 %v3117
    %3356 = vmatmul.f32.gmra.mxu0 %v2762
    %v3357 = vpop.f32.mrf.mxu0
    %v3358 = vadd.f32 %v3338, %v3357
    %3359 = vdwg.mxu0
    %3360 = vmatpush.msra.mxu0 %v3241
    %3361 = vmatpush.msra.mxu0 %v3237
    %3362 = vmatpush.msra.mxu0 %v3233
    %3363 = vmatpush.msra.mxu0 %v3229
    %3364 = vmatpush.msra.mxu0 %v3225
    %3365 = vmatpush.msra.mxu0 %v3221
    %3366 = vmatpush.msra.mxu0 %v3217
    %3367 = vmatpush.msra.mxu0 %v3213
    %3368 = vmatpush.msra.mxu0 %v3209
    %3369 = vmatpush.msra.mxu0 %v3205
    %3370 = vmatpush.msra.mxu0 %v3201
    %3371 = vmatpush.msra.mxu0 %v3197
    %3372 = vmatpush.msra.mxu0 %v3193
    %3373 = vmatpush.msra.mxu0 %v3189
    %3374 = vmatpush.msra.mxu0 %v3185
    %3375 = vmatpush.msra.mxu0 %v3181
    %3376 = vmatmul.f32.gmra.mxu0 %v2842
    %v3377 = vpop.f32.mrf.mxu0
    %v3378 = vadd.f32 %v3358, %v3377
    %3379 = vdwg.mxu0
    %3380 = vmatpush.msra.mxu0 %v3305
    %3381 = vmatpush.msra.mxu0 %v3301
    %3382 = vmatpush.msra.mxu0 %v3297
    %3383 = vmatpush.msra.mxu0 %v3293
    %3384 = vmatpush.msra.mxu0 %v3289
    %3385 = vmatpush.msra.mxu0 %v3285
    %3386 = vmatpush.msra.mxu0 %v3281
    %3387 = vmatpush.msra.mxu0 %v3277
    %3388 = vmatpush.msra.mxu0 %v3273
    %3389 = vmatpush.msra.mxu0 %v3269
    %3390 = vmatpush.msra.mxu0 %v3265
    %3391 = vmatpush.msra.mxu0 %v3261
    %3392 = vmatpush.msra.mxu0 %v3257
    %3393 = vmatpush.msra.mxu0 %v3253
    %3394 = vmatpush.msra.mxu0 %v3249
    %3395 = vmatpush.msra.mxu0 %v3245
    %3396 = vmatmul.f32.gmra.mxu0 %v2922
    %v3397 = vpop.f32.mrf.mxu0
    %v3398 = vadd.f32 %v3378, %v3397
    %3399 = vdwg.mxu0
    %3400 = vmatpush.msra.mxu0 %v3114
    %3401 = vmatpush.msra.mxu0 %v3110
    %3402 = vmatpush.msra.mxu0 %v3106
    %3403 = vmatpush.msra.mxu0 %v3102
    %3404 = vmatpush.msra.mxu0 %v3098
    %3405 = vmatpush.msra.mxu0 %v3094
    %3406 = vmatpush.msra.mxu0 %v3090
    %3407 = vmatpush.msra.mxu0 %v3086
    %3408 = vmatpush.msra.mxu0 %v3082
    %3409 = vmatpush.msra.mxu0 %v3078
    %3410 = vmatpush.msra.mxu0 %v3074
    %3411 = vmatpush.msra.mxu0 %v3070
    %3412 = vmatpush.msra.mxu0 %v3066
    %3413 = vmatpush.msra.mxu0 %v3062
    %3414 = vmatpush.msra.mxu0 %v3058
    %3415 = vmatpush.msra.mxu0 %v3054
    %3416 = vmatmul.f32.gmra.mxu0 %v2682
    %v3417 = vpop.f32.mrf.mxu0
    %v3418 = vadd.f32 %v3313, %v3417
    %3419 = vdwg.mxu0
    %3420 = vmatpush.msra.mxu0 %v3178
    %3421 = vmatpush.msra.mxu0 %v3174
    %3422 = vmatpush.msra.mxu0 %v3170
    %3423 = vmatpush.msra.mxu0 %v3166
    %3424 = vmatpush.msra.mxu0 %v3162
    %3425 = vmatpush.msra.mxu0 %v3158
    %3426 = vmatpush.msra.mxu0 %v3154
    %3427 = vmatpush.msra.mxu0 %v3150
    %3428 = vmatpush.msra.mxu0 %v3146
    %3429 = vmatpush.msra.mxu0 %v3142
    %3430 = vmatpush.msra.mxu0 %v3138
    %3431 = vmatpush.msra.mxu0 %v3134
    %3432 = vmatpush.msra.mxu0 %v3130
    %3433 = vmatpush.msra.mxu0 %v3126
    %3434 = vmatpush.msra.mxu0 %v3122
    %3435 = vmatpush.msra.mxu0 %v3118
    %3436 = vmatmul.f32.gmra.mxu0 %v2762
    %v3437 = vpop.f32.mrf.mxu0
    %v3438 = vadd.f32 %v3418, %v3437
    %3439 = vdwg.mxu0
    %3440 = vmatpush.msra.mxu0 %v3242
    %3441 = vmatpush.msra.mxu0 %v3238
    %3442 = vmatpush.msra.mxu0 %v3234
    %3443 = vmatpush.msra.mxu0 %v3230
    %3444 = vmatpush.msra.mxu0 %v3226
    %3445 = vmatpush.msra.mxu0 %v3222
    %3446 = vmatpush.msra.mxu0 %v3218
    %3447 = vmatpush.msra.mxu0 %v3214
    %3448 = vmatpush.msra.mxu0 %v3210
    %3449 = vmatpush.msra.mxu0 %v3206
    %3450 = vmatpush.msra.mxu0 %v3202
    %3451 = vmatpush.msra.mxu0 %v3198
    %3452 = vmatpush.msra.mxu0 %v3194
    %3453 = vmatpush.msra.mxu0 %v3190
    %3454 = vmatpush.msra.mxu0 %v3186
    %3455 = vmatpush.msra.mxu0 %v3182
    %3456 = vmatmul.f32.gmra.mxu0 %v2842
    %v3457 = vpop.f32.mrf.mxu0
    %v3458 = vadd.f32 %v3438, %v3457
    %3459 = vdwg.mxu0
    %3460 = vmatpush.msra.mxu0 %v3306
    %3461 = vmatpush.msra.mxu0 %v3302
    %3462 = vmatpush.msra.mxu0 %v3298
    %3463 = vmatpush.msra.mxu0 %v3294
    %3464 = vmatpush.msra.mxu0 %v3290
    %3465 = vmatpush.msra.mxu0 %v3286
    %3466 = vmatpush.msra.mxu0 %v3282
    %3467 = vmatpush.msra.mxu0 %v3278
    %3468 = vmatpush.msra.mxu0 %v3274
    %3469 = vmatpush.msra.mxu0 %v3270
    %3470 = vmatpush.msra.mxu0 %v3266
    %3471 = vmatpush.msra.mxu0 %v3262
    %3472 = vmatpush.msra.mxu0 %v3258
    %3473 = vmatpush.msra.mxu0 %v3254
    %3474 = vmatpush.msra.mxu0 %v3250
    %3475 = vmatpush.msra.mxu0 %v3246
    %3476 = vmatmul.f32.gmra.mxu0 %v2922
    %v3477 = vpop.f32.mrf.mxu0
    %v3478 = vadd.f32 %v3458, %v3477
    %3479 = vdwg.mxu0
    %3480 = vmatpush.msra.mxu0 %v3115
    %3481 = vmatpush.msra.mxu0 %v3111
    %3482 = vmatpush.msra.mxu0 %v3107
    %3483 = vmatpush.msra.mxu0 %v3103
    %3484 = vmatpush.msra.mxu0 %v3099
    %3485 = vmatpush.msra.mxu0 %v3095
    %3486 = vmatpush.msra.mxu0 %v3091
    %3487 = vmatpush.msra.mxu0 %v3087
    %3488 = vmatpush.msra.mxu0 %v3083
    %3489 = vmatpush.msra.mxu0 %v3079
    %3490 = vmatpush.msra.mxu0 %v3075
    %3491 = vmatpush.msra.mxu0 %v3071
    %3492 = vmatpush.msra.mxu0 %v3067
    %3493 = vmatpush.msra.mxu0 %v3063
    %3494 = vmatpush.msra.mxu0 %v3059
    %3495 = vmatpush.msra.mxu0 %v3055
    %3496 = vmatmul.f32.gmra.mxu0 %v2682
    %v3497 = vpop.f32.mrf.mxu0
    %v3498 = vadd.f32 %v3314, %v3497
    %3499 = vdwg.mxu0
    %3500 = vmatpush.msra.mxu0 %v3179
    %3501 = vmatpush.msra.mxu0 %v3175
    %3502 = vmatpush.msra.mxu0 %v3171
    %3503 = vmatpush.msra.mxu0 %v3167
    %3504 = vmatpush.msra.mxu0 %v3163
    %3505 = vmatpush.msra.mxu0 %v3159
    %3506 = vmatpush.msra.mxu0 %v3155
    %3507 = vmatpush.msra.mxu0 %v3151
    %3508 = vmatpush.msra.mxu0 %v3147
    %3509 = vmatpush.msra.mxu0 %v3143
    %3510 = vmatpush.msra.mxu0 %v3139
    %3511 = vmatpush.msra.mxu0 %v3135
    %3512 = vmatpush.msra.mxu0 %v3131
    %3513 = vmatpush.msra.mxu0 %v3127
    %3514 = vmatpush.msra.mxu0 %v3123
    %3515 = vmatpush.msra.mxu0 %v3119
    %3516 = vmatmul.f32.gmra.mxu0 %v2762
    %v3517 = vpop.f32.mrf.mxu0
    %v3518 = vadd.f32 %v3498, %v3517
    %3519 = vdwg.mxu0
    %3520 = vmatpush.msra.mxu0 %v3243
    %3521 = vmatpush.msra.mxu0 %v3239
    %3522 = vmatpush.msra.mxu0 %v3235
    %3523 = vmatpush.msra.mxu0 %v3231
    %3524 = vmatpush.msra.mxu0 %v3227
    %3525 = vmatpush.msra.mxu0 %v3223
    %3526 = vmatpush.msra.mxu0 %v3219
    %3527 = vmatpush.msra.mxu0 %v3215
    %3528 = vmatpush.msra.mxu0 %v3211
    %3529 = vmatpush.msra.mxu0 %v3207
    %3530 = vmatpush.msra.mxu0 %v3203
    %3531 = vmatpush.msra.mxu0 %v3199
    %3532 = vmatpush.msra.mxu0 %v3195
    %3533 = vmatpush.msra.mxu0 %v3191
    %3534 = vmatpush.msra.mxu0 %v3187
    %3535 = vmatpush.msra.mxu0 %v3183
    %3536 = vmatmul.f32.gmra.mxu0 %v2842
    %v3537 = vpop.f32.mrf.mxu0
    %v3538 = vadd.f32 %v3518, %v3537
    %3539 = vdwg.mxu0
    %3540 = vmatpush.msra.mxu0 %v3307
    %3541 = vmatpush.msra.mxu0 %v3303
    %3542 = vmatpush.msra.mxu0 %v3299
    %3543 = vmatpush.msra.mxu0 %v3295
    %3544 = vmatpush.msra.mxu0 %v3291
    %3545 = vmatpush.msra.mxu0 %v3287
    %3546 = vmatpush.msra.mxu0 %v3283
    %3547 = vmatpush.msra.mxu0 %v3279
    %3548 = vmatpush.msra.mxu0 %v3275
    %3549 = vmatpush.msra.mxu0 %v3271
    %3550 = vmatpush.msra.mxu0 %v3267
    %3551 = vmatpush.msra.mxu0 %v3263
    %3552 = vmatpush.msra.mxu0 %v3259
    %3553 = vmatpush.msra.mxu0 %v3255
    %3554 = vmatpush.msra.mxu0 %v3251
    %3555 = vmatpush.msra.mxu0 %v3247
    %3556 = vmatmul.f32.gmra.mxu0 %v2922
    %v3557 = vpop.f32.mrf.mxu0
    %v3558 = vadd.f32 %v3538, %v3557
    %3559 = vdwg.mxu0
    %3560 = vmatpush.msra.mxu0 %v3116
    %3561 = vmatpush.msra.mxu0 %v3112
    %3562 = vmatpush.msra.mxu0 %v3108
    %3563 = vmatpush.msra.mxu0 %v3104
    %3564 = vmatpush.msra.mxu0 %v3100
    %3565 = vmatpush.msra.mxu0 %v3096
    %3566 = vmatpush.msra.mxu0 %v3092
    %3567 = vmatpush.msra.mxu0 %v3088
    %3568 = vmatpush.msra.mxu0 %v3084
    %3569 = vmatpush.msra.mxu0 %v3080
    %3570 = vmatpush.msra.mxu0 %v3076
    %3571 = vmatpush.msra.mxu0 %v3072
    %3572 = vmatpush.msra.mxu0 %v3068
    %3573 = vmatpush.msra.mxu0 %v3064
    %3574 = vmatpush.msra.mxu0 %v3060
    %3575 = vmatpush.msra.mxu0 %v3056
    %3576 = vmatmul.f32.gmra.mxu0 %v2682
    %v3577 = vpop.f32.mrf.mxu0
    %v3578 = vadd.f32 %v3315, %v3577
    %3579 = vdwg.mxu0
    %3580 = vmatpush.msra.mxu0 %v3180
    %3581 = vmatpush.msra.mxu0 %v3176
    %3582 = vmatpush.msra.mxu0 %v3172
    %3583 = vmatpush.msra.mxu0 %v3168
    %3584 = vmatpush.msra.mxu0 %v3164
    %3585 = vmatpush.msra.mxu0 %v3160
    %3586 = vmatpush.msra.mxu0 %v3156
    %3587 = vmatpush.msra.mxu0 %v3152
    %3588 = vmatpush.msra.mxu0 %v3148
    %3589 = vmatpush.msra.mxu0 %v3144
    %3590 = vmatpush.msra.mxu0 %v3140
    %3591 = vmatpush.msra.mxu0 %v3136
    %3592 = vmatpush.msra.mxu0 %v3132
    %3593 = vmatpush.msra.mxu0 %v3128
    %3594 = vmatpush.msra.mxu0 %v3124
    %3595 = vmatpush.msra.mxu0 %v3120
    %3596 = vmatmul.f32.gmra.mxu0 %v2762
    %v3597 = vpop.f32.mrf.mxu0
    %v3598 = vadd.f32 %v3578, %v3597
    %3599 = vdwg.mxu0
    %3600 = vmatpush.msra.mxu0 %v3244
    %3601 = vmatpush.msra.mxu0 %v3240
    %3602 = vmatpush.msra.mxu0 %v3236
    %3603 = vmatpush.msra.mxu0 %v3232
    %3604 = vmatpush.msra.mxu0 %v3228
    %3605 = vmatpush.msra.mxu0 %v3224
    %3606 = vmatpush.msra.mxu0 %v3220
    %3607 = vmatpush.msra.mxu0 %v3216
    %3608 = vmatpush.msra.mxu0 %v3212
    %3609 = vmatpush.msra.mxu0 %v3208
    %3610 = vmatpush.msra.mxu0 %v3204
    %3611 = vmatpush.msra.mxu0 %v3200
    %3612 = vmatpush.msra.mxu0 %v3196
    %3613 = vmatpush.msra.mxu0 %v3192
    %3614 = vmatpush.msra.mxu0 %v3188
    %3615 = vmatpush.msra.mxu0 %v3184
    %3616 = vmatmul.f32.gmra.mxu0 %v2842
    %v3617 = vpop.f32.mrf.mxu0
    %v3618 = vadd.f32 %v3598, %v3617
    %3619 = vdwg.mxu0
    %3620 = vmatpush.msra.mxu0 %v3308
    %3621 = vmatpush.msra.mxu0 %v3304
    %3622 = vmatpush.msra.mxu0 %v3300
    %3623 = vmatpush.msra.mxu0 %v3296
    %3624 = vmatpush.msra.mxu0 %v3292
    %3625 = vmatpush.msra.mxu0 %v3288
    %3626 = vmatpush.msra.mxu0 %v3284
    %3627 = vmatpush.msra.mxu0 %v3280
    %3628 = vmatpush.msra.mxu0 %v3276
    %3629 = vmatpush.msra.mxu0 %v3272
    %3630 = vmatpush.msra.mxu0 %v3268
    %3631 = vmatpush.msra.mxu0 %v3264
    %3632 = vmatpush.msra.mxu0 %v3260
    %3633 = vmatpush.msra.mxu0 %v3256
    %3634 = vmatpush.msra.mxu0 %v3252
    %3635 = vmatpush.msra.mxu0 %v3248
    %3636 = vmatmul.f32.gmra.mxu0 %v2922
    %v3637 = vpop.f32.mrf.mxu0
    %v3638 = vadd.f32 %v3618, %v3637
    %3639 = vdwg.mxu0
    %s3640 = scalar_lea.vmem [#allocation5], 5120
    %v3641 = vld [vmem:[%s3640] sm:$0xff]
    %v3642 = vld [vmem:[%s3640 + $0x8] sm:$0xff]
    %v3643 = vld [vmem:[%s3640 + $0x10] sm:$0xff]
    %v3644 = vld [vmem:[%s3640 + $0x18] sm:$0xff]
    %v3645 = vld [vmem:[%s3640 + $0x20] sm:$0xff]
    %v3646 = vld [vmem:[%s3640 + $0x28] sm:$0xff]
    %v3647 = vld [vmem:[%s3640 + $0x30] sm:$0xff]
    %v3648 = vld [vmem:[%s3640 + $0x38] sm:$0xff]
    %v3649 = vld [vmem:[%s3640 + $0x40] sm:$0xff]
    %v3650 = vld [vmem:[%s3640 + $0x48] sm:$0xff]
    %v3651 = vld [vmem:[%s3640 + $0x50] sm:$0xff]
    %v3652 = vld [vmem:[%s3640 + $0x58] sm:$0xff]
    %v3653 = vld [vmem:[%s3640 + $0x60] sm:$0xff]
    %v3654 = vld [vmem:[%s3640 + $0x68] sm:$0xff]
    %v3655 = vld [vmem:[%s3640 + $0x70] sm:$0xff]
    %v3656 = vld [vmem:[%s3640 + $0x78] sm:$0xff]
    %v3657 = vld [vmem:[%s3640 + $0x80] sm:$0xff]
    %v3658 = vld [vmem:[%s3640 + $0x88] sm:$0xff]
    %v3659 = vld [vmem:[%s3640 + $0x90] sm:$0xff]
    %v3660 = vld [vmem:[%s3640 + $0x98] sm:$0xff]
    %v3661 = vld [vmem:[%s3640 + $0xa0] sm:$0xff]
    %v3662 = vld [vmem:[%s3640 + $0xa8] sm:$0xff]
    %v3663 = vld [vmem:[%s3640 + $0xb0] sm:$0xff]
    %v3664 = vld [vmem:[%s3640 + $0xb8] sm:$0xff]
    %v3665 = vld [vmem:[%s3640 + $0xc0] sm:$0xff]
    %v3666 = vld [vmem:[%s3640 + $0xc8] sm:$0xff]
    %v3667 = vld [vmem:[%s3640 + $0xd0] sm:$0xff]
    %v3668 = vld [vmem:[%s3640 + $0xd8] sm:$0xff]
    %v3669 = vld [vmem:[%s3640 + $0xe0] sm:$0xff]
    %v3670 = vld [vmem:[%s3640 + $0xe8] sm:$0xff]
    %v3671 = vld [vmem:[%s3640 + $0xf0] sm:$0xff]
    %v3672 = vld [vmem:[%s3640 + $0xf8] sm:$0xff]
    %v3673 = vld [vmem:[%s3640 + $0x100] sm:$0xff]
    %v3674 = vld [vmem:[%s3640 + $0x108] sm:$0xff]
    %v3675 = vld [vmem:[%s3640 + $0x110] sm:$0xff]
    %v3676 = vld [vmem:[%s3640 + $0x118] sm:$0xff]
    %v3677 = vld [vmem:[%s3640 + $0x120] sm:$0xff]
    %v3678 = vld [vmem:[%s3640 + $0x128] sm:$0xff]
    %v3679 = vld [vmem:[%s3640 + $0x130] sm:$0xff]
    %v3680 = vld [vmem:[%s3640 + $0x138] sm:$0xff]
    %v3681 = vld [vmem:[%s3640 + $0x140] sm:$0xff]
    %v3682 = vld [vmem:[%s3640 + $0x148] sm:$0xff]
    %v3683 = vld [vmem:[%s3640 + $0x150] sm:$0xff]
    %v3684 = vld [vmem:[%s3640 + $0x158] sm:$0xff]
    %v3685 = vld [vmem:[%s3640 + $0x160] sm:$0xff]
    %v3686 = vld [vmem:[%s3640 + $0x168] sm:$0xff]
    %v3687 = vld [vmem:[%s3640 + $0x170] sm:$0xff]
    %v3688 = vld [vmem:[%s3640 + $0x178] sm:$0xff]
    %v3689 = vld [vmem:[%s3640 + $0x180] sm:$0xff]
    %v3690 = vld [vmem:[%s3640 + $0x188] sm:$0xff]
    %v3691 = vld [vmem:[%s3640 + $0x190] sm:$0xff]
    %v3692 = vld [vmem:[%s3640 + $0x198] sm:$0xff]
    %v3693 = vld [vmem:[%s3640 + $0x1a0] sm:$0xff]
    %v3694 = vld [vmem:[%s3640 + $0x1a8] sm:$0xff]
    %v3695 = vld [vmem:[%s3640 + $0x1b0] sm:$0xff]
    %v3696 = vld [vmem:[%s3640 + $0x1b8] sm:$0xff]
    %v3697 = vld [vmem:[%s3640 + $0x1c0] sm:$0xff]
    %v3698 = vld [vmem:[%s3640 + $0x1c8] sm:$0xff]
    %v3699 = vld [vmem:[%s3640 + $0x1d0] sm:$0xff]
    %v3700 = vld [vmem:[%s3640 + $0x1d8] sm:$0xff]
    %v3701 = vld [vmem:[%s3640 + $0x1e0] sm:$0xff]
    %v3702 = vld [vmem:[%s3640 + $0x1e8] sm:$0xff]
    %v3703 = vld [vmem:[%s3640 + $0x1f0] sm:$0xff]
    %v3704 = vld [vmem:[%s3640 + $0x1f8] sm:$0xff]
    %v3705 = vld [vmem:[%s3640 + $0x200] sm:$0xff]
    %v3706 = vld [vmem:[%s3640 + $0x208] sm:$0xff]
    %v3707 = vld [vmem:[%s3640 + $0x210] sm:$0xff]
    %v3708 = vld [vmem:[%s3640 + $0x218] sm:$0xff]
    %v3709 = vld [vmem:[%s3640 + $0x220] sm:$0xff]
    %v3710 = vld [vmem:[%s3640 + $0x228] sm:$0xff]
    %v3711 = vld [vmem:[%s3640 + $0x230] sm:$0xff]
    %v3712 = vld [vmem:[%s3640 + $0x238] sm:$0xff]
    %v3713 = vld [vmem:[%s3640 + $0x240] sm:$0xff]
    %v3714 = vld [vmem:[%s3640 + $0x248] sm:$0xff]
    %v3715 = vld [vmem:[%s3640 + $0x250] sm:$0xff]
    %v3716 = vld [vmem:[%s3640 + $0x258] sm:$0xff]
    %v3717 = vld [vmem:[%s3640 + $0x260] sm:$0xff]
    %v3718 = vld [vmem:[%s3640 + $0x268] sm:$0xff]
    %v3719 = vld [vmem:[%s3640 + $0x270] sm:$0xff]
    %v3720 = vld [vmem:[%s3640 + $0x278] sm:$0xff]
    %v3721 = vld [vmem:[%s3640 + $0x280] sm:$0xff]
    %v3722 = vld [vmem:[%s3640 + $0x288] sm:$0xff]
    %v3723 = vld [vmem:[%s3640 + $0x290] sm:$0xff]
    %v3724 = vld [vmem:[%s3640 + $0x298] sm:$0xff]
    %v3725 = vld [vmem:[%s3640 + $0x2a0] sm:$0xff]
    %v3726 = vld [vmem:[%s3640 + $0x2a8] sm:$0xff]
    %v3727 = vld [vmem:[%s3640 + $0x2b0] sm:$0xff]
    %v3728 = vld [vmem:[%s3640 + $0x2b8] sm:$0xff]
    %v3729 = vld [vmem:[%s3640 + $0x2c0] sm:$0xff]
    %v3730 = vld [vmem:[%s3640 + $0x2c8] sm:$0xff]
    %v3731 = vld [vmem:[%s3640 + $0x2d0] sm:$0xff]
    %v3732 = vld [vmem:[%s3640 + $0x2d8] sm:$0xff]
    %v3733 = vld [vmem:[%s3640 + $0x2e0] sm:$0xff]
    %v3734 = vld [vmem:[%s3640 + $0x2e8] sm:$0xff]
    %v3735 = vld [vmem:[%s3640 + $0x2f0] sm:$0xff]
    %v3736 = vld [vmem:[%s3640 + $0x2f8] sm:$0xff]
    %v3737 = vld [vmem:[%s3640 + $0x300] sm:$0xff]
    %v3738 = vld [vmem:[%s3640 + $0x308] sm:$0xff]
    %v3739 = vld [vmem:[%s3640 + $0x310] sm:$0xff]
    %v3740 = vld [vmem:[%s3640 + $0x318] sm:$0xff]
    %v3741 = vld [vmem:[%s3640 + $0x320] sm:$0xff]
    %v3742 = vld [vmem:[%s3640 + $0x328] sm:$0xff]
    %v3743 = vld [vmem:[%s3640 + $0x330] sm:$0xff]
    %v3744 = vld [vmem:[%s3640 + $0x338] sm:$0xff]
    %v3745 = vld [vmem:[%s3640 + $0x340] sm:$0xff]
    %v3746 = vld [vmem:[%s3640 + $0x348] sm:$0xff]
    %v3747 = vld [vmem:[%s3640 + $0x350] sm:$0xff]
    %v3748 = vld [vmem:[%s3640 + $0x358] sm:$0xff]
    %v3749 = vld [vmem:[%s3640 + $0x360] sm:$0xff]
    %v3750 = vld [vmem:[%s3640 + $0x368] sm:$0xff]
    %v3751 = vld [vmem:[%s3640 + $0x370] sm:$0xff]
    %v3752 = vld [vmem:[%s3640 + $0x378] sm:$0xff]
    %v3753 = vld [vmem:[%s3640 + $0x380] sm:$0xff]
    %v3754 = vld [vmem:[%s3640 + $0x388] sm:$0xff]
    %v3755 = vld [vmem:[%s3640 + $0x390] sm:$0xff]
    %v3756 = vld [vmem:[%s3640 + $0x398] sm:$0xff]
    %v3757 = vld [vmem:[%s3640 + $0x3a0] sm:$0xff]
    %v3758 = vld [vmem:[%s3640 + $0x3a8] sm:$0xff]
    %v3759 = vld [vmem:[%s3640 + $0x3b0] sm:$0xff]
    %v3760 = vld [vmem:[%s3640 + $0x3b8] sm:$0xff]
    %v3761 = vld [vmem:[%s3640 + $0x3c0] sm:$0xff]
    %v3762 = vld [vmem:[%s3640 + $0x3c8] sm:$0xff]
    %v3763 = vld [vmem:[%s3640 + $0x3d0] sm:$0xff]
    %v3764 = vld [vmem:[%s3640 + $0x3d8] sm:$0xff]
    %v3765 = vld [vmem:[%s3640 + $0x3e0] sm:$0xff]
    %v3766 = vld [vmem:[%s3640 + $0x3e8] sm:$0xff]
    %v3767 = vld [vmem:[%s3640 + $0x3f0] sm:$0xff]
    %v3768 = vld [vmem:[%s3640 + $0x3f8] sm:$0xff]
    %v3769 = vunpack.c.l.bf16 %v3641
    %v3770 = vunpack.c.h.bf16 %v3641
    %v3771 = vunpack.c.l.bf16 %v3642
    %v3772 = vunpack.c.h.bf16 %v3642
    %v3773 = vunpack.c.l.bf16 %v3643
    %v3774 = vunpack.c.h.bf16 %v3643
    %v3775 = vunpack.c.l.bf16 %v3644
    %v3776 = vunpack.c.h.bf16 %v3644
    %v3777 = vunpack.c.l.bf16 %v3645
    %v3778 = vunpack.c.h.bf16 %v3645
    %v3779 = vunpack.c.l.bf16 %v3646
    %v3780 = vunpack.c.h.bf16 %v3646
    %v3781 = vunpack.c.l.bf16 %v3647
    %v3782 = vunpack.c.h.bf16 %v3647
    %v3783 = vunpack.c.l.bf16 %v3648
    %v3784 = vunpack.c.h.bf16 %v3648
    %v3785 = vunpack.c.l.bf16 %v3649
    %v3786 = vunpack.c.h.bf16 %v3649
    %v3787 = vunpack.c.l.bf16 %v3650
    %v3788 = vunpack.c.h.bf16 %v3650
    %v3789 = vunpack.c.l.bf16 %v3651
    %v3790 = vunpack.c.h.bf16 %v3651
    %v3791 = vunpack.c.l.bf16 %v3652
    %v3792 = vunpack.c.h.bf16 %v3652
    %v3793 = vunpack.c.l.bf16 %v3653
    %v3794 = vunpack.c.h.bf16 %v3653
    %v3795 = vunpack.c.l.bf16 %v3654
    %v3796 = vunpack.c.h.bf16 %v3654
    %v3797 = vunpack.c.l.bf16 %v3655
    %v3798 = vunpack.c.h.bf16 %v3655
    %v3799 = vunpack.c.l.bf16 %v3656
    %v3800 = vunpack.c.h.bf16 %v3656
    %v3801 = vunpack.c.l.bf16 %v3657
    %v3802 = vunpack.c.h.bf16 %v3657
    %v3803 = vunpack.c.l.bf16 %v3658
    %v3804 = vunpack.c.h.bf16 %v3658
    %v3805 = vunpack.c.l.bf16 %v3659
    %v3806 = vunpack.c.h.bf16 %v3659
    %v3807 = vunpack.c.l.bf16 %v3660
    %v3808 = vunpack.c.h.bf16 %v3660
    %v3809 = vunpack.c.l.bf16 %v3661
    %v3810 = vunpack.c.h.bf16 %v3661
    %v3811 = vunpack.c.l.bf16 %v3662
    %v3812 = vunpack.c.h.bf16 %v3662
    %v3813 = vunpack.c.l.bf16 %v3663
    %v3814 = vunpack.c.h.bf16 %v3663
    %v3815 = vunpack.c.l.bf16 %v3664
    %v3816 = vunpack.c.h.bf16 %v3664
    %v3817 = vunpack.c.l.bf16 %v3665
    %v3818 = vunpack.c.h.bf16 %v3665
    %v3819 = vunpack.c.l.bf16 %v3666
    %v3820 = vunpack.c.h.bf16 %v3666
    %v3821 = vunpack.c.l.bf16 %v3667
    %v3822 = vunpack.c.h.bf16 %v3667
    %v3823 = vunpack.c.l.bf16 %v3668
    %v3824 = vunpack.c.h.bf16 %v3668
    %v3825 = vunpack.c.l.bf16 %v3669
    %v3826 = vunpack.c.h.bf16 %v3669
    %v3827 = vunpack.c.l.bf16 %v3670
    %v3828 = vunpack.c.h.bf16 %v3670
    %v3829 = vunpack.c.l.bf16 %v3671
    %v3830 = vunpack.c.h.bf16 %v3671
    %v3831 = vunpack.c.l.bf16 %v3672
    %v3832 = vunpack.c.h.bf16 %v3672
    %v3833 = vunpack.c.l.bf16 %v3673
    %v3834 = vunpack.c.h.bf16 %v3673
    %v3835 = vunpack.c.l.bf16 %v3674
    %v3836 = vunpack.c.h.bf16 %v3674
    %v3837 = vunpack.c.l.bf16 %v3675
    %v3838 = vunpack.c.h.bf16 %v3675
    %v3839 = vunpack.c.l.bf16 %v3676
    %v3840 = vunpack.c.h.bf16 %v3676
    %v3841 = vunpack.c.l.bf16 %v3677
    %v3842 = vunpack.c.h.bf16 %v3677
    %v3843 = vunpack.c.l.bf16 %v3678
    %v3844 = vunpack.c.h.bf16 %v3678
    %v3845 = vunpack.c.l.bf16 %v3679
    %v3846 = vunpack.c.h.bf16 %v3679
    %v3847 = vunpack.c.l.bf16 %v3680
    %v3848 = vunpack.c.h.bf16 %v3680
    %v3849 = vunpack.c.l.bf16 %v3681
    %v3850 = vunpack.c.h.bf16 %v3681
    %v3851 = vunpack.c.l.bf16 %v3682
    %v3852 = vunpack.c.h.bf16 %v3682
    %v3853 = vunpack.c.l.bf16 %v3683
    %v3854 = vunpack.c.h.bf16 %v3683
    %v3855 = vunpack.c.l.bf16 %v3684
    %v3856 = vunpack.c.h.bf16 %v3684
    %v3857 = vunpack.c.l.bf16 %v3685
    %v3858 = vunpack.c.h.bf16 %v3685
    %v3859 = vunpack.c.l.bf16 %v3686
    %v3860 = vunpack.c.h.bf16 %v3686
    %v3861 = vunpack.c.l.bf16 %v3687
    %v3862 = vunpack.c.h.bf16 %v3687
    %v3863 = vunpack.c.l.bf16 %v3688
    %v3864 = vunpack.c.h.bf16 %v3688
    %v3865 = vunpack.c.l.bf16 %v3689
    %v3866 = vunpack.c.h.bf16 %v3689
    %v3867 = vunpack.c.l.bf16 %v3690
    %v3868 = vunpack.c.h.bf16 %v3690
    %v3869 = vunpack.c.l.bf16 %v3691
    %v3870 = vunpack.c.h.bf16 %v3691
    %v3871 = vunpack.c.l.bf16 %v3692
    %v3872 = vunpack.c.h.bf16 %v3692
    %v3873 = vunpack.c.l.bf16 %v3693
    %v3874 = vunpack.c.h.bf16 %v3693
    %v3875 = vunpack.c.l.bf16 %v3694
    %v3876 = vunpack.c.h.bf16 %v3694
    %v3877 = vunpack.c.l.bf16 %v3695
    %v3878 = vunpack.c.h.bf16 %v3695
    %v3879 = vunpack.c.l.bf16 %v3696
    %v3880 = vunpack.c.h.bf16 %v3696
    %v3881 = vunpack.c.l.bf16 %v3697
    %v3882 = vunpack.c.h.bf16 %v3697
    %v3883 = vunpack.c.l.bf16 %v3698
    %v3884 = vunpack.c.h.bf16 %v3698
    %v3885 = vunpack.c.l.bf16 %v3699
    %v3886 = vunpack.c.h.bf16 %v3699
    %v3887 = vunpack.c.l.bf16 %v3700
    %v3888 = vunpack.c.h.bf16 %v3700
    %v3889 = vunpack.c.l.bf16 %v3701
    %v3890 = vunpack.c.h.bf16 %v3701
    %v3891 = vunpack.c.l.bf16 %v3702
    %v3892 = vunpack.c.h.bf16 %v3702
    %v3893 = vunpack.c.l.bf16 %v3703
    %v3894 = vunpack.c.h.bf16 %v3703
    %v3895 = vunpack.c.l.bf16 %v3704
    %v3896 = vunpack.c.h.bf16 %v3704
    %v3897 = vunpack.c.l.bf16 %v3705
    %v3898 = vunpack.c.h.bf16 %v3705
    %v3899 = vunpack.c.l.bf16 %v3706
    %v3900 = vunpack.c.h.bf16 %v3706
    %v3901 = vunpack.c.l.bf16 %v3707
    %v3902 = vunpack.c.h.bf16 %v3707
    %v3903 = vunpack.c.l.bf16 %v3708
    %v3904 = vunpack.c.h.bf16 %v3708
    %v3905 = vunpack.c.l.bf16 %v3709
    %v3906 = vunpack.c.h.bf16 %v3709
    %v3907 = vunpack.c.l.bf16 %v3710
    %v3908 = vunpack.c.h.bf16 %v3710
    %v3909 = vunpack.c.l.bf16 %v3711
    %v3910 = vunpack.c.h.bf16 %v3711
    %v3911 = vunpack.c.l.bf16 %v3712
    %v3912 = vunpack.c.h.bf16 %v3712
    %v3913 = vunpack.c.l.bf16 %v3713
    %v3914 = vunpack.c.h.bf16 %v3713
    %v3915 = vunpack.c.l.bf16 %v3714
    %v3916 = vunpack.c.h.bf16 %v3714
    %v3917 = vunpack.c.l.bf16 %v3715
    %v3918 = vunpack.c.h.bf16 %v3715
    %v3919 = vunpack.c.l.bf16 %v3716
    %v3920 = vunpack.c.h.bf16 %v3716
    %v3921 = vunpack.c.l.bf16 %v3717
    %v3922 = vunpack.c.h.bf16 %v3717
    %v3923 = vunpack.c.l.bf16 %v3718
    %v3924 = vunpack.c.h.bf16 %v3718
    %v3925 = vunpack.c.l.bf16 %v3719
    %v3926 = vunpack.c.h.bf16 %v3719
    %v3927 = vunpack.c.l.bf16 %v3720
    %v3928 = vunpack.c.h.bf16 %v3720
    %v3929 = vunpack.c.l.bf16 %v3721
    %v3930 = vunpack.c.h.bf16 %v3721
    %v3931 = vunpack.c.l.bf16 %v3722
    %v3932 = vunpack.c.h.bf16 %v3722
    %v3933 = vunpack.c.l.bf16 %v3723
    %v3934 = vunpack.c.h.bf16 %v3723
    %v3935 = vunpack.c.l.bf16 %v3724
    %v3936 = vunpack.c.h.bf16 %v3724
    %v3937 = vunpack.c.l.bf16 %v3725
    %v3938 = vunpack.c.h.bf16 %v3725
    %v3939 = vunpack.c.l.bf16 %v3726
    %v3940 = vunpack.c.h.bf16 %v3726
    %v3941 = vunpack.c.l.bf16 %v3727
    %v3942 = vunpack.c.h.bf16 %v3727
    %v3943 = vunpack.c.l.bf16 %v3728
    %v3944 = vunpack.c.h.bf16 %v3728
    %v3945 = vunpack.c.l.bf16 %v3729
    %v3946 = vunpack.c.h.bf16 %v3729
    %v3947 = vunpack.c.l.bf16 %v3730
    %v3948 = vunpack.c.h.bf16 %v3730
    %v3949 = vunpack.c.l.bf16 %v3731
    %v3950 = vunpack.c.h.bf16 %v3731
    %v3951 = vunpack.c.l.bf16 %v3732
    %v3952 = vunpack.c.h.bf16 %v3732
    %v3953 = vunpack.c.l.bf16 %v3733
    %v3954 = vunpack.c.h.bf16 %v3733
    %v3955 = vunpack.c.l.bf16 %v3734
    %v3956 = vunpack.c.h.bf16 %v3734
    %v3957 = vunpack.c.l.bf16 %v3735
    %v3958 = vunpack.c.h.bf16 %v3735
    %v3959 = vunpack.c.l.bf16 %v3736
    %v3960 = vunpack.c.h.bf16 %v3736
    %v3961 = vunpack.c.l.bf16 %v3737
    %v3962 = vunpack.c.h.bf16 %v3737
    %v3963 = vunpack.c.l.bf16 %v3738
    %v3964 = vunpack.c.h.bf16 %v3738
    %v3965 = vunpack.c.l.bf16 %v3739
    %v3966 = vunpack.c.h.bf16 %v3739
    %v3967 = vunpack.c.l.bf16 %v3740
    %v3968 = vunpack.c.h.bf16 %v3740
    %v3969 = vunpack.c.l.bf16 %v3741
    %v3970 = vunpack.c.h.bf16 %v3741
    %v3971 = vunpack.c.l.bf16 %v3742
    %v3972 = vunpack.c.h.bf16 %v3742
    %v3973 = vunpack.c.l.bf16 %v3743
    %v3974 = vunpack.c.h.bf16 %v3743
    %v3975 = vunpack.c.l.bf16 %v3744
    %v3976 = vunpack.c.h.bf16 %v3744
    %v3977 = vunpack.c.l.bf16 %v3745
    %v3978 = vunpack.c.h.bf16 %v3745
    %v3979 = vunpack.c.l.bf16 %v3746
    %v3980 = vunpack.c.h.bf16 %v3746
    %v3981 = vunpack.c.l.bf16 %v3747
    %v3982 = vunpack.c.h.bf16 %v3747
    %v3983 = vunpack.c.l.bf16 %v3748
    %v3984 = vunpack.c.h.bf16 %v3748
    %v3985 = vunpack.c.l.bf16 %v3749
    %v3986 = vunpack.c.h.bf16 %v3749
    %v3987 = vunpack.c.l.bf16 %v3750
    %v3988 = vunpack.c.h.bf16 %v3750
    %v3989 = vunpack.c.l.bf16 %v3751
    %v3990 = vunpack.c.h.bf16 %v3751
    %v3991 = vunpack.c.l.bf16 %v3752
    %v3992 = vunpack.c.h.bf16 %v3752
    %v3993 = vunpack.c.l.bf16 %v3753
    %v3994 = vunpack.c.h.bf16 %v3753
    %v3995 = vunpack.c.l.bf16 %v3754
    %v3996 = vunpack.c.h.bf16 %v3754
    %v3997 = vunpack.c.l.bf16 %v3755
    %v3998 = vunpack.c.h.bf16 %v3755
    %v3999 = vunpack.c.l.bf16 %v3756
    %v4000 = vunpack.c.h.bf16 %v3756
    %v4001 = vunpack.c.l.bf16 %v3757
    %v4002 = vunpack.c.h.bf16 %v3757
    %v4003 = vunpack.c.l.bf16 %v3758
    %v4004 = vunpack.c.h.bf16 %v3758
    %v4005 = vunpack.c.l.bf16 %v3759
    %v4006 = vunpack.c.h.bf16 %v3759
    %v4007 = vunpack.c.l.bf16 %v3760
    %v4008 = vunpack.c.h.bf16 %v3760
    %v4009 = vunpack.c.l.bf16 %v3761
    %v4010 = vunpack.c.h.bf16 %v3761
    %v4011 = vunpack.c.l.bf16 %v3762
    %v4012 = vunpack.c.h.bf16 %v3762
    %v4013 = vunpack.c.l.bf16 %v3763
    %v4014 = vunpack.c.h.bf16 %v3763
    %v4015 = vunpack.c.l.bf16 %v3764
    %v4016 = vunpack.c.h.bf16 %v3764
    %v4017 = vunpack.c.l.bf16 %v3765
    %v4018 = vunpack.c.h.bf16 %v3765
    %v4019 = vunpack.c.l.bf16 %v3766
    %v4020 = vunpack.c.h.bf16 %v3766
    %v4021 = vunpack.c.l.bf16 %v3767
    %v4022 = vunpack.c.h.bf16 %v3767
    %v4023 = vunpack.c.l.bf16 %v3768
    %v4024 = vunpack.c.h.bf16 %v3768
    %s4025 = scalar_lea.vmem [#allocation7], 5
    %v4026 = vld [vmem:[%s4025] ss:$8 sm:$0xf]
    %v4028 = vperm.slane %v4026, 0
    %v4029 = vperm.slane %v4026, 1
    %v4030 = vperm.slane %v4026, 2
    %v4031 = vperm.slane %v4026, 3
    %4036 = vmatpush.msra.mxu0 %v3829
    %4037 = vmatpush.msra.mxu0 %v3825
    %4038 = vmatpush.msra.mxu0 %v3821
    %4039 = vmatpush.msra.mxu0 %v3817
    %4040 = vmatpush.msra.mxu0 %v3813
    %4041 = vmatpush.msra.mxu0 %v3809
    %4042 = vmatpush.msra.mxu0 %v3805
    %4043 = vmatpush.msra.mxu0 %v3801
    %4044 = vmatpush.msra.mxu0 %v3797
    %4045 = vmatpush.msra.mxu0 %v3793
    %4046 = vmatpush.msra.mxu0 %v3789
    %4047 = vmatpush.msra.mxu0 %v3785
    %4048 = vmatpush.msra.mxu0 %v3781
    %4049 = vmatpush.msra.mxu0 %v3777
    %4050 = vmatpush.msra.mxu0 %v3773
    %4051 = vmatpush.msra.mxu0 %v3769
    %4052 = vmatmul.f32.gmra.mxu0 %v3398
    %v4053 = vpop.f32.mrf.mxu0
    %v4054 = vadd.f32 %v4028, %v4053
    %4055 = vdwg.mxu0
    %4056 = vmatpush.msra.mxu0 %v3893
    %4057 = vmatpush.msra.mxu0 %v3889
    %4058 = vmatpush.msra.mxu0 %v3885
    %4059 = vmatpush.msra.mxu0 %v3881
    %4060 = vmatpush.msra.mxu0 %v3877
    %4061 = vmatpush.msra.mxu0 %v3873
    %4062 = vmatpush.msra.mxu0 %v3869
    %4063 = vmatpush.msra.mxu0 %v3865
    %4064 = vmatpush.msra.mxu0 %v3861
    %4065 = vmatpush.msra.mxu0 %v3857
    %4066 = vmatpush.msra.mxu0 %v3853
    %4067 = vmatpush.msra.mxu0 %v3849
    %4068 = vmatpush.msra.mxu0 %v3845
    %4069 = vmatpush.msra.mxu0 %v3841
    %4070 = vmatpush.msra.mxu0 %v3837
    %4071 = vmatpush.msra.mxu0 %v3833
    %4072 = vmatmul.f32.gmra.mxu0 %v3478
    %v4073 = vpop.f32.mrf.mxu0
    %v4074 = vadd.f32 %v4054, %v4073
    %4075 = vdwg.mxu0
    %4076 = vmatpush.msra.mxu0 %v3957
    %4077 = vmatpush.msra.mxu0 %v3953
    %4078 = vmatpush.msra.mxu0 %v3949
    %4079 = vmatpush.msra.mxu0 %v3945
    %4080 = vmatpush.msra.mxu0 %v3941
    %4081 = vmatpush.msra.mxu0 %v3937
    %4082 = vmatpush.msra.mxu0 %v3933
    %4083 = vmatpush.msra.mxu0 %v3929
    %4084 = vmatpush.msra.mxu0 %v3925
    %4085 = vmatpush.msra.mxu0 %v3921
    %4086 = vmatpush.msra.mxu0 %v3917
    %4087 = vmatpush.msra.mxu0 %v3913
    %4088 = vmatpush.msra.mxu0 %v3909
    %4089 = vmatpush.msra.mxu0 %v3905
    %4090 = vmatpush.msra.mxu0 %v3901
    %4091 = vmatpush.msra.mxu0 %v3897
    %4092 = vmatmul.f32.gmra.mxu0 %v3558
    %v4093 = vpop.f32.mrf.mxu0
    %v4094 = vadd.f32 %v4074, %v4093
    %4095 = vdwg.mxu0
    %4096 = vmatpush.msra.mxu0 %v4021
    %4097 = vmatpush.msra.mxu0 %v4017
    %4098 = vmatpush.msra.mxu0 %v4013
    %4099 = vmatpush.msra.mxu0 %v4009
    %4100 = vmatpush.msra.mxu0 %v4005
    %4101 = vmatpush.msra.mxu0 %v4001
    %4102 = vmatpush.msra.mxu0 %v3997
    %4103 = vmatpush.msra.mxu0 %v3993
    %4104 = vmatpush.msra.mxu0 %v3989
    %4105 = vmatpush.msra.mxu0 %v3985
    %4106 = vmatpush.msra.mxu0 %v3981
    %4107 = vmatpush.msra.mxu0 %v3977
    %4108 = vmatpush.msra.mxu0 %v3973
    %4109 = vmatpush.msra.mxu0 %v3969
    %4110 = vmatpush.msra.mxu0 %v3965
    %4111 = vmatpush.msra.mxu0 %v3961
    %4112 = vmatmul.f32.gmra.mxu0 %v3638
    %v4113 = vpop.f32.mrf.mxu0
    %v4114 = vadd.f32 %v4094, %v4113
    %4115 = vdwg.mxu0
    %4116 = vmatpush.msra.mxu0 %v3830
    %4117 = vmatpush.msra.mxu0 %v3826
    %4118 = vmatpush.msra.mxu0 %v3822
    %4119 = vmatpush.msra.mxu0 %v3818
    %4120 = vmatpush.msra.mxu0 %v3814
    %4121 = vmatpush.msra.mxu0 %v3810
    %4122 = vmatpush.msra.mxu0 %v3806
    %4123 = vmatpush.msra.mxu0 %v3802
    %4124 = vmatpush.msra.mxu0 %v3798
    %4125 = vmatpush.msra.mxu0 %v3794
    %4126 = vmatpush.msra.mxu0 %v3790
    %4127 = vmatpush.msra.mxu0 %v3786
    %4128 = vmatpush.msra.mxu0 %v3782
    %4129 = vmatpush.msra.mxu0 %v3778
    %4130 = vmatpush.msra.mxu0 %v3774
    %4131 = vmatpush.msra.mxu0 %v3770
    %4132 = vmatmul.f32.gmra.mxu0 %v3398
    %v4133 = vpop.f32.mrf.mxu0
    %v4134 = vadd.f32 %v4029, %v4133
    %4135 = vdwg.mxu0
    %4136 = vmatpush.msra.mxu0 %v3894
    %4137 = vmatpush.msra.mxu0 %v3890
    %4138 = vmatpush.msra.mxu0 %v3886
    %4139 = vmatpush.msra.mxu0 %v3882
    %4140 = vmatpush.msra.mxu0 %v3878
    %4141 = vmatpush.msra.mxu0 %v3874
    %4142 = vmatpush.msra.mxu0 %v3870
    %4143 = vmatpush.msra.mxu0 %v3866
    %4144 = vmatpush.msra.mxu0 %v3862
    %4145 = vmatpush.msra.mxu0 %v3858
    %4146 = vmatpush.msra.mxu0 %v3854
    %4147 = vmatpush.msra.mxu0 %v3850
    %4148 = vmatpush.msra.mxu0 %v3846
    %4149 = vmatpush.msra.mxu0 %v3842
    %4150 = vmatpush.msra.mxu0 %v3838
    %4151 = vmatpush.msra.mxu0 %v3834
    %4152 = vmatmul.f32.gmra.mxu0 %v3478
    %v4153 = vpop.f32.mrf.mxu0
    %v4154 = vadd.f32 %v4134, %v4153
    %4155 = vdwg.mxu0
    %4156 = vmatpush.msra.mxu0 %v3958
    %4157 = vmatpush.msra.mxu0 %v3954
    %4158 = vmatpush.msra.mxu0 %v3950
    %4159 = vmatpush.msra.mxu0 %v3946
    %4160 = vmatpush.msra.mxu0 %v3942
    %4161 = vmatpush.msra.mxu0 %v3938
    %4162 = vmatpush.msra.mxu0 %v3934
    %4163 = vmatpush.msra.mxu0 %v3930
    %4164 = vmatpush.msra.mxu0 %v3926
    %4165 = vmatpush.msra.mxu0 %v3922
    %4166 = vmatpush.msra.mxu0 %v3918
    %4167 = vmatpush.msra.mxu0 %v3914
    %4168 = vmatpush.msra.mxu0 %v3910
    %4169 = vmatpush.msra.mxu0 %v3906
    %4170 = vmatpush.msra.mxu0 %v3902
    %4171 = vmatpush.msra.mxu0 %v3898
    %4172 = vmatmul.f32.gmra.mxu0 %v3558
    %v4173 = vpop.f32.mrf.mxu0
    %v4174 = vadd.f32 %v4154, %v4173
    %4175 = vdwg.mxu0
    %4176 = vmatpush.msra.mxu0 %v4022
    %4177 = vmatpush.msra.mxu0 %v4018
    %4178 = vmatpush.msra.mxu0 %v4014
    %4179 = vmatpush.msra.mxu0 %v4010
    %4180 = vmatpush.msra.mxu0 %v4006
    %4181 = vmatpush.msra.mxu0 %v4002
    %4182 = vmatpush.msra.mxu0 %v3998
    %4183 = vmatpush.msra.mxu0 %v3994
    %4184 = vmatpush.msra.mxu0 %v3990
    %4185 = vmatpush.msra.mxu0 %v3986
    %4186 = vmatpush.msra.mxu0 %v3982
    %4187 = vmatpush.msra.mxu0 %v3978
    %4188 = vmatpush.msra.mxu0 %v3974
    %4189 = vmatpush.msra.mxu0 %v3970
    %4190 = vmatpush.msra.mxu0 %v3966
    %4191 = vmatpush.msra.mxu0 %v3962
    %4192 = vmatmul.f32.gmra.mxu0 %v3638
    %v4193 = vpop.f32.mrf.mxu0
    %v4194 = vadd.f32 %v4174, %v4193
    %4195 = vdwg.mxu0
    %4196 = vmatpush.msra.mxu0 %v3831
    %4197 = vmatpush.msra.mxu0 %v3827
    %4198 = vmatpush.msra.mxu0 %v3823
    %4199 = vmatpush.msra.mxu0 %v3819
    %4200 = vmatpush.msra.mxu0 %v3815
    %4201 = vmatpush.msra.mxu0 %v3811
    %4202 = vmatpush.msra.mxu0 %v3807
    %4203 = vmatpush.msra.mxu0 %v3803
    %4204 = vmatpush.msra.mxu0 %v3799
    %4205 = vmatpush.msra.mxu0 %v3795
    %4206 = vmatpush.msra.mxu0 %v3791
    %4207 = vmatpush.msra.mxu0 %v3787
    %4208 = vmatpush.msra.mxu0 %v3783
    %4209 = vmatpush.msra.mxu0 %v3779
    %4210 = vmatpush.msra.mxu0 %v3775
    %4211 = vmatpush.msra.mxu0 %v3771
    %4212 = vmatmul.f32.gmra.mxu0 %v3398
    %v4213 = vpop.f32.mrf.mxu0
    %v4214 = vadd.f32 %v4030, %v4213
    %4215 = vdwg.mxu0
    %4216 = vmatpush.msra.mxu0 %v3895
    %4217 = vmatpush.msra.mxu0 %v3891
    %4218 = vmatpush.msra.mxu0 %v3887
    %4219 = vmatpush.msra.mxu0 %v3883
    %4220 = vmatpush.msra.mxu0 %v3879
    %4221 = vmatpush.msra.mxu0 %v3875
    %4222 = vmatpush.msra.mxu0 %v3871
    %4223 = vmatpush.msra.mxu0 %v3867
    %4224 = vmatpush.msra.mxu0 %v3863
    %4225 = vmatpush.msra.mxu0 %v3859
    %4226 = vmatpush.msra.mxu0 %v3855
    %4227 = vmatpush.msra.mxu0 %v3851
    %4228 = vmatpush.msra.mxu0 %v3847
    %4229 = vmatpush.msra.mxu0 %v3843
    %4230 = vmatpush.msra.mxu0 %v3839
    %4231 = vmatpush.msra.mxu0 %v3835
    %4232 = vmatmul.f32.gmra.mxu0 %v3478
    %v4233 = vpop.f32.mrf.mxu0
    %v4234 = vadd.f32 %v4214, %v4233
    %4235 = vdwg.mxu0
    %4236 = vmatpush.msra.mxu0 %v3959
    %4237 = vmatpush.msra.mxu0 %v3955
    %4238 = vmatpush.msra.mxu0 %v3951
    %4239 = vmatpush.msra.mxu0 %v3947
    %4240 = vmatpush.msra.mxu0 %v3943
    %4241 = vmatpush.msra.mxu0 %v3939
    %4242 = vmatpush.msra.mxu0 %v3935
    %4243 = vmatpush.msra.mxu0 %v3931
    %4244 = vmatpush.msra.mxu0 %v3927
    %4245 = vmatpush.msra.mxu0 %v3923
    %4246 = vmatpush.msra.mxu0 %v3919
    %4247 = vmatpush.msra.mxu0 %v3915
    %4248 = vmatpush.msra.mxu0 %v3911
    %4249 = vmatpush.msra.mxu0 %v3907
    %4250 = vmatpush.msra.mxu0 %v3903
    %4251 = vmatpush.msra.mxu0 %v3899
    %4252 = vmatmul.f32.gmra.mxu0 %v3558
    %v4253 = vpop.f32.mrf.mxu0
    %v4254 = vadd.f32 %v4234, %v4253
    %4255 = vdwg.mxu0
    %4256 = vmatpush.msra.mxu0 %v4023
    %4257 = vmatpush.msra.mxu0 %v4019
    %4258 = vmatpush.msra.mxu0 %v4015
    %4259 = vmatpush.msra.mxu0 %v4011
    %4260 = vmatpush.msra.mxu0 %v4007
    %4261 = vmatpush.msra.mxu0 %v4003
    %4262 = vmatpush.msra.mxu0 %v3999
    %4263 = vmatpush.msra.mxu0 %v3995
    %4264 = vmatpush.msra.mxu0 %v3991
    %4265 = vmatpush.msra.mxu0 %v3987
    %4266 = vmatpush.msra.mxu0 %v3983
    %4267 = vmatpush.msra.mxu0 %v3979
    %4268 = vmatpush.msra.mxu0 %v3975
    %4269 = vmatpush.msra.mxu0 %v3971
    %4270 = vmatpush.msra.mxu0 %v3967
    %4271 = vmatpush.msra.mxu0 %v3963
    %4272 = vmatmul.f32.gmra.mxu0 %v3638
    %v4273 = vpop.f32.mrf.mxu0
    %v4274 = vadd.f32 %v4254, %v4273
    %4275 = vdwg.mxu0
    %4276 = vmatpush.msra.mxu0 %v3832
    %4277 = vmatpush.msra.mxu0 %v3828
    %4278 = vmatpush.msra.mxu0 %v3824
    %4279 = vmatpush.msra.mxu0 %v3820
    %4280 = vmatpush.msra.mxu0 %v3816
    %4281 = vmatpush.msra.mxu0 %v3812
    %4282 = vmatpush.msra.mxu0 %v3808
    %4283 = vmatpush.msra.mxu0 %v3804
    %4284 = vmatpush.msra.mxu0 %v3800
    %4285 = vmatpush.msra.mxu0 %v3796
    %4286 = vmatpush.msra.mxu0 %v3792
    %4287 = vmatpush.msra.mxu0 %v3788
    %4288 = vmatpush.msra.mxu0 %v3784
    %4289 = vmatpush.msra.mxu0 %v3780
    %4290 = vmatpush.msra.mxu0 %v3776
    %4291 = vmatpush.msra.mxu0 %v3772
    %4292 = vmatmul.f32.gmra.mxu0 %v3398
    %v4293 = vpop.f32.mrf.mxu0
    %v4294 = vadd.f32 %v4031, %v4293
    %4295 = vdwg.mxu0
    %4296 = vmatpush.msra.mxu0 %v3896
    %4297 = vmatpush.msra.mxu0 %v3892
    %4298 = vmatpush.msra.mxu0 %v3888
    %4299 = vmatpush.msra.mxu0 %v3884
    %4300 = vmatpush.msra.mxu0 %v3880
    %4301 = vmatpush.msra.mxu0 %v3876
    %4302 = vmatpush.msra.mxu0 %v3872
    %4303 = vmatpush.msra.mxu0 %v3868
    %4304 = vmatpush.msra.mxu0 %v3864
    %4305 = vmatpush.msra.mxu0 %v3860
    %4306 = vmatpush.msra.mxu0 %v3856
    %4307 = vmatpush.msra.mxu0 %v3852
    %4308 = vmatpush.msra.mxu0 %v3848
    %4309 = vmatpush.msra.mxu0 %v3844
    %4310 = vmatpush.msra.mxu0 %v3840
    %4311 = vmatpush.msra.mxu0 %v3836
    %4312 = vmatmul.f32.gmra.mxu0 %v3478
    %v4313 = vpop.f32.mrf.mxu0
    %v4314 = vadd.f32 %v4294, %v4313
    %4315 = vdwg.mxu0
    %4316 = vmatpush.msra.mxu0 %v3960
    %4317 = vmatpush.msra.mxu0 %v3956
    %4318 = vmatpush.msra.mxu0 %v3952
    %4319 = vmatpush.msra.mxu0 %v3948
    %4320 = vmatpush.msra.mxu0 %v3944
    %4321 = vmatpush.msra.mxu0 %v3940
    %4322 = vmatpush.msra.mxu0 %v3936
    %4323 = vmatpush.msra.mxu0 %v3932
    %4324 = vmatpush.msra.mxu0 %v3928
    %4325 = vmatpush.msra.mxu0 %v3924
    %4326 = vmatpush.msra.mxu0 %v3920
    %4327 = vmatpush.msra.mxu0 %v3916
    %4328 = vmatpush.msra.mxu0 %v3912
    %4329 = vmatpush.msra.mxu0 %v3908
    %4330 = vmatpush.msra.mxu0 %v3904
    %4331 = vmatpush.msra.mxu0 %v3900
    %4332 = vmatmul.f32.gmra.mxu0 %v3558
    %v4333 = vpop.f32.mrf.mxu0
    %v4334 = vadd.f32 %v4314, %v4333
    %4335 = vdwg.mxu0
    %4336 = vmatpush.msra.mxu0 %v4024
    %4337 = vmatpush.msra.mxu0 %v4020
    %4338 = vmatpush.msra.mxu0 %v4016
    %4339 = vmatpush.msra.mxu0 %v4012
    %4340 = vmatpush.msra.mxu0 %v4008
    %4341 = vmatpush.msra.mxu0 %v4004
    %4342 = vmatpush.msra.mxu0 %v4000
    %4343 = vmatpush.msra.mxu0 %v3996
    %4344 = vmatpush.msra.mxu0 %v3992
    %4345 = vmatpush.msra.mxu0 %v3988
    %4346 = vmatpush.msra.mxu0 %v3984
    %4347 = vmatpush.msra.mxu0 %v3980
    %4348 = vmatpush.msra.mxu0 %v3976
    %4349 = vmatpush.msra.mxu0 %v3972
    %4350 = vmatpush.msra.mxu0 %v3968
    %4351 = vmatpush.msra.mxu0 %v3964
    %4352 = vmatmul.f32.gmra.mxu0 %v3638
    %v4353 = vpop.f32.mrf.mxu0
    %v4354 = vadd.f32 %v4334, %v4353
    %4355 = vdwg.mxu0
    %s4356 = scalar_lea.vmem [#allocation5], 6144
    %v4357 = vld [vmem:[%s4356] sm:$0xff]
    %v4358 = vld [vmem:[%s4356 + $0x8] sm:$0xff]
    %v4359 = vld [vmem:[%s4356 + $0x10] sm:$0xff]
    %v4360 = vld [vmem:[%s4356 + $0x18] sm:$0xff]
    %v4361 = vld [vmem:[%s4356 + $0x20] sm:$0xff]
    %v4362 = vld [vmem:[%s4356 + $0x28] sm:$0xff]
    %v4363 = vld [vmem:[%s4356 + $0x30] sm:$0xff]
    %v4364 = vld [vmem:[%s4356 + $0x38] sm:$0xff]
    %v4365 = vld [vmem:[%s4356 + $0x40] sm:$0xff]
    %v4366 = vld [vmem:[%s4356 + $0x48] sm:$0xff]
    %v4367 = vld [vmem:[%s4356 + $0x50] sm:$0xff]
    %v4368 = vld [vmem:[%s4356 + $0x58] sm:$0xff]
    %v4369 = vld [vmem:[%s4356 + $0x60] sm:$0xff]
    %v4370 = vld [vmem:[%s4356 + $0x68] sm:$0xff]
    %v4371 = vld [vmem:[%s4356 + $0x70] sm:$0xff]
    %v4372 = vld [vmem:[%s4356 + $0x78] sm:$0xff]
    %v4373 = vld [vmem:[%s4356 + $0x80] sm:$0xff]
    %v4374 = vld [vmem:[%s4356 + $0x88] sm:$0xff]
    %v4375 = vld [vmem:[%s4356 + $0x90] sm:$0xff]
    %v4376 = vld [vmem:[%s4356 + $0x98] sm:$0xff]
    %v4377 = vld [vmem:[%s4356 + $0xa0] sm:$0xff]
    %v4378 = vld [vmem:[%s4356 + $0xa8] sm:$0xff]
    %v4379 = vld [vmem:[%s4356 + $0xb0] sm:$0xff]
    %v4380 = vld [vmem:[%s4356 + $0xb8] sm:$0xff]
    %v4381 = vld [vmem:[%s4356 + $0xc0] sm:$0xff]
    %v4382 = vld [vmem:[%s4356 + $0xc8] sm:$0xff]
    %v4383 = vld [vmem:[%s4356 + $0xd0] sm:$0xff]
    %v4384 = vld [vmem:[%s4356 + $0xd8] sm:$0xff]
    %v4385 = vld [vmem:[%s4356 + $0xe0] sm:$0xff]
    %v4386 = vld [vmem:[%s4356 + $0xe8] sm:$0xff]
    %v4387 = vld [vmem:[%s4356 + $0xf0] sm:$0xff]
    %v4388 = vld [vmem:[%s4356 + $0xf8] sm:$0xff]
    %v4389 = vld [vmem:[%s4356 + $0x100] sm:$0xff]
    %v4390 = vld [vmem:[%s4356 + $0x108] sm:$0xff]
    %v4391 = vld [vmem:[%s4356 + $0x110] sm:$0xff]
    %v4392 = vld [vmem:[%s4356 + $0x118] sm:$0xff]
    %v4393 = vld [vmem:[%s4356 + $0x120] sm:$0xff]
    %v4394 = vld [vmem:[%s4356 + $0x128] sm:$0xff]
    %v4395 = vld [vmem:[%s4356 + $0x130] sm:$0xff]
    %v4396 = vld [vmem:[%s4356 + $0x138] sm:$0xff]
    %v4397 = vld [vmem:[%s4356 + $0x140] sm:$0xff]
    %v4398 = vld [vmem:[%s4356 + $0x148] sm:$0xff]
    %v4399 = vld [vmem:[%s4356 + $0x150] sm:$0xff]
    %v4400 = vld [vmem:[%s4356 + $0x158] sm:$0xff]
    %v4401 = vld [vmem:[%s4356 + $0x160] sm:$0xff]
    %v4402 = vld [vmem:[%s4356 + $0x168] sm:$0xff]
    %v4403 = vld [vmem:[%s4356 + $0x170] sm:$0xff]
    %v4404 = vld [vmem:[%s4356 + $0x178] sm:$0xff]
    %v4405 = vld [vmem:[%s4356 + $0x180] sm:$0xff]
    %v4406 = vld [vmem:[%s4356 + $0x188] sm:$0xff]
    %v4407 = vld [vmem:[%s4356 + $0x190] sm:$0xff]
    %v4408 = vld [vmem:[%s4356 + $0x198] sm:$0xff]
    %v4409 = vld [vmem:[%s4356 + $0x1a0] sm:$0xff]
    %v4410 = vld [vmem:[%s4356 + $0x1a8] sm:$0xff]
    %v4411 = vld [vmem:[%s4356 + $0x1b0] sm:$0xff]
    %v4412 = vld [vmem:[%s4356 + $0x1b8] sm:$0xff]
    %v4413 = vld [vmem:[%s4356 + $0x1c0] sm:$0xff]
    %v4414 = vld [vmem:[%s4356 + $0x1c8] sm:$0xff]
    %v4415 = vld [vmem:[%s4356 + $0x1d0] sm:$0xff]
    %v4416 = vld [vmem:[%s4356 + $0x1d8] sm:$0xff]
    %v4417 = vld [vmem:[%s4356 + $0x1e0] sm:$0xff]
    %v4418 = vld [vmem:[%s4356 + $0x1e8] sm:$0xff]
    %v4419 = vld [vmem:[%s4356 + $0x1f0] sm:$0xff]
    %v4420 = vld [vmem:[%s4356 + $0x1f8] sm:$0xff]
    %v4421 = vld [vmem:[%s4356 + $0x200] sm:$0xff]
    %v4422 = vld [vmem:[%s4356 + $0x208] sm:$0xff]
    %v4423 = vld [vmem:[%s4356 + $0x210] sm:$0xff]
    %v4424 = vld [vmem:[%s4356 + $0x218] sm:$0xff]
    %v4425 = vld [vmem:[%s4356 + $0x220] sm:$0xff]
    %v4426 = vld [vmem:[%s4356 + $0x228] sm:$0xff]
    %v4427 = vld [vmem:[%s4356 + $0x230] sm:$0xff]
    %v4428 = vld [vmem:[%s4356 + $0x238] sm:$0xff]
    %v4429 = vld [vmem:[%s4356 + $0x240] sm:$0xff]
    %v4430 = vld [vmem:[%s4356 + $0x248] sm:$0xff]
    %v4431 = vld [vmem:[%s4356 + $0x250] sm:$0xff]
    %v4432 = vld [vmem:[%s4356 + $0x258] sm:$0xff]
    %v4433 = vld [vmem:[%s4356 + $0x260] sm:$0xff]
    %v4434 = vld [vmem:[%s4356 + $0x268] sm:$0xff]
    %v4435 = vld [vmem:[%s4356 + $0x270] sm:$0xff]
    %v4436 = vld [vmem:[%s4356 + $0x278] sm:$0xff]
    %v4437 = vld [vmem:[%s4356 + $0x280] sm:$0xff]
    %v4438 = vld [vmem:[%s4356 + $0x288] sm:$0xff]
    %v4439 = vld [vmem:[%s4356 + $0x290] sm:$0xff]
    %v4440 = vld [vmem:[%s4356 + $0x298] sm:$0xff]
    %v4441 = vld [vmem:[%s4356 + $0x2a0] sm:$0xff]
    %v4442 = vld [vmem:[%s4356 + $0x2a8] sm:$0xff]
    %v4443 = vld [vmem:[%s4356 + $0x2b0] sm:$0xff]
    %v4444 = vld [vmem:[%s4356 + $0x2b8] sm:$0xff]
    %v4445 = vld [vmem:[%s4356 + $0x2c0] sm:$0xff]
    %v4446 = vld [vmem:[%s4356 + $0x2c8] sm:$0xff]
    %v4447 = vld [vmem:[%s4356 + $0x2d0] sm:$0xff]
    %v4448 = vld [vmem:[%s4356 + $0x2d8] sm:$0xff]
    %v4449 = vld [vmem:[%s4356 + $0x2e0] sm:$0xff]
    %v4450 = vld [vmem:[%s4356 + $0x2e8] sm:$0xff]
    %v4451 = vld [vmem:[%s4356 + $0x2f0] sm:$0xff]
    %v4452 = vld [vmem:[%s4356 + $0x2f8] sm:$0xff]
    %v4453 = vld [vmem:[%s4356 + $0x300] sm:$0xff]
    %v4454 = vld [vmem:[%s4356 + $0x308] sm:$0xff]
    %v4455 = vld [vmem:[%s4356 + $0x310] sm:$0xff]
    %v4456 = vld [vmem:[%s4356 + $0x318] sm:$0xff]
    %v4457 = vld [vmem:[%s4356 + $0x320] sm:$0xff]
    %v4458 = vld [vmem:[%s4356 + $0x328] sm:$0xff]
    %v4459 = vld [vmem:[%s4356 + $0x330] sm:$0xff]
    %v4460 = vld [vmem:[%s4356 + $0x338] sm:$0xff]
    %v4461 = vld [vmem:[%s4356 + $0x340] sm:$0xff]
    %v4462 = vld [vmem:[%s4356 + $0x348] sm:$0xff]
    %v4463 = vld [vmem:[%s4356 + $0x350] sm:$0xff]
    %v4464 = vld [vmem:[%s4356 + $0x358] sm:$0xff]
    %v4465 = vld [vmem:[%s4356 + $0x360] sm:$0xff]
    %v4466 = vld [vmem:[%s4356 + $0x368] sm:$0xff]
    %v4467 = vld [vmem:[%s4356 + $0x370] sm:$0xff]
    %v4468 = vld [vmem:[%s4356 + $0x378] sm:$0xff]
    %v4469 = vld [vmem:[%s4356 + $0x380] sm:$0xff]
    %v4470 = vld [vmem:[%s4356 + $0x388] sm:$0xff]
    %v4471 = vld [vmem:[%s4356 + $0x390] sm:$0xff]
    %v4472 = vld [vmem:[%s4356 + $0x398] sm:$0xff]
    %v4473 = vld [vmem:[%s4356 + $0x3a0] sm:$0xff]
    %v4474 = vld [vmem:[%s4356 + $0x3a8] sm:$0xff]
    %v4475 = vld [vmem:[%s4356 + $0x3b0] sm:$0xff]
    %v4476 = vld [vmem:[%s4356 + $0x3b8] sm:$0xff]
    %v4477 = vld [vmem:[%s4356 + $0x3c0] sm:$0xff]
    %v4478 = vld [vmem:[%s4356 + $0x3c8] sm:$0xff]
    %v4479 = vld [vmem:[%s4356 + $0x3d0] sm:$0xff]
    %v4480 = vld [vmem:[%s4356 + $0x3d8] sm:$0xff]
    %v4481 = vld [vmem:[%s4356 + $0x3e0] sm:$0xff]
    %v4482 = vld [vmem:[%s4356 + $0x3e8] sm:$0xff]
    %v4483 = vld [vmem:[%s4356 + $0x3f0] sm:$0xff]
    %v4484 = vld [vmem:[%s4356 + $0x3f8] sm:$0xff]
    %v4485 = vunpack.c.l.bf16 %v4357
    %v4486 = vunpack.c.h.bf16 %v4357
    %v4487 = vunpack.c.l.bf16 %v4358
    %v4488 = vunpack.c.h.bf16 %v4358
    %v4489 = vunpack.c.l.bf16 %v4359
    %v4490 = vunpack.c.h.bf16 %v4359
    %v4491 = vunpack.c.l.bf16 %v4360
    %v4492 = vunpack.c.h.bf16 %v4360
    %v4493 = vunpack.c.l.bf16 %v4361
    %v4494 = vunpack.c.h.bf16 %v4361
    %v4495 = vunpack.c.l.bf16 %v4362
    %v4496 = vunpack.c.h.bf16 %v4362
    %v4497 = vunpack.c.l.bf16 %v4363
    %v4498 = vunpack.c.h.bf16 %v4363
    %v4499 = vunpack.c.l.bf16 %v4364
    %v4500 = vunpack.c.h.bf16 %v4364
    %v4501 = vunpack.c.l.bf16 %v4365
    %v4502 = vunpack.c.h.bf16 %v4365
    %v4503 = vunpack.c.l.bf16 %v4366
    %v4504 = vunpack.c.h.bf16 %v4366
    %v4505 = vunpack.c.l.bf16 %v4367
    %v4506 = vunpack.c.h.bf16 %v4367
    %v4507 = vunpack.c.l.bf16 %v4368
    %v4508 = vunpack.c.h.bf16 %v4368
    %v4509 = vunpack.c.l.bf16 %v4369
    %v4510 = vunpack.c.h.bf16 %v4369
    %v4511 = vunpack.c.l.bf16 %v4370
    %v4512 = vunpack.c.h.bf16 %v4370
    %v4513 = vunpack.c.l.bf16 %v4371
    %v4514 = vunpack.c.h.bf16 %v4371
    %v4515 = vunpack.c.l.bf16 %v4372
    %v4516 = vunpack.c.h.bf16 %v4372
    %v4517 = vunpack.c.l.bf16 %v4373
    %v4518 = vunpack.c.h.bf16 %v4373
    %v4519 = vunpack.c.l.bf16 %v4374
    %v4520 = vunpack.c.h.bf16 %v4374
    %v4521 = vunpack.c.l.bf16 %v4375
    %v4522 = vunpack.c.h.bf16 %v4375
    %v4523 = vunpack.c.l.bf16 %v4376
    %v4524 = vunpack.c.h.bf16 %v4376
    %v4525 = vunpack.c.l.bf16 %v4377
    %v4526 = vunpack.c.h.bf16 %v4377
    %v4527 = vunpack.c.l.bf16 %v4378
    %v4528 = vunpack.c.h.bf16 %v4378
    %v4529 = vunpack.c.l.bf16 %v4379
    %v4530 = vunpack.c.h.bf16 %v4379
    %v4531 = vunpack.c.l.bf16 %v4380
    %v4532 = vunpack.c.h.bf16 %v4380
    %v4533 = vunpack.c.l.bf16 %v4381
    %v4534 = vunpack.c.h.bf16 %v4381
    %v4535 = vunpack.c.l.bf16 %v4382
    %v4536 = vunpack.c.h.bf16 %v4382
    %v4537 = vunpack.c.l.bf16 %v4383
    %v4538 = vunpack.c.h.bf16 %v4383
    %v4539 = vunpack.c.l.bf16 %v4384
    %v4540 = vunpack.c.h.bf16 %v4384
    %v4541 = vunpack.c.l.bf16 %v4385
    %v4542 = vunpack.c.h.bf16 %v4385
    %v4543 = vunpack.c.l.bf16 %v4386
    %v4544 = vunpack.c.h.bf16 %v4386
    %v4545 = vunpack.c.l.bf16 %v4387
    %v4546 = vunpack.c.h.bf16 %v4387
    %v4547 = vunpack.c.l.bf16 %v4388
    %v4548 = vunpack.c.h.bf16 %v4388
    %v4549 = vunpack.c.l.bf16 %v4389
    %v4550 = vunpack.c.h.bf16 %v4389
    %v4551 = vunpack.c.l.bf16 %v4390
    %v4552 = vunpack.c.h.bf16 %v4390
    %v4553 = vunpack.c.l.bf16 %v4391
    %v4554 = vunpack.c.h.bf16 %v4391
    %v4555 = vunpack.c.l.bf16 %v4392
    %v4556 = vunpack.c.h.bf16 %v4392
    %v4557 = vunpack.c.l.bf16 %v4393
    %v4558 = vunpack.c.h.bf16 %v4393
    %v4559 = vunpack.c.l.bf16 %v4394
    %v4560 = vunpack.c.h.bf16 %v4394
    %v4561 = vunpack.c.l.bf16 %v4395
    %v4562 = vunpack.c.h.bf16 %v4395
    %v4563 = vunpack.c.l.bf16 %v4396
    %v4564 = vunpack.c.h.bf16 %v4396
    %v4565 = vunpack.c.l.bf16 %v4397
    %v4566 = vunpack.c.h.bf16 %v4397
    %v4567 = vunpack.c.l.bf16 %v4398
    %v4568 = vunpack.c.h.bf16 %v4398
    %v4569 = vunpack.c.l.bf16 %v4399
    %v4570 = vunpack.c.h.bf16 %v4399
    %v4571 = vunpack.c.l.bf16 %v4400
    %v4572 = vunpack.c.h.bf16 %v4400
    %v4573 = vunpack.c.l.bf16 %v4401
    %v4574 = vunpack.c.h.bf16 %v4401
    %v4575 = vunpack.c.l.bf16 %v4402
    %v4576 = vunpack.c.h.bf16 %v4402
    %v4577 = vunpack.c.l.bf16 %v4403
    %v4578 = vunpack.c.h.bf16 %v4403
    %v4579 = vunpack.c.l.bf16 %v4404
    %v4580 = vunpack.c.h.bf16 %v4404
    %v4581 = vunpack.c.l.bf16 %v4405
    %v4582 = vunpack.c.h.bf16 %v4405
    %v4583 = vunpack.c.l.bf16 %v4406
    %v4584 = vunpack.c.h.bf16 %v4406
    %v4585 = vunpack.c.l.bf16 %v4407
    %v4586 = vunpack.c.h.bf16 %v4407
    %v4587 = vunpack.c.l.bf16 %v4408
    %v4588 = vunpack.c.h.bf16 %v4408
    %v4589 = vunpack.c.l.bf16 %v4409
    %v4590 = vunpack.c.h.bf16 %v4409
    %v4591 = vunpack.c.l.bf16 %v4410
    %v4592 = vunpack.c.h.bf16 %v4410
    %v4593 = vunpack.c.l.bf16 %v4411
    %v4594 = vunpack.c.h.bf16 %v4411
    %v4595 = vunpack.c.l.bf16 %v4412
    %v4596 = vunpack.c.h.bf16 %v4412
    %v4597 = vunpack.c.l.bf16 %v4413
    %v4598 = vunpack.c.h.bf16 %v4413
    %v4599 = vunpack.c.l.bf16 %v4414
    %v4600 = vunpack.c.h.bf16 %v4414
    %v4601 = vunpack.c.l.bf16 %v4415
    %v4602 = vunpack.c.h.bf16 %v4415
    %v4603 = vunpack.c.l.bf16 %v4416
    %v4604 = vunpack.c.h.bf16 %v4416
    %v4605 = vunpack.c.l.bf16 %v4417
    %v4606 = vunpack.c.h.bf16 %v4417
    %v4607 = vunpack.c.l.bf16 %v4418
    %v4608 = vunpack.c.h.bf16 %v4418
    %v4609 = vunpack.c.l.bf16 %v4419
    %v4610 = vunpack.c.h.bf16 %v4419
    %v4611 = vunpack.c.l.bf16 %v4420
    %v4612 = vunpack.c.h.bf16 %v4420
    %v4613 = vunpack.c.l.bf16 %v4421
    %v4614 = vunpack.c.h.bf16 %v4421
    %v4615 = vunpack.c.l.bf16 %v4422
    %v4616 = vunpack.c.h.bf16 %v4422
    %v4617 = vunpack.c.l.bf16 %v4423
    %v4618 = vunpack.c.h.bf16 %v4423
    %v4619 = vunpack.c.l.bf16 %v4424
    %v4620 = vunpack.c.h.bf16 %v4424
    %v4621 = vunpack.c.l.bf16 %v4425
    %v4622 = vunpack.c.h.bf16 %v4425
    %v4623 = vunpack.c.l.bf16 %v4426
    %v4624 = vunpack.c.h.bf16 %v4426
    %v4625 = vunpack.c.l.bf16 %v4427
    %v4626 = vunpack.c.h.bf16 %v4427
    %v4627 = vunpack.c.l.bf16 %v4428
    %v4628 = vunpack.c.h.bf16 %v4428
    %v4629 = vunpack.c.l.bf16 %v4429
    %v4630 = vunpack.c.h.bf16 %v4429
    %v4631 = vunpack.c.l.bf16 %v4430
    %v4632 = vunpack.c.h.bf16 %v4430
    %v4633 = vunpack.c.l.bf16 %v4431
    %v4634 = vunpack.c.h.bf16 %v4431
    %v4635 = vunpack.c.l.bf16 %v4432
    %v4636 = vunpack.c.h.bf16 %v4432
    %v4637 = vunpack.c.l.bf16 %v4433
    %v4638 = vunpack.c.h.bf16 %v4433
    %v4639 = vunpack.c.l.bf16 %v4434
    %v4640 = vunpack.c.h.bf16 %v4434
    %v4641 = vunpack.c.l.bf16 %v4435
    %v4642 = vunpack.c.h.bf16 %v4435
    %v4643 = vunpack.c.l.bf16 %v4436
    %v4644 = vunpack.c.h.bf16 %v4436
    %v4645 = vunpack.c.l.bf16 %v4437
    %v4646 = vunpack.c.h.bf16 %v4437
    %v4647 = vunpack.c.l.bf16 %v4438
    %v4648 = vunpack.c.h.bf16 %v4438
    %v4649 = vunpack.c.l.bf16 %v4439
    %v4650 = vunpack.c.h.bf16 %v4439
    %v4651 = vunpack.c.l.bf16 %v4440
    %v4652 = vunpack.c.h.bf16 %v4440
    %v4653 = vunpack.c.l.bf16 %v4441
    %v4654 = vunpack.c.h.bf16 %v4441
    %v4655 = vunpack.c.l.bf16 %v4442
    %v4656 = vunpack.c.h.bf16 %v4442
    %v4657 = vunpack.c.l.bf16 %v4443
    %v4658 = vunpack.c.h.bf16 %v4443
    %v4659 = vunpack.c.l.bf16 %v4444
    %v4660 = vunpack.c.h.bf16 %v4444
    %v4661 = vunpack.c.l.bf16 %v4445
    %v4662 = vunpack.c.h.bf16 %v4445
    %v4663 = vunpack.c.l.bf16 %v4446
    %v4664 = vunpack.c.h.bf16 %v4446
    %v4665 = vunpack.c.l.bf16 %v4447
    %v4666 = vunpack.c.h.bf16 %v4447
    %v4667 = vunpack.c.l.bf16 %v4448
    %v4668 = vunpack.c.h.bf16 %v4448
    %v4669 = vunpack.c.l.bf16 %v4449
    %v4670 = vunpack.c.h.bf16 %v4449
    %v4671 = vunpack.c.l.bf16 %v4450
    %v4672 = vunpack.c.h.bf16 %v4450
    %v4673 = vunpack.c.l.bf16 %v4451
    %v4674 = vunpack.c.h.bf16 %v4451
    %v4675 = vunpack.c.l.bf16 %v4452
    %v4676 = vunpack.c.h.bf16 %v4452
    %v4677 = vunpack.c.l.bf16 %v4453
    %v4678 = vunpack.c.h.bf16 %v4453
    %v4679 = vunpack.c.l.bf16 %v4454
    %v4680 = vunpack.c.h.bf16 %v4454
    %v4681 = vunpack.c.l.bf16 %v4455
    %v4682 = vunpack.c.h.bf16 %v4455
    %v4683 = vunpack.c.l.bf16 %v4456
    %v4684 = vunpack.c.h.bf16 %v4456
    %v4685 = vunpack.c.l.bf16 %v4457
    %v4686 = vunpack.c.h.bf16 %v4457
    %v4687 = vunpack.c.l.bf16 %v4458
    %v4688 = vunpack.c.h.bf16 %v4458
    %v4689 = vunpack.c.l.bf16 %v4459
    %v4690 = vunpack.c.h.bf16 %v4459
    %v4691 = vunpack.c.l.bf16 %v4460
    %v4692 = vunpack.c.h.bf16 %v4460
    %v4693 = vunpack.c.l.bf16 %v4461
    %v4694 = vunpack.c.h.bf16 %v4461
    %v4695 = vunpack.c.l.bf16 %v4462
    %v4696 = vunpack.c.h.bf16 %v4462
    %v4697 = vunpack.c.l.bf16 %v4463
    %v4698 = vunpack.c.h.bf16 %v4463
    %v4699 = vunpack.c.l.bf16 %v4464
    %v4700 = vunpack.c.h.bf16 %v4464
    %v4701 = vunpack.c.l.bf16 %v4465
    %v4702 = vunpack.c.h.bf16 %v4465
    %v4703 = vunpack.c.l.bf16 %v4466
    %v4704 = vunpack.c.h.bf16 %v4466
    %v4705 = vunpack.c.l.bf16 %v4467
    %v4706 = vunpack.c.h.bf16 %v4467
    %v4707 = vunpack.c.l.bf16 %v4468
    %v4708 = vunpack.c.h.bf16 %v4468
    %v4709 = vunpack.c.l.bf16 %v4469
    %v4710 = vunpack.c.h.bf16 %v4469
    %v4711 = vunpack.c.l.bf16 %v4470
    %v4712 = vunpack.c.h.bf16 %v4470
    %v4713 = vunpack.c.l.bf16 %v4471
    %v4714 = vunpack.c.h.bf16 %v4471
    %v4715 = vunpack.c.l.bf16 %v4472
    %v4716 = vunpack.c.h.bf16 %v4472
    %v4717 = vunpack.c.l.bf16 %v4473
    %v4718 = vunpack.c.h.bf16 %v4473
    %v4719 = vunpack.c.l.bf16 %v4474
    %v4720 = vunpack.c.h.bf16 %v4474
    %v4721 = vunpack.c.l.bf16 %v4475
    %v4722 = vunpack.c.h.bf16 %v4475
    %v4723 = vunpack.c.l.bf16 %v4476
    %v4724 = vunpack.c.h.bf16 %v4476
    %v4725 = vunpack.c.l.bf16 %v4477
    %v4726 = vunpack.c.h.bf16 %v4477
    %v4727 = vunpack.c.l.bf16 %v4478
    %v4728 = vunpack.c.h.bf16 %v4478
    %v4729 = vunpack.c.l.bf16 %v4479
    %v4730 = vunpack.c.h.bf16 %v4479
    %v4731 = vunpack.c.l.bf16 %v4480
    %v4732 = vunpack.c.h.bf16 %v4480
    %v4733 = vunpack.c.l.bf16 %v4481
    %v4734 = vunpack.c.h.bf16 %v4481
    %v4735 = vunpack.c.l.bf16 %v4482
    %v4736 = vunpack.c.h.bf16 %v4482
    %v4737 = vunpack.c.l.bf16 %v4483
    %v4738 = vunpack.c.h.bf16 %v4483
    %v4739 = vunpack.c.l.bf16 %v4484
    %v4740 = vunpack.c.h.bf16 %v4484
    %s4741 = scalar_lea.vmem [#allocation7], 6
    %v4742 = vld [vmem:[%s4741] ss:$8 sm:$0xf]
    %v4744 = vperm.slane %v4742, 0
    %v4745 = vperm.slane %v4742, 1
    %v4746 = vperm.slane %v4742, 2
    %v4747 = vperm.slane %v4742, 3
    %4752 = vmatpush.msra.mxu0 %v4545
    %4753 = vmatpush.msra.mxu0 %v4541
    %4754 = vmatpush.msra.mxu0 %v4537
    %4755 = vmatpush.msra.mxu0 %v4533
    %4756 = vmatpush.msra.mxu0 %v4529
    %4757 = vmatpush.msra.mxu0 %v4525
    %4758 = vmatpush.msra.mxu0 %v4521
    %4759 = vmatpush.msra.mxu0 %v4517
    %4760 = vmatpush.msra.mxu0 %v4513
    %4761 = vmatpush.msra.mxu0 %v4509
    %4762 = vmatpush.msra.mxu0 %v4505
    %4763 = vmatpush.msra.mxu0 %v4501
    %4764 = vmatpush.msra.mxu0 %v4497
    %4765 = vmatpush.msra.mxu0 %v4493
    %4766 = vmatpush.msra.mxu0 %v4489
    %4767 = vmatpush.msra.mxu0 %v4485
    %4768 = vmatmul.f32.gmra.mxu0 %v4114
    %v4769 = vpop.f32.mrf.mxu0
    %v4770 = vadd.f32 %v4744, %v4769
    %4771 = vdwg.mxu0
    %4772 = vmatpush.msra.mxu0 %v4609
    %4773 = vmatpush.msra.mxu0 %v4605
    %4774 = vmatpush.msra.mxu0 %v4601
    %4775 = vmatpush.msra.mxu0 %v4597
    %4776 = vmatpush.msra.mxu0 %v4593
    %4777 = vmatpush.msra.mxu0 %v4589
    %4778 = vmatpush.msra.mxu0 %v4585
    %4779 = vmatpush.msra.mxu0 %v4581
    %4780 = vmatpush.msra.mxu0 %v4577
    %4781 = vmatpush.msra.mxu0 %v4573
    %4782 = vmatpush.msra.mxu0 %v4569
    %4783 = vmatpush.msra.mxu0 %v4565
    %4784 = vmatpush.msra.mxu0 %v4561
    %4785 = vmatpush.msra.mxu0 %v4557
    %4786 = vmatpush.msra.mxu0 %v4553
    %4787 = vmatpush.msra.mxu0 %v4549
    %4788 = vmatmul.f32.gmra.mxu0 %v4194
    %v4789 = vpop.f32.mrf.mxu0
    %v4790 = vadd.f32 %v4770, %v4789
    %4791 = vdwg.mxu0
    %4792 = vmatpush.msra.mxu0 %v4673
    %4793 = vmatpush.msra.mxu0 %v4669
    %4794 = vmatpush.msra.mxu0 %v4665
    %4795 = vmatpush.msra.mxu0 %v4661
    %4796 = vmatpush.msra.mxu0 %v4657
    %4797 = vmatpush.msra.mxu0 %v4653
    %4798 = vmatpush.msra.mxu0 %v4649
    %4799 = vmatpush.msra.mxu0 %v4645
    %4800 = vmatpush.msra.mxu0 %v4641
    %4801 = vmatpush.msra.mxu0 %v4637
    %4802 = vmatpush.msra.mxu0 %v4633
    %4803 = vmatpush.msra.mxu0 %v4629
    %4804 = vmatpush.msra.mxu0 %v4625
    %4805 = vmatpush.msra.mxu0 %v4621
    %4806 = vmatpush.msra.mxu0 %v4617
    %4807 = vmatpush.msra.mxu0 %v4613
    %4808 = vmatmul.f32.gmra.mxu0 %v4274
    %v4809 = vpop.f32.mrf.mxu0
    %v4810 = vadd.f32 %v4790, %v4809
    %4811 = vdwg.mxu0
    %4812 = vmatpush.msra.mxu0 %v4737
    %4813 = vmatpush.msra.mxu0 %v4733
    %4814 = vmatpush.msra.mxu0 %v4729
    %4815 = vmatpush.msra.mxu0 %v4725
    %4816 = vmatpush.msra.mxu0 %v4721
    %4817 = vmatpush.msra.mxu0 %v4717
    %4818 = vmatpush.msra.mxu0 %v4713
    %4819 = vmatpush.msra.mxu0 %v4709
    %4820 = vmatpush.msra.mxu0 %v4705
    %4821 = vmatpush.msra.mxu0 %v4701
    %4822 = vmatpush.msra.mxu0 %v4697
    %4823 = vmatpush.msra.mxu0 %v4693
    %4824 = vmatpush.msra.mxu0 %v4689
    %4825 = vmatpush.msra.mxu0 %v4685
    %4826 = vmatpush.msra.mxu0 %v4681
    %4827 = vmatpush.msra.mxu0 %v4677
    %4828 = vmatmul.f32.gmra.mxu0 %v4354
    %v4829 = vpop.f32.mrf.mxu0
    %v4830 = vadd.f32 %v4810, %v4829
    %4831 = vdwg.mxu0
    %4832 = vmatpush.msra.mxu0 %v4546
    %4833 = vmatpush.msra.mxu0 %v4542
    %4834 = vmatpush.msra.mxu0 %v4538
    %4835 = vmatpush.msra.mxu0 %v4534
    %4836 = vmatpush.msra.mxu0 %v4530
    %4837 = vmatpush.msra.mxu0 %v4526
    %4838 = vmatpush.msra.mxu0 %v4522
    %4839 = vmatpush.msra.mxu0 %v4518
    %4840 = vmatpush.msra.mxu0 %v4514
    %4841 = vmatpush.msra.mxu0 %v4510
    %4842 = vmatpush.msra.mxu0 %v4506
    %4843 = vmatpush.msra.mxu0 %v4502
    %4844 = vmatpush.msra.mxu0 %v4498
    %4845 = vmatpush.msra.mxu0 %v4494
    %4846 = vmatpush.msra.mxu0 %v4490
    %4847 = vmatpush.msra.mxu0 %v4486
    %4848 = vmatmul.f32.gmra.mxu0 %v4114
    %v4849 = vpop.f32.mrf.mxu0
    %v4850 = vadd.f32 %v4745, %v4849
    %4851 = vdwg.mxu0
    %4852 = vmatpush.msra.mxu0 %v4610
    %4853 = vmatpush.msra.mxu0 %v4606
    %4854 = vmatpush.msra.mxu0 %v4602
    %4855 = vmatpush.msra.mxu0 %v4598
    %4856 = vmatpush.msra.mxu0 %v4594
    %4857 = vmatpush.msra.mxu0 %v4590
    %4858 = vmatpush.msra.mxu0 %v4586
    %4859 = vmatpush.msra.mxu0 %v4582
    %4860 = vmatpush.msra.mxu0 %v4578
    %4861 = vmatpush.msra.mxu0 %v4574
    %4862 = vmatpush.msra.mxu0 %v4570
    %4863 = vmatpush.msra.mxu0 %v4566
    %4864 = vmatpush.msra.mxu0 %v4562
    %4865 = vmatpush.msra.mxu0 %v4558
    %4866 = vmatpush.msra.mxu0 %v4554
    %4867 = vmatpush.msra.mxu0 %v4550
    %4868 = vmatmul.f32.gmra.mxu0 %v4194
    %v4869 = vpop.f32.mrf.mxu0
    %v4870 = vadd.f32 %v4850, %v4869
    %4871 = vdwg.mxu0
    %4872 = vmatpush.msra.mxu0 %v4674
    %4873 = vmatpush.msra.mxu0 %v4670
    %4874 = vmatpush.msra.mxu0 %v4666
    %4875 = vmatpush.msra.mxu0 %v4662
    %4876 = vmatpush.msra.mxu0 %v4658
    %4877 = vmatpush.msra.mxu0 %v4654
    %4878 = vmatpush.msra.mxu0 %v4650
    %4879 = vmatpush.msra.mxu0 %v4646
    %4880 = vmatpush.msra.mxu0 %v4642
    %4881 = vmatpush.msra.mxu0 %v4638
    %4882 = vmatpush.msra.mxu0 %v4634
    %4883 = vmatpush.msra.mxu0 %v4630
    %4884 = vmatpush.msra.mxu0 %v4626
    %4885 = vmatpush.msra.mxu0 %v4622
    %4886 = vmatpush.msra.mxu0 %v4618
    %4887 = vmatpush.msra.mxu0 %v4614
    %4888 = vmatmul.f32.gmra.mxu0 %v4274
    %v4889 = vpop.f32.mrf.mxu0
    %v4890 = vadd.f32 %v4870, %v4889
    %4891 = vdwg.mxu0
    %4892 = vmatpush.msra.mxu0 %v4738
    %4893 = vmatpush.msra.mxu0 %v4734
    %4894 = vmatpush.msra.mxu0 %v4730
    %4895 = vmatpush.msra.mxu0 %v4726
    %4896 = vmatpush.msra.mxu0 %v4722
    %4897 = vmatpush.msra.mxu0 %v4718
    %4898 = vmatpush.msra.mxu0 %v4714
    %4899 = vmatpush.msra.mxu0 %v4710
    %4900 = vmatpush.msra.mxu0 %v4706
    %4901 = vmatpush.msra.mxu0 %v4702
    %4902 = vmatpush.msra.mxu0 %v4698
    %4903 = vmatpush.msra.mxu0 %v4694
    %4904 = vmatpush.msra.mxu0 %v4690
    %4905 = vmatpush.msra.mxu0 %v4686
    %4906 = vmatpush.msra.mxu0 %v4682
    %4907 = vmatpush.msra.mxu0 %v4678
    %4908 = vmatmul.f32.gmra.mxu0 %v4354
    %v4909 = vpop.f32.mrf.mxu0
    %v4910 = vadd.f32 %v4890, %v4909
    %4911 = vdwg.mxu0
    %4912 = vmatpush.msra.mxu0 %v4547
    %4913 = vmatpush.msra.mxu0 %v4543
    %4914 = vmatpush.msra.mxu0 %v4539
    %4915 = vmatpush.msra.mxu0 %v4535
    %4916 = vmatpush.msra.mxu0 %v4531
    %4917 = vmatpush.msra.mxu0 %v4527
    %4918 = vmatpush.msra.mxu0 %v4523
    %4919 = vmatpush.msra.mxu0 %v4519
    %4920 = vmatpush.msra.mxu0 %v4515
    %4921 = vmatpush.msra.mxu0 %v4511
    %4922 = vmatpush.msra.mxu0 %v4507
    %4923 = vmatpush.msra.mxu0 %v4503
    %4924 = vmatpush.msra.mxu0 %v4499
    %4925 = vmatpush.msra.mxu0 %v4495
    %4926 = vmatpush.msra.mxu0 %v4491
    %4927 = vmatpush.msra.mxu0 %v4487
    %4928 = vmatmul.f32.gmra.mxu0 %v4114
    %v4929 = vpop.f32.mrf.mxu0
    %v4930 = vadd.f32 %v4746, %v4929
    %4931 = vdwg.mxu0
    %4932 = vmatpush.msra.mxu0 %v4611
    %4933 = vmatpush.msra.mxu0 %v4607
    %4934 = vmatpush.msra.mxu0 %v4603
    %4935 = vmatpush.msra.mxu0 %v4599
    %4936 = vmatpush.msra.mxu0 %v4595
    %4937 = vmatpush.msra.mxu0 %v4591
    %4938 = vmatpush.msra.mxu0 %v4587
    %4939 = vmatpush.msra.mxu0 %v4583
    %4940 = vmatpush.msra.mxu0 %v4579
    %4941 = vmatpush.msra.mxu0 %v4575
    %4942 = vmatpush.msra.mxu0 %v4571
    %4943 = vmatpush.msra.mxu0 %v4567
    %4944 = vmatpush.msra.mxu0 %v4563
    %4945 = vmatpush.msra.mxu0 %v4559
    %4946 = vmatpush.msra.mxu0 %v4555
    %4947 = vmatpush.msra.mxu0 %v4551
    %4948 = vmatmul.f32.gmra.mxu0 %v4194
    %v4949 = vpop.f32.mrf.mxu0
    %v4950 = vadd.f32 %v4930, %v4949
    %4951 = vdwg.mxu0
    %4952 = vmatpush.msra.mxu0 %v4675
    %4953 = vmatpush.msra.mxu0 %v4671
    %4954 = vmatpush.msra.mxu0 %v4667
    %4955 = vmatpush.msra.mxu0 %v4663
    %4956 = vmatpush.msra.mxu0 %v4659
    %4957 = vmatpush.msra.mxu0 %v4655
    %4958 = vmatpush.msra.mxu0 %v4651
    %4959 = vmatpush.msra.mxu0 %v4647
    %4960 = vmatpush.msra.mxu0 %v4643
    %4961 = vmatpush.msra.mxu0 %v4639
    %4962 = vmatpush.msra.mxu0 %v4635
    %4963 = vmatpush.msra.mxu0 %v4631
    %4964 = vmatpush.msra.mxu0 %v4627
    %4965 = vmatpush.msra.mxu0 %v4623
    %4966 = vmatpush.msra.mxu0 %v4619
    %4967 = vmatpush.msra.mxu0 %v4615
    %4968 = vmatmul.f32.gmra.mxu0 %v4274
    %v4969 = vpop.f32.mrf.mxu0
    %v4970 = vadd.f32 %v4950, %v4969
    %4971 = vdwg.mxu0
    %4972 = vmatpush.msra.mxu0 %v4739
    %4973 = vmatpush.msra.mxu0 %v4735
    %4974 = vmatpush.msra.mxu0 %v4731
    %4975 = vmatpush.msra.mxu0 %v4727
    %4976 = vmatpush.msra.mxu0 %v4723
    %4977 = vmatpush.msra.mxu0 %v4719
    %4978 = vmatpush.msra.mxu0 %v4715
    %4979 = vmatpush.msra.mxu0 %v4711
    %4980 = vmatpush.msra.mxu0 %v4707
    %4981 = vmatpush.msra.mxu0 %v4703
    %4982 = vmatpush.msra.mxu0 %v4699
    %4983 = vmatpush.msra.mxu0 %v4695
    %4984 = vmatpush.msra.mxu0 %v4691
    %4985 = vmatpush.msra.mxu0 %v4687
    %4986 = vmatpush.msra.mxu0 %v4683
    %4987 = vmatpush.msra.mxu0 %v4679
    %4988 = vmatmul.f32.gmra.mxu0 %v4354
    %v4989 = vpop.f32.mrf.mxu0
    %v4990 = vadd.f32 %v4970, %v4989
    %4991 = vdwg.mxu0
    %4992 = vmatpush.msra.mxu0 %v4548
    %4993 = vmatpush.msra.mxu0 %v4544
    %4994 = vmatpush.msra.mxu0 %v4540
    %4995 = vmatpush.msra.mxu0 %v4536
    %4996 = vmatpush.msra.mxu0 %v4532
    %4997 = vmatpush.msra.mxu0 %v4528
    %4998 = vmatpush.msra.mxu0 %v4524
    %4999 = vmatpush.msra.mxu0 %v4520
    %5000 = vmatpush.msra.mxu0 %v4516
    %5001 = vmatpush.msra.mxu0 %v4512
    %5002 = vmatpush.msra.mxu0 %v4508
    %5003 = vmatpush.msra.mxu0 %v4504
    %5004 = vmatpush.msra.mxu0 %v4500
    %5005 = vmatpush.msra.mxu0 %v4496
    %5006 = vmatpush.msra.mxu0 %v4492
    %5007 = vmatpush.msra.mxu0 %v4488
    %5008 = vmatmul.f32.gmra.mxu0 %v4114
    %v5009 = vpop.f32.mrf.mxu0
    %v5010 = vadd.f32 %v4747, %v5009
    %5011 = vdwg.mxu0
    %5012 = vmatpush.msra.mxu0 %v4612
    %5013 = vmatpush.msra.mxu0 %v4608
    %5014 = vmatpush.msra.mxu0 %v4604
    %5015 = vmatpush.msra.mxu0 %v4600
    %5016 = vmatpush.msra.mxu0 %v4596
    %5017 = vmatpush.msra.mxu0 %v4592
    %5018 = vmatpush.msra.mxu0 %v4588
    %5019 = vmatpush.msra.mxu0 %v4584
    %5020 = vmatpush.msra.mxu0 %v4580
    %5021 = vmatpush.msra.mxu0 %v4576
    %5022 = vmatpush.msra.mxu0 %v4572
    %5023 = vmatpush.msra.mxu0 %v4568
    %5024 = vmatpush.msra.mxu0 %v4564
    %5025 = vmatpush.msra.mxu0 %v4560
    %5026 = vmatpush.msra.mxu0 %v4556
    %5027 = vmatpush.msra.mxu0 %v4552
    %5028 = vmatmul.f32.gmra.mxu0 %v4194
    %v5029 = vpop.f32.mrf.mxu0
    %v5030 = vadd.f32 %v5010, %v5029
    %5031 = vdwg.mxu0
    %5032 = vmatpush.msra.mxu0 %v4676
    %5033 = vmatpush.msra.mxu0 %v4672
    %5034 = vmatpush.msra.mxu0 %v4668
    %5035 = vmatpush.msra.mxu0 %v4664
    %5036 = vmatpush.msra.mxu0 %v4660
    %5037 = vmatpush.msra.mxu0 %v4656
    %5038 = vmatpush.msra.mxu0 %v4652
    %5039 = vmatpush.msra.mxu0 %v4648
    %5040 = vmatpush.msra.mxu0 %v4644
    %5041 = vmatpush.msra.mxu0 %v4640
    %5042 = vmatpush.msra.mxu0 %v4636
    %5043 = vmatpush.msra.mxu0 %v4632
    %5044 = vmatpush.msra.mxu0 %v4628
    %5045 = vmatpush.msra.mxu0 %v4624
    %5046 = vmatpush.msra.mxu0 %v4620
    %5047 = vmatpush.msra.mxu0 %v4616
    %5048 = vmatmul.f32.gmra.mxu0 %v4274
    %v5049 = vpop.f32.mrf.mxu0
    %v5050 = vadd.f32 %v5030, %v5049
    %5051 = vdwg.mxu0
    %5052 = vmatpush.msra.mxu0 %v4740
    %5053 = vmatpush.msra.mxu0 %v4736
    %5054 = vmatpush.msra.mxu0 %v4732
    %5055 = vmatpush.msra.mxu0 %v4728
    %5056 = vmatpush.msra.mxu0 %v4724
    %5057 = vmatpush.msra.mxu0 %v4720
    %5058 = vmatpush.msra.mxu0 %v4716
    %5059 = vmatpush.msra.mxu0 %v4712
    %5060 = vmatpush.msra.mxu0 %v4708
    %5061 = vmatpush.msra.mxu0 %v4704
    %5062 = vmatpush.msra.mxu0 %v4700
    %5063 = vmatpush.msra.mxu0 %v4696
    %5064 = vmatpush.msra.mxu0 %v4692
    %5065 = vmatpush.msra.mxu0 %v4688
    %5066 = vmatpush.msra.mxu0 %v4684
    %5067 = vmatpush.msra.mxu0 %v4680
    %5068 = vmatmul.f32.gmra.mxu0 %v4354
    %v5069 = vpop.f32.mrf.mxu0
    %v5070 = vadd.f32 %v5050, %v5069
    %5071 = vdwg.mxu0
    %s5072 = scalar_lea.vmem [#allocation5], 7168
    %v5073 = vld [vmem:[%s5072] sm:$0xff]
    %v5074 = vld [vmem:[%s5072 + $0x8] sm:$0xff]
    %v5075 = vld [vmem:[%s5072 + $0x10] sm:$0xff]
    %v5076 = vld [vmem:[%s5072 + $0x18] sm:$0xff]
    %v5077 = vld [vmem:[%s5072 + $0x20] sm:$0xff]
    %v5078 = vld [vmem:[%s5072 + $0x28] sm:$0xff]
    %v5079 = vld [vmem:[%s5072 + $0x30] sm:$0xff]
    %v5080 = vld [vmem:[%s5072 + $0x38] sm:$0xff]
    %v5081 = vld [vmem:[%s5072 + $0x40] sm:$0xff]
    %v5082 = vld [vmem:[%s5072 + $0x48] sm:$0xff]
    %v5083 = vld [vmem:[%s5072 + $0x50] sm:$0xff]
    %v5084 = vld [vmem:[%s5072 + $0x58] sm:$0xff]
    %v5085 = vld [vmem:[%s5072 + $0x60] sm:$0xff]
    %v5086 = vld [vmem:[%s5072 + $0x68] sm:$0xff]
    %v5087 = vld [vmem:[%s5072 + $0x70] sm:$0xff]
    %v5088 = vld [vmem:[%s5072 + $0x78] sm:$0xff]
    %v5089 = vld [vmem:[%s5072 + $0x80] sm:$0xff]
    %v5090 = vld [vmem:[%s5072 + $0x88] sm:$0xff]
    %v5091 = vld [vmem:[%s5072 + $0x90] sm:$0xff]
    %v5092 = vld [vmem:[%s5072 + $0x98] sm:$0xff]
    %v5093 = vld [vmem:[%s5072 + $0xa0] sm:$0xff]
    %v5094 = vld [vmem:[%s5072 + $0xa8] sm:$0xff]
    %v5095 = vld [vmem:[%s5072 + $0xb0] sm:$0xff]
    %v5096 = vld [vmem:[%s5072 + $0xb8] sm:$0xff]
    %v5097 = vld [vmem:[%s5072 + $0xc0] sm:$0xff]
    %v5098 = vld [vmem:[%s5072 + $0xc8] sm:$0xff]
    %v5099 = vld [vmem:[%s5072 + $0xd0] sm:$0xff]
    %v5100 = vld [vmem:[%s5072 + $0xd8] sm:$0xff]
    %v5101 = vld [vmem:[%s5072 + $0xe0] sm:$0xff]
    %v5102 = vld [vmem:[%s5072 + $0xe8] sm:$0xff]
    %v5103 = vld [vmem:[%s5072 + $0xf0] sm:$0xff]
    %v5104 = vld [vmem:[%s5072 + $0xf8] sm:$0xff]
    %v5105 = vld [vmem:[%s5072 + $0x100] sm:$0xff]
    %v5106 = vld [vmem:[%s5072 + $0x108] sm:$0xff]
    %v5107 = vld [vmem:[%s5072 + $0x110] sm:$0xff]
    %v5108 = vld [vmem:[%s5072 + $0x118] sm:$0xff]
    %v5109 = vld [vmem:[%s5072 + $0x120] sm:$0xff]
    %v5110 = vld [vmem:[%s5072 + $0x128] sm:$0xff]
    %v5111 = vld [vmem:[%s5072 + $0x130] sm:$0xff]
    %v5112 = vld [vmem:[%s5072 + $0x138] sm:$0xff]
    %v5113 = vld [vmem:[%s5072 + $0x140] sm:$0xff]
    %v5114 = vld [vmem:[%s5072 + $0x148] sm:$0xff]
    %v5115 = vld [vmem:[%s5072 + $0x150] sm:$0xff]
    %v5116 = vld [vmem:[%s5072 + $0x158] sm:$0xff]
    %v5117 = vld [vmem:[%s5072 + $0x160] sm:$0xff]
    %v5118 = vld [vmem:[%s5072 + $0x168] sm:$0xff]
    %v5119 = vld [vmem:[%s5072 + $0x170] sm:$0xff]
    %v5120 = vld [vmem:[%s5072 + $0x178] sm:$0xff]
    %v5121 = vld [vmem:[%s5072 + $0x180] sm:$0xff]
    %v5122 = vld [vmem:[%s5072 + $0x188] sm:$0xff]
    %v5123 = vld [vmem:[%s5072 + $0x190] sm:$0xff]
    %v5124 = vld [vmem:[%s5072 + $0x198] sm:$0xff]
    %v5125 = vld [vmem:[%s5072 + $0x1a0] sm:$0xff]
    %v5126 = vld [vmem:[%s5072 + $0x1a8] sm:$0xff]
    %v5127 = vld [vmem:[%s5072 + $0x1b0] sm:$0xff]
    %v5128 = vld [vmem:[%s5072 + $0x1b8] sm:$0xff]
    %v5129 = vld [vmem:[%s5072 + $0x1c0] sm:$0xff]
    %v5130 = vld [vmem:[%s5072 + $0x1c8] sm:$0xff]
    %v5131 = vld [vmem:[%s5072 + $0x1d0] sm:$0xff]
    %v5132 = vld [vmem:[%s5072 + $0x1d8] sm:$0xff]
    %v5133 = vld [vmem:[%s5072 + $0x1e0] sm:$0xff]
    %v5134 = vld [vmem:[%s5072 + $0x1e8] sm:$0xff]
    %v5135 = vld [vmem:[%s5072 + $0x1f0] sm:$0xff]
    %v5136 = vld [vmem:[%s5072 + $0x1f8] sm:$0xff]
    %v5137 = vld [vmem:[%s5072 + $0x200] sm:$0xff]
    %v5138 = vld [vmem:[%s5072 + $0x208] sm:$0xff]
    %v5139 = vld [vmem:[%s5072 + $0x210] sm:$0xff]
    %v5140 = vld [vmem:[%s5072 + $0x218] sm:$0xff]
    %v5141 = vld [vmem:[%s5072 + $0x220] sm:$0xff]
    %v5142 = vld [vmem:[%s5072 + $0x228] sm:$0xff]
    %v5143 = vld [vmem:[%s5072 + $0x230] sm:$0xff]
    %v5144 = vld [vmem:[%s5072 + $0x238] sm:$0xff]
    %v5145 = vld [vmem:[%s5072 + $0x240] sm:$0xff]
    %v5146 = vld [vmem:[%s5072 + $0x248] sm:$0xff]
    %v5147 = vld [vmem:[%s5072 + $0x250] sm:$0xff]
    %v5148 = vld [vmem:[%s5072 + $0x258] sm:$0xff]
    %v5149 = vld [vmem:[%s5072 + $0x260] sm:$0xff]
    %v5150 = vld [vmem:[%s5072 + $0x268] sm:$0xff]
    %v5151 = vld [vmem:[%s5072 + $0x270] sm:$0xff]
    %v5152 = vld [vmem:[%s5072 + $0x278] sm:$0xff]
    %v5153 = vld [vmem:[%s5072 + $0x280] sm:$0xff]
    %v5154 = vld [vmem:[%s5072 + $0x288] sm:$0xff]
    %v5155 = vld [vmem:[%s5072 + $0x290] sm:$0xff]
    %v5156 = vld [vmem:[%s5072 + $0x298] sm:$0xff]
    %v5157 = vld [vmem:[%s5072 + $0x2a0] sm:$0xff]
    %v5158 = vld [vmem:[%s5072 + $0x2a8] sm:$0xff]
    %v5159 = vld [vmem:[%s5072 + $0x2b0] sm:$0xff]
    %v5160 = vld [vmem:[%s5072 + $0x2b8] sm:$0xff]
    %v5161 = vld [vmem:[%s5072 + $0x2c0] sm:$0xff]
    %v5162 = vld [vmem:[%s5072 + $0x2c8] sm:$0xff]
    %v5163 = vld [vmem:[%s5072 + $0x2d0] sm:$0xff]
    %v5164 = vld [vmem:[%s5072 + $0x2d8] sm:$0xff]
    %v5165 = vld [vmem:[%s5072 + $0x2e0] sm:$0xff]
    %v5166 = vld [vmem:[%s5072 + $0x2e8] sm:$0xff]
    %v5167 = vld [vmem:[%s5072 + $0x2f0] sm:$0xff]
    %v5168 = vld [vmem:[%s5072 + $0x2f8] sm:$0xff]
    %v5169 = vld [vmem:[%s5072 + $0x300] sm:$0xff]
    %v5170 = vld [vmem:[%s5072 + $0x308] sm:$0xff]
    %v5171 = vld [vmem:[%s5072 + $0x310] sm:$0xff]
    %v5172 = vld [vmem:[%s5072 + $0x318] sm:$0xff]
    %v5173 = vld [vmem:[%s5072 + $0x320] sm:$0xff]
    %v5174 = vld [vmem:[%s5072 + $0x328] sm:$0xff]
    %v5175 = vld [vmem:[%s5072 + $0x330] sm:$0xff]
    %v5176 = vld [vmem:[%s5072 + $0x338] sm:$0xff]
    %v5177 = vld [vmem:[%s5072 + $0x340] sm:$0xff]
    %v5178 = vld [vmem:[%s5072 + $0x348] sm:$0xff]
    %v5179 = vld [vmem:[%s5072 + $0x350] sm:$0xff]
    %v5180 = vld [vmem:[%s5072 + $0x358] sm:$0xff]
    %v5181 = vld [vmem:[%s5072 + $0x360] sm:$0xff]
    %v5182 = vld [vmem:[%s5072 + $0x368] sm:$0xff]
    %v5183 = vld [vmem:[%s5072 + $0x370] sm:$0xff]
    %v5184 = vld [vmem:[%s5072 + $0x378] sm:$0xff]
    %v5185 = vld [vmem:[%s5072 + $0x380] sm:$0xff]
    %v5186 = vld [vmem:[%s5072 + $0x388] sm:$0xff]
    %v5187 = vld [vmem:[%s5072 + $0x390] sm:$0xff]
    %v5188 = vld [vmem:[%s5072 + $0x398] sm:$0xff]
    %v5189 = vld [vmem:[%s5072 + $0x3a0] sm:$0xff]
    %v5190 = vld [vmem:[%s5072 + $0x3a8] sm:$0xff]
    %v5191 = vld [vmem:[%s5072 + $0x3b0] sm:$0xff]
    %v5192 = vld [vmem:[%s5072 + $0x3b8] sm:$0xff]
    %v5193 = vld [vmem:[%s5072 + $0x3c0] sm:$0xff]
    %v5194 = vld [vmem:[%s5072 + $0x3c8] sm:$0xff]
    %v5195 = vld [vmem:[%s5072 + $0x3d0] sm:$0xff]
    %v5196 = vld [vmem:[%s5072 + $0x3d8] sm:$0xff]
    %v5197 = vld [vmem:[%s5072 + $0x3e0] sm:$0xff]
    %v5198 = vld [vmem:[%s5072 + $0x3e8] sm:$0xff]
    %v5199 = vld [vmem:[%s5072 + $0x3f0] sm:$0xff]
    %v5200 = vld [vmem:[%s5072 + $0x3f8] sm:$0xff]
    %v5201 = vunpack.c.l.bf16 %v5073
    %v5202 = vunpack.c.h.bf16 %v5073
    %v5203 = vunpack.c.l.bf16 %v5074
    %v5204 = vunpack.c.h.bf16 %v5074
    %v5205 = vunpack.c.l.bf16 %v5075
    %v5206 = vunpack.c.h.bf16 %v5075
    %v5207 = vunpack.c.l.bf16 %v5076
    %v5208 = vunpack.c.h.bf16 %v5076
    %v5209 = vunpack.c.l.bf16 %v5077
    %v5210 = vunpack.c.h.bf16 %v5077
    %v5211 = vunpack.c.l.bf16 %v5078
    %v5212 = vunpack.c.h.bf16 %v5078
    %v5213 = vunpack.c.l.bf16 %v5079
    %v5214 = vunpack.c.h.bf16 %v5079
    %v5215 = vunpack.c.l.bf16 %v5080
    %v5216 = vunpack.c.h.bf16 %v5080
    %v5217 = vunpack.c.l.bf16 %v5081
    %v5218 = vunpack.c.h.bf16 %v5081
    %v5219 = vunpack.c.l.bf16 %v5082
    %v5220 = vunpack.c.h.bf16 %v5082
    %v5221 = vunpack.c.l.bf16 %v5083
    %v5222 = vunpack.c.h.bf16 %v5083
    %v5223 = vunpack.c.l.bf16 %v5084
    %v5224 = vunpack.c.h.bf16 %v5084
    %v5225 = vunpack.c.l.bf16 %v5085
    %v5226 = vunpack.c.h.bf16 %v5085
    %v5227 = vunpack.c.l.bf16 %v5086
    %v5228 = vunpack.c.h.bf16 %v5086
    %v5229 = vunpack.c.l.bf16 %v5087
    %v5230 = vunpack.c.h.bf16 %v5087
    %v5231 = vunpack.c.l.bf16 %v5088
    %v5232 = vunpack.c.h.bf16 %v5088
    %v5233 = vunpack.c.l.bf16 %v5089
    %v5234 = vunpack.c.h.bf16 %v5089
    %v5235 = vunpack.c.l.bf16 %v5090
    %v5236 = vunpack.c.h.bf16 %v5090
    %v5237 = vunpack.c.l.bf16 %v5091
    %v5238 = vunpack.c.h.bf16 %v5091
    %v5239 = vunpack.c.l.bf16 %v5092
    %v5240 = vunpack.c.h.bf16 %v5092
    %v5241 = vunpack.c.l.bf16 %v5093
    %v5242 = vunpack.c.h.bf16 %v5093
    %v5243 = vunpack.c.l.bf16 %v5094
    %v5244 = vunpack.c.h.bf16 %v5094
    %v5245 = vunpack.c.l.bf16 %v5095
    %v5246 = vunpack.c.h.bf16 %v5095
    %v5247 = vunpack.c.l.bf16 %v5096
    %v5248 = vunpack.c.h.bf16 %v5096
    %v5249 = vunpack.c.l.bf16 %v5097
    %v5250 = vunpack.c.h.bf16 %v5097
    %v5251 = vunpack.c.l.bf16 %v5098
    %v5252 = vunpack.c.h.bf16 %v5098
    %v5253 = vunpack.c.l.bf16 %v5099
    %v5254 = vunpack.c.h.bf16 %v5099
    %v5255 = vunpack.c.l.bf16 %v5100
    %v5256 = vunpack.c.h.bf16 %v5100
    %v5257 = vunpack.c.l.bf16 %v5101
    %v5258 = vunpack.c.h.bf16 %v5101
    %v5259 = vunpack.c.l.bf16 %v5102
    %v5260 = vunpack.c.h.bf16 %v5102
    %v5261 = vunpack.c.l.bf16 %v5103
    %v5262 = vunpack.c.h.bf16 %v5103
    %v5263 = vunpack.c.l.bf16 %v5104
    %v5264 = vunpack.c.h.bf16 %v5104
    %v5265 = vunpack.c.l.bf16 %v5105
    %v5266 = vunpack.c.h.bf16 %v5105
    %v5267 = vunpack.c.l.bf16 %v5106
    %v5268 = vunpack.c.h.bf16 %v5106
    %v5269 = vunpack.c.l.bf16 %v5107
    %v5270 = vunpack.c.h.bf16 %v5107
    %v5271 = vunpack.c.l.bf16 %v5108
    %v5272 = vunpack.c.h.bf16 %v5108
    %v5273 = vunpack.c.l.bf16 %v5109
    %v5274 = vunpack.c.h.bf16 %v5109
    %v5275 = vunpack.c.l.bf16 %v5110
    %v5276 = vunpack.c.h.bf16 %v5110
    %v5277 = vunpack.c.l.bf16 %v5111
    %v5278 = vunpack.c.h.bf16 %v5111
    %v5279 = vunpack.c.l.bf16 %v5112
    %v5280 = vunpack.c.h.bf16 %v5112
    %v5281 = vunpack.c.l.bf16 %v5113
    %v5282 = vunpack.c.h.bf16 %v5113
    %v5283 = vunpack.c.l.bf16 %v5114
    %v5284 = vunpack.c.h.bf16 %v5114
    %v5285 = vunpack.c.l.bf16 %v5115
    %v5286 = vunpack.c.h.bf16 %v5115
    %v5287 = vunpack.c.l.bf16 %v5116
    %v5288 = vunpack.c.h.bf16 %v5116
    %v5289 = vunpack.c.l.bf16 %v5117
    %v5290 = vunpack.c.h.bf16 %v5117
    %v5291 = vunpack.c.l.bf16 %v5118
    %v5292 = vunpack.c.h.bf16 %v5118
    %v5293 = vunpack.c.l.bf16 %v5119
    %v5294 = vunpack.c.h.bf16 %v5119
    %v5295 = vunpack.c.l.bf16 %v5120
    %v5296 = vunpack.c.h.bf16 %v5120
    %v5297 = vunpack.c.l.bf16 %v5121
    %v5298 = vunpack.c.h.bf16 %v5121
    %v5299 = vunpack.c.l.bf16 %v5122
    %v5300 = vunpack.c.h.bf16 %v5122
    %v5301 = vunpack.c.l.bf16 %v5123
    %v5302 = vunpack.c.h.bf16 %v5123
    %v5303 = vunpack.c.l.bf16 %v5124
    %v5304 = vunpack.c.h.bf16 %v5124
    %v5305 = vunpack.c.l.bf16 %v5125
    %v5306 = vunpack.c.h.bf16 %v5125
    %v5307 = vunpack.c.l.bf16 %v5126
    %v5308 = vunpack.c.h.bf16 %v5126
    %v5309 = vunpack.c.l.bf16 %v5127
    %v5310 = vunpack.c.h.bf16 %v5127
    %v5311 = vunpack.c.l.bf16 %v5128
    %v5312 = vunpack.c.h.bf16 %v5128
    %v5313 = vunpack.c.l.bf16 %v5129
    %v5314 = vunpack.c.h.bf16 %v5129
    %v5315 = vunpack.c.l.bf16 %v5130
    %v5316 = vunpack.c.h.bf16 %v5130
    %v5317 = vunpack.c.l.bf16 %v5131
    %v5318 = vunpack.c.h.bf16 %v5131
    %v5319 = vunpack.c.l.bf16 %v5132
    %v5320 = vunpack.c.h.bf16 %v5132
    %v5321 = vunpack.c.l.bf16 %v5133
    %v5322 = vunpack.c.h.bf16 %v5133
    %v5323 = vunpack.c.l.bf16 %v5134
    %v5324 = vunpack.c.h.bf16 %v5134
    %v5325 = vunpack.c.l.bf16 %v5135
    %v5326 = vunpack.c.h.bf16 %v5135
    %v5327 = vunpack.c.l.bf16 %v5136
    %v5328 = vunpack.c.h.bf16 %v5136
    %v5329 = vunpack.c.l.bf16 %v5137
    %v5330 = vunpack.c.h.bf16 %v5137
    %v5331 = vunpack.c.l.bf16 %v5138
    %v5332 = vunpack.c.h.bf16 %v5138
    %v5333 = vunpack.c.l.bf16 %v5139
    %v5334 = vunpack.c.h.bf16 %v5139
    %v5335 = vunpack.c.l.bf16 %v5140
    %v5336 = vunpack.c.h.bf16 %v5140
    %v5337 = vunpack.c.l.bf16 %v5141
    %v5338 = vunpack.c.h.bf16 %v5141
    %v5339 = vunpack.c.l.bf16 %v5142
    %v5340 = vunpack.c.h.bf16 %v5142
    %v5341 = vunpack.c.l.bf16 %v5143
    %v5342 = vunpack.c.h.bf16 %v5143
    %v5343 = vunpack.c.l.bf16 %v5144
    %v5344 = vunpack.c.h.bf16 %v5144
    %v5345 = vunpack.c.l.bf16 %v5145
    %v5346 = vunpack.c.h.bf16 %v5145
    %v5347 = vunpack.c.l.bf16 %v5146
    %v5348 = vunpack.c.h.bf16 %v5146
    %v5349 = vunpack.c.l.bf16 %v5147
    %v5350 = vunpack.c.h.bf16 %v5147
    %v5351 = vunpack.c.l.bf16 %v5148
    %v5352 = vunpack.c.h.bf16 %v5148
    %v5353 = vunpack.c.l.bf16 %v5149
    %v5354 = vunpack.c.h.bf16 %v5149
    %v5355 = vunpack.c.l.bf16 %v5150
    %v5356 = vunpack.c.h.bf16 %v5150
    %v5357 = vunpack.c.l.bf16 %v5151
    %v5358 = vunpack.c.h.bf16 %v5151
    %v5359 = vunpack.c.l.bf16 %v5152
    %v5360 = vunpack.c.h.bf16 %v5152
    %v5361 = vunpack.c.l.bf16 %v5153
    %v5362 = vunpack.c.h.bf16 %v5153
    %v5363 = vunpack.c.l.bf16 %v5154
    %v5364 = vunpack.c.h.bf16 %v5154
    %v5365 = vunpack.c.l.bf16 %v5155
    %v5366 = vunpack.c.h.bf16 %v5155
    %v5367 = vunpack.c.l.bf16 %v5156
    %v5368 = vunpack.c.h.bf16 %v5156
    %v5369 = vunpack.c.l.bf16 %v5157
    %v5370 = vunpack.c.h.bf16 %v5157
    %v5371 = vunpack.c.l.bf16 %v5158
    %v5372 = vunpack.c.h.bf16 %v5158
    %v5373 = vunpack.c.l.bf16 %v5159
    %v5374 = vunpack.c.h.bf16 %v5159
    %v5375 = vunpack.c.l.bf16 %v5160
    %v5376 = vunpack.c.h.bf16 %v5160
    %v5377 = vunpack.c.l.bf16 %v5161
    %v5378 = vunpack.c.h.bf16 %v5161
    %v5379 = vunpack.c.l.bf16 %v5162
    %v5380 = vunpack.c.h.bf16 %v5162
    %v5381 = vunpack.c.l.bf16 %v5163
    %v5382 = vunpack.c.h.bf16 %v5163
    %v5383 = vunpack.c.l.bf16 %v5164
    %v5384 = vunpack.c.h.bf16 %v5164
    %v5385 = vunpack.c.l.bf16 %v5165
    %v5386 = vunpack.c.h.bf16 %v5165
    %v5387 = vunpack.c.l.bf16 %v5166
    %v5388 = vunpack.c.h.bf16 %v5166
    %v5389 = vunpack.c.l.bf16 %v5167
    %v5390 = vunpack.c.h.bf16 %v5167
    %v5391 = vunpack.c.l.bf16 %v5168
    %v5392 = vunpack.c.h.bf16 %v5168
    %v5393 = vunpack.c.l.bf16 %v5169
    %v5394 = vunpack.c.h.bf16 %v5169
    %v5395 = vunpack.c.l.bf16 %v5170
    %v5396 = vunpack.c.h.bf16 %v5170
    %v5397 = vunpack.c.l.bf16 %v5171
    %v5398 = vunpack.c.h.bf16 %v5171
    %v5399 = vunpack.c.l.bf16 %v5172
    %v5400 = vunpack.c.h.bf16 %v5172
    %v5401 = vunpack.c.l.bf16 %v5173
    %v5402 = vunpack.c.h.bf16 %v5173
    %v5403 = vunpack.c.l.bf16 %v5174
    %v5404 = vunpack.c.h.bf16 %v5174
    %v5405 = vunpack.c.l.bf16 %v5175
    %v5406 = vunpack.c.h.bf16 %v5175
    %v5407 = vunpack.c.l.bf16 %v5176
    %v5408 = vunpack.c.h.bf16 %v5176
    %v5409 = vunpack.c.l.bf16 %v5177
    %v5410 = vunpack.c.h.bf16 %v5177
    %v5411 = vunpack.c.l.bf16 %v5178
    %v5412 = vunpack.c.h.bf16 %v5178
    %v5413 = vunpack.c.l.bf16 %v5179
    %v5414 = vunpack.c.h.bf16 %v5179
    %v5415 = vunpack.c.l.bf16 %v5180
    %v5416 = vunpack.c.h.bf16 %v5180
    %v5417 = vunpack.c.l.bf16 %v5181
    %v5418 = vunpack.c.h.bf16 %v5181
    %v5419 = vunpack.c.l.bf16 %v5182
    %v5420 = vunpack.c.h.bf16 %v5182
    %v5421 = vunpack.c.l.bf16 %v5183
    %v5422 = vunpack.c.h.bf16 %v5183
    %v5423 = vunpack.c.l.bf16 %v5184
    %v5424 = vunpack.c.h.bf16 %v5184
    %v5425 = vunpack.c.l.bf16 %v5185
    %v5426 = vunpack.c.h.bf16 %v5185
    %v5427 = vunpack.c.l.bf16 %v5186
    %v5428 = vunpack.c.h.bf16 %v5186
    %v5429 = vunpack.c.l.bf16 %v5187
    %v5430 = vunpack.c.h.bf16 %v5187
    %v5431 = vunpack.c.l.bf16 %v5188
    %v5432 = vunpack.c.h.bf16 %v5188
    %v5433 = vunpack.c.l.bf16 %v5189
    %v5434 = vunpack.c.h.bf16 %v5189
    %v5435 = vunpack.c.l.bf16 %v5190
    %v5436 = vunpack.c.h.bf16 %v5190
    %v5437 = vunpack.c.l.bf16 %v5191
    %v5438 = vunpack.c.h.bf16 %v5191
    %v5439 = vunpack.c.l.bf16 %v5192
    %v5440 = vunpack.c.h.bf16 %v5192
    %v5441 = vunpack.c.l.bf16 %v5193
    %v5442 = vunpack.c.h.bf16 %v5193
    %v5443 = vunpack.c.l.bf16 %v5194
    %v5444 = vunpack.c.h.bf16 %v5194
    %v5445 = vunpack.c.l.bf16 %v5195
    %v5446 = vunpack.c.h.bf16 %v5195
    %v5447 = vunpack.c.l.bf16 %v5196
    %v5448 = vunpack.c.h.bf16 %v5196
    %v5449 = vunpack.c.l.bf16 %v5197
    %v5450 = vunpack.c.h.bf16 %v5197
    %v5451 = vunpack.c.l.bf16 %v5198
    %v5452 = vunpack.c.h.bf16 %v5198
    %v5453 = vunpack.c.l.bf16 %v5199
    %v5454 = vunpack.c.h.bf16 %v5199
    %v5455 = vunpack.c.l.bf16 %v5200
    %v5456 = vunpack.c.h.bf16 %v5200
    %s5457 = scalar_lea.vmem [#allocation7], 7
    %v5458 = vld [vmem:[%s5457] ss:$8 sm:$0xf]
    %v5460 = vperm.slane %v5458, 0
    %v5461 = vperm.slane %v5458, 1
    %v5462 = vperm.slane %v5458, 2
    %v5463 = vperm.slane %v5458, 3
    %5468 = vmatpush.msra.mxu0 %v5261
    %5469 = vmatpush.msra.mxu0 %v5257
    %5470 = vmatpush.msra.mxu0 %v5253
    %5471 = vmatpush.msra.mxu0 %v5249
    %5472 = vmatpush.msra.mxu0 %v5245
    %5473 = vmatpush.msra.mxu0 %v5241
    %5474 = vmatpush.msra.mxu0 %v5237
    %5475 = vmatpush.msra.mxu0 %v5233
    %5476 = vmatpush.msra.mxu0 %v5229
    %5477 = vmatpush.msra.mxu0 %v5225
    %5478 = vmatpush.msra.mxu0 %v5221
    %5479 = vmatpush.msra.mxu0 %v5217
    %5480 = vmatpush.msra.mxu0 %v5213
    %5481 = vmatpush.msra.mxu0 %v5209
    %5482 = vmatpush.msra.mxu0 %v5205
    %5483 = vmatpush.msra.mxu0 %v5201
    %5484 = vmatmul.f32.gmra.mxu0 %v4830
    %v5485 = vpop.f32.mrf.mxu0
    %v5486 = vadd.f32 %v5460, %v5485
    %5487 = vdwg.mxu0
    %5488 = vmatpush.msra.mxu0 %v5325
    %5489 = vmatpush.msra.mxu0 %v5321
    %5490 = vmatpush.msra.mxu0 %v5317
    %5491 = vmatpush.msra.mxu0 %v5313
    %5492 = vmatpush.msra.mxu0 %v5309
    %5493 = vmatpush.msra.mxu0 %v5305
    %5494 = vmatpush.msra.mxu0 %v5301
    %5495 = vmatpush.msra.mxu0 %v5297
    %5496 = vmatpush.msra.mxu0 %v5293
    %5497 = vmatpush.msra.mxu0 %v5289
    %5498 = vmatpush.msra.mxu0 %v5285
    %5499 = vmatpush.msra.mxu0 %v5281
    %5500 = vmatpush.msra.mxu0 %v5277
    %5501 = vmatpush.msra.mxu0 %v5273
    %5502 = vmatpush.msra.mxu0 %v5269
    %5503 = vmatpush.msra.mxu0 %v5265
    %5504 = vmatmul.f32.gmra.mxu0 %v4910
    %v5505 = vpop.f32.mrf.mxu0
    %v5506 = vadd.f32 %v5486, %v5505
    %5507 = vdwg.mxu0
    %5508 = vmatpush.msra.mxu0 %v5389
    %5509 = vmatpush.msra.mxu0 %v5385
    %5510 = vmatpush.msra.mxu0 %v5381
    %5511 = vmatpush.msra.mxu0 %v5377
    %5512 = vmatpush.msra.mxu0 %v5373
    %5513 = vmatpush.msra.mxu0 %v5369
    %5514 = vmatpush.msra.mxu0 %v5365
    %5515 = vmatpush.msra.mxu0 %v5361
    %5516 = vmatpush.msra.mxu0 %v5357
    %5517 = vmatpush.msra.mxu0 %v5353
    %5518 = vmatpush.msra.mxu0 %v5349
    %5519 = vmatpush.msra.mxu0 %v5345
    %5520 = vmatpush.msra.mxu0 %v5341
    %5521 = vmatpush.msra.mxu0 %v5337
    %5522 = vmatpush.msra.mxu0 %v5333
    %5523 = vmatpush.msra.mxu0 %v5329
    %5524 = vmatmul.f32.gmra.mxu0 %v4990
    %v5525 = vpop.f32.mrf.mxu0
    %v5526 = vadd.f32 %v5506, %v5525
    %5527 = vdwg.mxu0
    %5528 = vmatpush.msra.mxu0 %v5453
    %5529 = vmatpush.msra.mxu0 %v5449
    %5530 = vmatpush.msra.mxu0 %v5445
    %5531 = vmatpush.msra.mxu0 %v5441
    %5532 = vmatpush.msra.mxu0 %v5437
    %5533 = vmatpush.msra.mxu0 %v5433
    %5534 = vmatpush.msra.mxu0 %v5429
    %5535 = vmatpush.msra.mxu0 %v5425
    %5536 = vmatpush.msra.mxu0 %v5421
    %5537 = vmatpush.msra.mxu0 %v5417
    %5538 = vmatpush.msra.mxu0 %v5413
    %5539 = vmatpush.msra.mxu0 %v5409
    %5540 = vmatpush.msra.mxu0 %v5405
    %5541 = vmatpush.msra.mxu0 %v5401
    %5542 = vmatpush.msra.mxu0 %v5397
    %5543 = vmatpush.msra.mxu0 %v5393
    %5544 = vmatmul.f32.gmra.mxu0 %v5070
    %v5545 = vpop.f32.mrf.mxu0
    %v5546 = vadd.f32 %v5526, %v5545
    %5547 = vdwg.mxu0
    %5548 = vmatpush.msra.mxu0 %v5262
    %5549 = vmatpush.msra.mxu0 %v5258
    %5550 = vmatpush.msra.mxu0 %v5254
    %5551 = vmatpush.msra.mxu0 %v5250
    %5552 = vmatpush.msra.mxu0 %v5246
    %5553 = vmatpush.msra.mxu0 %v5242
    %5554 = vmatpush.msra.mxu0 %v5238
    %5555 = vmatpush.msra.mxu0 %v5234
    %5556 = vmatpush.msra.mxu0 %v5230
    %5557 = vmatpush.msra.mxu0 %v5226
    %5558 = vmatpush.msra.mxu0 %v5222
    %5559 = vmatpush.msra.mxu0 %v5218
    %5560 = vmatpush.msra.mxu0 %v5214
    %5561 = vmatpush.msra.mxu0 %v5210
    %5562 = vmatpush.msra.mxu0 %v5206
    %5563 = vmatpush.msra.mxu0 %v5202
    %5564 = vmatmul.f32.gmra.mxu0 %v4830
    %v5565 = vpop.f32.mrf.mxu0
    %v5566 = vadd.f32 %v5461, %v5565
    %5567 = vdwg.mxu0
    %5568 = vmatpush.msra.mxu0 %v5326
    %5569 = vmatpush.msra.mxu0 %v5322
    %5570 = vmatpush.msra.mxu0 %v5318
    %5571 = vmatpush.msra.mxu0 %v5314
    %5572 = vmatpush.msra.mxu0 %v5310
    %5573 = vmatpush.msra.mxu0 %v5306
    %5574 = vmatpush.msra.mxu0 %v5302
    %5575 = vmatpush.msra.mxu0 %v5298
    %5576 = vmatpush.msra.mxu0 %v5294
    %5577 = vmatpush.msra.mxu0 %v5290
    %5578 = vmatpush.msra.mxu0 %v5286
    %5579 = vmatpush.msra.mxu0 %v5282
    %5580 = vmatpush.msra.mxu0 %v5278
    %5581 = vmatpush.msra.mxu0 %v5274
    %5582 = vmatpush.msra.mxu0 %v5270
    %5583 = vmatpush.msra.mxu0 %v5266
    %5584 = vmatmul.f32.gmra.mxu0 %v4910
    %v5585 = vpop.f32.mrf.mxu0
    %v5586 = vadd.f32 %v5566, %v5585
    %5587 = vdwg.mxu0
    %5588 = vmatpush.msra.mxu0 %v5390
    %5589 = vmatpush.msra.mxu0 %v5386
    %5590 = vmatpush.msra.mxu0 %v5382
    %5591 = vmatpush.msra.mxu0 %v5378
    %5592 = vmatpush.msra.mxu0 %v5374
    %5593 = vmatpush.msra.mxu0 %v5370
    %5594 = vmatpush.msra.mxu0 %v5366
    %5595 = vmatpush.msra.mxu0 %v5362
    %5596 = vmatpush.msra.mxu0 %v5358
    %5597 = vmatpush.msra.mxu0 %v5354
    %5598 = vmatpush.msra.mxu0 %v5350
    %5599 = vmatpush.msra.mxu0 %v5346
    %5600 = vmatpush.msra.mxu0 %v5342
    %5601 = vmatpush.msra.mxu0 %v5338
    %5602 = vmatpush.msra.mxu0 %v5334
    %5603 = vmatpush.msra.mxu0 %v5330
    %5604 = vmatmul.f32.gmra.mxu0 %v4990
    %v5605 = vpop.f32.mrf.mxu0
    %v5606 = vadd.f32 %v5586, %v5605
    %5607 = vdwg.mxu0
    %5608 = vmatpush.msra.mxu0 %v5454
    %5609 = vmatpush.msra.mxu0 %v5450
    %5610 = vmatpush.msra.mxu0 %v5446
    %5611 = vmatpush.msra.mxu0 %v5442
    %5612 = vmatpush.msra.mxu0 %v5438
    %5613 = vmatpush.msra.mxu0 %v5434
    %5614 = vmatpush.msra.mxu0 %v5430
    %5615 = vmatpush.msra.mxu0 %v5426
    %5616 = vmatpush.msra.mxu0 %v5422
    %5617 = vmatpush.msra.mxu0 %v5418
    %5618 = vmatpush.msra.mxu0 %v5414
    %5619 = vmatpush.msra.mxu0 %v5410
    %5620 = vmatpush.msra.mxu0 %v5406
    %5621 = vmatpush.msra.mxu0 %v5402
    %5622 = vmatpush.msra.mxu0 %v5398
    %5623 = vmatpush.msra.mxu0 %v5394
    %5624 = vmatmul.f32.gmra.mxu0 %v5070
    %v5625 = vpop.f32.mrf.mxu0
    %v5626 = vadd.f32 %v5606, %v5625
    %5627 = vdwg.mxu0
    %5628 = vmatpush.msra.mxu0 %v5263
    %5629 = vmatpush.msra.mxu0 %v5259
    %5630 = vmatpush.msra.mxu0 %v5255
    %5631 = vmatpush.msra.mxu0 %v5251
    %5632 = vmatpush.msra.mxu0 %v5247
    %5633 = vmatpush.msra.mxu0 %v5243
    %5634 = vmatpush.msra.mxu0 %v5239
    %5635 = vmatpush.msra.mxu0 %v5235
    %5636 = vmatpush.msra.mxu0 %v5231
    %5637 = vmatpush.msra.mxu0 %v5227
    %5638 = vmatpush.msra.mxu0 %v5223
    %5639 = vmatpush.msra.mxu0 %v5219
    %5640 = vmatpush.msra.mxu0 %v5215
    %5641 = vmatpush.msra.mxu0 %v5211
    %5642 = vmatpush.msra.mxu0 %v5207
    %5643 = vmatpush.msra.mxu0 %v5203
    %5644 = vmatmul.f32.gmra.mxu0 %v4830
    %v5645 = vpop.f32.mrf.mxu0
    %v5646 = vadd.f32 %v5462, %v5645
    %5647 = vdwg.mxu0
    %5648 = vmatpush.msra.mxu0 %v5327
    %5649 = vmatpush.msra.mxu0 %v5323
    %5650 = vmatpush.msra.mxu0 %v5319
    %5651 = vmatpush.msra.mxu0 %v5315
    %5652 = vmatpush.msra.mxu0 %v5311
    %5653 = vmatpush.msra.mxu0 %v5307
    %5654 = vmatpush.msra.mxu0 %v5303
    %5655 = vmatpush.msra.mxu0 %v5299
    %5656 = vmatpush.msra.mxu0 %v5295
    %5657 = vmatpush.msra.mxu0 %v5291
    %5658 = vmatpush.msra.mxu0 %v5287
    %5659 = vmatpush.msra.mxu0 %v5283
    %5660 = vmatpush.msra.mxu0 %v5279
    %5661 = vmatpush.msra.mxu0 %v5275
    %5662 = vmatpush.msra.mxu0 %v5271
    %5663 = vmatpush.msra.mxu0 %v5267
    %5664 = vmatmul.f32.gmra.mxu0 %v4910
    %v5665 = vpop.f32.mrf.mxu0
    %v5666 = vadd.f32 %v5646, %v5665
    %5667 = vdwg.mxu0
    %5668 = vmatpush.msra.mxu0 %v5391
    %5669 = vmatpush.msra.mxu0 %v5387
    %5670 = vmatpush.msra.mxu0 %v5383
    %5671 = vmatpush.msra.mxu0 %v5379
    %5672 = vmatpush.msra.mxu0 %v5375
    %5673 = vmatpush.msra.mxu0 %v5371
    %5674 = vmatpush.msra.mxu0 %v5367
    %5675 = vmatpush.msra.mxu0 %v5363
    %5676 = vmatpush.msra.mxu0 %v5359
    %5677 = vmatpush.msra.mxu0 %v5355
    %5678 = vmatpush.msra.mxu0 %v5351
    %5679 = vmatpush.msra.mxu0 %v5347
    %5680 = vmatpush.msra.mxu0 %v5343
    %5681 = vmatpush.msra.mxu0 %v5339
    %5682 = vmatpush.msra.mxu0 %v5335
    %5683 = vmatpush.msra.mxu0 %v5331
    %5684 = vmatmul.f32.gmra.mxu0 %v4990
    %v5685 = vpop.f32.mrf.mxu0
    %v5686 = vadd.f32 %v5666, %v5685
    %5687 = vdwg.mxu0
    %5688 = vmatpush.msra.mxu0 %v5455
    %5689 = vmatpush.msra.mxu0 %v5451
    %5690 = vmatpush.msra.mxu0 %v5447
    %5691 = vmatpush.msra.mxu0 %v5443
    %5692 = vmatpush.msra.mxu0 %v5439
    %5693 = vmatpush.msra.mxu0 %v5435
    %5694 = vmatpush.msra.mxu0 %v5431
    %5695 = vmatpush.msra.mxu0 %v5427
    %5696 = vmatpush.msra.mxu0 %v5423
    %5697 = vmatpush.msra.mxu0 %v5419
    %5698 = vmatpush.msra.mxu0 %v5415
    %5699 = vmatpush.msra.mxu0 %v5411
    %5700 = vmatpush.msra.mxu0 %v5407
    %5701 = vmatpush.msra.mxu0 %v5403
    %5702 = vmatpush.msra.mxu0 %v5399
    %5703 = vmatpush.msra.mxu0 %v5395
    %5704 = vmatmul.f32.gmra.mxu0 %v5070
    %v5705 = vpop.f32.mrf.mxu0
    %v5706 = vadd.f32 %v5686, %v5705
    %5707 = vdwg.mxu0
    %5708 = vmatpush.msra.mxu0 %v5264
    %5709 = vmatpush.msra.mxu0 %v5260
    %5710 = vmatpush.msra.mxu0 %v5256
    %5711 = vmatpush.msra.mxu0 %v5252
    %5712 = vmatpush.msra.mxu0 %v5248
    %5713 = vmatpush.msra.mxu0 %v5244
    %5714 = vmatpush.msra.mxu0 %v5240
    %5715 = vmatpush.msra.mxu0 %v5236
    %5716 = vmatpush.msra.mxu0 %v5232
    %5717 = vmatpush.msra.mxu0 %v5228
    %5718 = vmatpush.msra.mxu0 %v5224
    %5719 = vmatpush.msra.mxu0 %v5220
    %5720 = vmatpush.msra.mxu0 %v5216
    %5721 = vmatpush.msra.mxu0 %v5212
    %5722 = vmatpush.msra.mxu0 %v5208
    %5723 = vmatpush.msra.mxu0 %v5204
    %5724 = vmatmul.f32.gmra.mxu0 %v4830
    %v5725 = vpop.f32.mrf.mxu0
    %v5726 = vadd.f32 %v5463, %v5725
    %5727 = vdwg.mxu0
    %5728 = vmatpush.msra.mxu0 %v5328
    %5729 = vmatpush.msra.mxu0 %v5324
    %5730 = vmatpush.msra.mxu0 %v5320
    %5731 = vmatpush.msra.mxu0 %v5316
    %5732 = vmatpush.msra.mxu0 %v5312
    %5733 = vmatpush.msra.mxu0 %v5308
    %5734 = vmatpush.msra.mxu0 %v5304
    %5735 = vmatpush.msra.mxu0 %v5300
    %5736 = vmatpush.msra.mxu0 %v5296
    %5737 = vmatpush.msra.mxu0 %v5292
    %5738 = vmatpush.msra.mxu0 %v5288
    %5739 = vmatpush.msra.mxu0 %v5284
    %5740 = vmatpush.msra.mxu0 %v5280
    %5741 = vmatpush.msra.mxu0 %v5276
    %5742 = vmatpush.msra.mxu0 %v5272
    %5743 = vmatpush.msra.mxu0 %v5268
    %5744 = vmatmul.f32.gmra.mxu0 %v4910
    %v5745 = vpop.f32.mrf.mxu0
    %v5746 = vadd.f32 %v5726, %v5745
    %5747 = vdwg.mxu0
    %5748 = vmatpush.msra.mxu0 %v5392
    %5749 = vmatpush.msra.mxu0 %v5388
    %5750 = vmatpush.msra.mxu0 %v5384
    %5751 = vmatpush.msra.mxu0 %v5380
    %5752 = vmatpush.msra.mxu0 %v5376
    %5753 = vmatpush.msra.mxu0 %v5372
    %5754 = vmatpush.msra.mxu0 %v5368
    %5755 = vmatpush.msra.mxu0 %v5364
    %5756 = vmatpush.msra.mxu0 %v5360
    %5757 = vmatpush.msra.mxu0 %v5356
    %5758 = vmatpush.msra.mxu0 %v5352
    %5759 = vmatpush.msra.mxu0 %v5348
    %5760 = vmatpush.msra.mxu0 %v5344
    %5761 = vmatpush.msra.mxu0 %v5340
    %5762 = vmatpush.msra.mxu0 %v5336
    %5763 = vmatpush.msra.mxu0 %v5332
    %5764 = vmatmul.f32.gmra.mxu0 %v4990
    %v5765 = vpop.f32.mrf.mxu0
    %v5766 = vadd.f32 %v5746, %v5765
    %5767 = vdwg.mxu0
    %5768 = vmatpush.msra.mxu0 %v5456
    %5769 = vmatpush.msra.mxu0 %v5452
    %5770 = vmatpush.msra.mxu0 %v5448
    %5771 = vmatpush.msra.mxu0 %v5444
    %5772 = vmatpush.msra.mxu0 %v5440
    %5773 = vmatpush.msra.mxu0 %v5436
    %5774 = vmatpush.msra.mxu0 %v5432
    %5775 = vmatpush.msra.mxu0 %v5428
    %5776 = vmatpush.msra.mxu0 %v5424
    %5777 = vmatpush.msra.mxu0 %v5420
    %5778 = vmatpush.msra.mxu0 %v5416
    %5779 = vmatpush.msra.mxu0 %v5412
    %5780 = vmatpush.msra.mxu0 %v5408
    %5781 = vmatpush.msra.mxu0 %v5404
    %5782 = vmatpush.msra.mxu0 %v5400
    %5783 = vmatpush.msra.mxu0 %v5396
    %5784 = vmatmul.f32.gmra.mxu0 %v5070
    %v5785 = vpop.f32.mrf.mxu0
    %v5786 = vadd.f32 %v5766, %v5785
    %5787 = vdwg.mxu0
    %5788 = vst [vmem:[#allocation8] sm:$0xff] %v5546
    %5789 = vst [vmem:[#allocation8 + $0x8] sm:$0xff] %v5626
    %5790 = vst [vmem:[#allocation8 + $0x10] sm:$0xff] %v5706
    %5791 = vst [vmem:[#allocation8 + $0x18] sm:$0xff] %v5786
    // Predicated region
    $region26: #{tpu_custom_call.1} parent=1 // pred_check
      _
    $region27: #{tpu_custom_call.1} parent=1 // pred_check_branch
      %5793 = sbr.rel (0) target = $region29
    $region28: #{tpu_custom_call.1} parent=1 // pred_region
      %5795 = vsyncadd [#allocation4], 0
      %s5797 = sshll.u32 [#allocation8], 4
      %s5798 = int_to_ptr.vmem [resolvable:$true] %s5797
      %s5799 = sshll.u32 %s3, 4
      %s5800 = int_to_ptr.hbm [resolvable:$true] %s5799
      %5802 = dma.vmem_to_hbm [thread:$0]  %s5798, 512, %s5800, [#allocation4]
    $region29: #{tpu_custom_call.1} parent=1 // pred_fallthru
      _
    // Predicated region
    $region30: #{tpu_custom_call.1} parent=1 // pred_check
      _
    $region31: #{tpu_custom_call.1} parent=1 // pred_check_branch
      %5804 = sbr.rel (0) target = $region33
    $region32: #{tpu_custom_call.1} parent=1 // pred_region
      %5806 = dma.done [#allocation4], 512
    $region33: #{tpu_custom_call.1} parent=1 // pred_fallthru
      _
    %5807 = vsyncpa [#allocation3], 1
    %5808 = vsyncpa [#allocation6], 1
    %5809 = vsyncpa [#allocation4], 1

</llo_original>
